<compile_context>
chip_gen: v7x
topology: tpu7x:2x2x1
jax: 0.10.0
libtpu: 0.0.40
codegen_flags: <defaults>
</compile_context>

<pallas_src>
import functools

import jax
import jax.numpy as jnp
from jax import lax
from jax.experimental import pallas as pl
from jax.experimental.pallas import tpu as pltpu


# ----------------------------------------------------------------------------
# Fused kernel: [for t in 0..T): conv-current -> LIF1 -> linear -> LIF2] -> mean
# Grid: (B,) ; one kernel instance handles the full time recurrence of one
# batch item, so the batch axis is freely "parallel" (v7x megacore).
# ----------------------------------------------------------------------------
def _fused_snn_kernel(patches_ref,    # (T, K9p, HW)    bf16  per-batch im2col
                      w1_ref,         # (Cout, K9p)     bf16  conv weight
                      b1_ref,         # (Cout, 1)       f32   conv bias
                      w2_ref,         # (Cout, HW, Np)  bf16  linear weight
                      b2_ref,         # (1, Np)         f32   linear bias
                      mean_ref,       # (1, Np)         f32   output: time-mean
                      *, decay, thresh, shift, init_mem, nb_steps):
    cout = w2_ref.shape[0]
    hw = w2_ref.shape[1]
    npad = b2_ref.shape[-1]

    w1 = w1_ref[...]                      # VMEM resident, tiny
    b1 = b1_ref[...]
    b2 = b2_ref[...]

    def step(t, carry):
        mem1, mem2, acc = carry

        # ---- layer 1: conv as one dense MXU dot, (Cout, K9p)@(K9p, HW) ----
        cur1 = jnp.dot(w1, patches_ref[t],
                       preferred_element_type=jnp.float32) + b1      # (Cout, HW)

        # ---- LIF1: leaky integrate, threshold, soft reset, binary spike ----
        mem1 = mem1 * decay + cur1 + shift
        spk1 = (mem1 >= thresh).astype(jnp.float32)
        mem1 = mem1 - spk1 * thresh

        # ---- layer 2: contract over (c, hw) in PyTorch Flatten (C,H,W) order
        # as Cout independent M=1 MXU dots + log-depth tree sum (no serial
        # accumulation chain; the MXU pushes can pipeline). ----
        spk1_b = spk1.astype(w2_ref.dtype)                            # exact 0/1
        parts = [jnp.dot(spk1_b[c:c + 1, :], w2_ref[c],
                         preferred_element_type=jnp.float32)
                 for c in range(cout)]                                # (1, Np) each
        while len(parts) > 1:
            nxt = [parts[i] + parts[i + 1] for i in range(0, len(parts) - 1, 2)]
            if len(parts) % 2:
                nxt.append(parts[-1])
            parts = nxt
        cur2 = parts[0] + b2                                          # (1, Np)

        # ---- LIF2 ----
        mem2 = mem2 * decay + cur2 + shift
        spk2 = (mem2 >= thresh).astype(jnp.float32)
        mem2 = mem2 - spk2 * thresh

        return mem1, mem2, acc + spk2

    init = (jnp.full((cout, hw), init_mem, jnp.float32),   # mem1 (reset_membrane_potential)
            jnp.full((1, npad), init_mem, jnp.float32),    # mem2
            jnp.zeros((1, npad), jnp.float32))              # running spike sum
    _, _, acc = lax.fori_loop(0, nb_steps, step, init, unroll=True)

    mean_ref[...] = acc * (1.0 / nb_steps)                  # out.mean(axis=0)


# ----------------------------------------------------------------------------
# Full IsomorphicSNN forward (mode='spike', record_interval=None path)
# ----------------------------------------------------------------------------
def isomorphic_snn_forward(x, params, *, nb_steps, decay, thresh,
                           enable_shift=False, enable_init_volt=False):
    """x: [T, B, C, H, W] float32 (PyTorch NCHW per timestep).

    Returns the time-mean of the final LIF layer's spike output: [B, n_out].
    """
    T, B, C, H, W = x.shape
    assert T == nb_steps
    shift = abs(thresh) / (2.0 * nb_steps) if enable_shift else 0.0
    init_mem = abs(thresh) / 2.0 if enable_init_volt else 0.0

    w_conv = params["w_conv"]          # [Cout, Cin, 3, 3]  (PyTorch conv layout)
    b_conv = params["b_conv"]          # [Cout]
    w_fc = params["w_fc"]              # [Cout*H*W, n_out]  (input axis in (C,H,W) order)
    b_fc = params["b_fc"]              # [n_out]
    Cout = w_conv.shape[0]
    n_out = w_fc.shape[1]
    HW = H * W
    K9 = 9 * C
    K9p = ((K9 + 15) // 16) * 16                # bf16 sublane-packed K feed
    n_pad = ((n_out + 127) // 128) * 128        # lane-dense LIF2 / mean tiles

    # --- im2col once in the wrapper, (B, T, 9*Cin, H*W) layout, bf16, so the
    # in-kernel conv is one dense dot with a packed (Cout, H*W) output. --------
    xb = jnp.transpose(x, (1, 0, 2, 3, 4))                        # [B,T,C,H,W]
    xp = jnp.pad(xb, ((0, 0), (0, 0), (0, 0), (1, 1), (1, 1)))    # spatial pad 1
    taps = [xp[:, :, :, dy:dy + H, dx:dx + W]
            for dy in range(3) for dx in range(3)]                # 9 x [B,T,C,H,W]
    patches = jnp.stack(taps, axis=2).reshape(B, T, K9, HW)       # (tap, cin) order
    patches = jnp.pad(patches, ((0, 0), (0, 0), (0, K9p - K9), (0, 0)))
    patches = patches.astype(jnp.bfloat16)

    # Weight re-layouts (constant-shaped, tiny):
    w1 = jnp.transpose(w_conv, (0, 2, 3, 1)).reshape(Cout, K9)    # (ky,kx,cin)
    w1 = jnp.pad(w1, ((0, 0), (0, K9p - K9))).astype(jnp.bfloat16)
    b1 = b_conv.reshape(Cout, 1).astype(jnp.float32)
    w2 = jnp.pad(w_fc, ((0, 0), (0, n_pad - n_out)))
    w2 = w2.reshape(Cout, HW, n_pad).astype(jnp.bfloat16)
    b2 = jnp.pad(b_fc, (0, n_pad - n_out)).reshape(1, n_pad).astype(jnp.float32)

    kernel = functools.partial(
        _fused_snn_kernel, decay=float(decay), thresh=float(thresh),
        shift=float(shift), init_mem=float(init_mem), nb_steps=T)

    mean = pl.pallas_call(
        kernel,
        out_shape=jax.ShapeDtypeStruct((B, 1, n_pad), jnp.float32),
        grid=(B,),
        in_specs=[
            # leading batch dim squeezed -> kernel sees (T, K9p, HW)
            pl.BlockSpec((None, T, K9p, HW), lambda b: (b, 0, 0, 0)),
            # weights: constant index maps -> DMA'd once, VMEM resident
            pl.BlockSpec((Cout, K9p), lambda b: (0, 0)),
            pl.BlockSpec((Cout, 1), lambda b: (0, 0)),
            pl.BlockSpec((Cout, HW, n_pad), lambda b: (0, 0, 0)),
            pl.BlockSpec((1, n_pad), lambda b: (0, 0)),
        ],
        out_specs=pl.BlockSpec((None, 1, n_pad), lambda b: (b, 0, 0)),
        compiler_params=pltpu.CompilerParams(
            dimension_semantics=("parallel",),
            # actual VMEM footprint is ~1.5 MiB; 32 MiB is safe on v5e/v6e/v7x.
            vmem_limit_bytes=32 * 1024 * 1024),
    )(patches, w1, b1, w2, b2)

    return mean[:, 0, :n_out]                         # strip lane padding


# ----------------------------------------------------------------------------
# Deterministic parameter init
# ----------------------------------------------------------------------------
def init_params(key, *, c_in, c_out, h, w, n_out):
    k1, k2, k3, k4 = jax.random.split(key, 4)
    return {
        "w_conv": 0.3 * jax.random.normal(k1, (c_out, c_in, 3, 3), jnp.float32),
        "b_conv": 0.1 * jax.random.normal(k2, (c_out,), jnp.float32),
        # Linear weight stored as [Cout*H*W, n_out] with the input axis in
        # PyTorch Flatten (C, H, W) order (i.e. torch weight.T).
        "w_fc": 0.05 * jax.random.normal(k3, (c_out * h * w, n_out), jnp.float32),
        "b_fc": 0.1 * jax.random.normal(k4, (n_out,), jnp.float32),
    }


if __name__ == "__main__":
    T, B, C, H, W = 8, 2, 4, 16, 16      # nb_steps=8, batch=2, channels=4, 16x16
    C_OUT, N_OUT = 8, 10
    DECAY, THRESH = 0.9, 1.0

    key = jax.random.PRNGKey(0)
    kx, kp = jax.random.split(key)
    x = jax.random.normal(kx, (T, B, C, H, W), jnp.float32)
    params = init_params(kp, c_in=C, c_out=C_OUT, h=H, w=W, n_out=N_OUT)

    fwd = jax.jit(functools.partial(
        isomorphic_snn_forward, nb_steps=T, decay=DECAY, thresh=THRESH,
        enable_shift=False, enable_init_volt=False))
    out = fwd(x, params)
    jax.block_until_ready(out)
    assert out.shape == (B, N_OUT) and out.dtype == jnp.float32
    assert bool(jnp.all(jnp.isfinite(out)))
    assert bool(jnp.all((out >= 0.0) & (out <= 1.0)))   # mean of binary spikes
    print("KERNEL_OK")
</pallas_src>

<mosaic_0001>
module attributes {stable_mosaic.version = 11 : i64} {
  func.func @_fused_snn_kernel(%arg0: i32, %arg1: memref<1x8x48x256xbf16, #tpu.memory_space<vmem>>, %arg2: memref<8x48xbf16, #tpu.memory_space<vmem>>, %arg3: memref<8x1xf32, #tpu.memory_space<vmem>>, %arg4: memref<8x256x128xbf16, #tpu.memory_space<vmem>>, %arg5: memref<1x128xf32, #tpu.memory_space<vmem>>, %arg6: memref<1x1x128xf32, #tpu.memory_space<vmem>>) attributes {dimension_semantics = [#tpu.dimension_semantics<parallel>], iteration_bounds = array<i64: 2>, scalar_prefetch = 0 : i64, scratch_operands = 0 : i64, tpu.core_type = #tpu.core_type<tc>, window_params = [{transform_indices = @transform_0, window_bounds = array<i64: 1, 8, 48, 256>}, {pipeline_mode = #tpu.pipeline_mode<synchronous>, transform_indices = @transform_1, window_bounds = array<i64: 8, 48>}, {pipeline_mode = #tpu.pipeline_mode<synchronous>, transform_indices = @transform_2, window_bounds = array<i64: 8, 1>}, {pipeline_mode = #tpu.pipeline_mode<synchronous>, transform_indices = @transform_3, window_bounds = array<i64: 8, 256, 128>}, {pipeline_mode = #tpu.pipeline_mode<synchronous>, transform_indices = @transform_4, window_bounds = array<i64: 1, 128>}, {transform_indices = @transform_5, window_bounds = array<i64: 1, 1, 128>}]} {
    %c0 = arith.constant 0 : index
    %c0_0 = arith.constant 0 : index
    %0 = vector.load %arg2[%c0, %c0_0] : memref<8x48xbf16, #tpu.memory_space<vmem>>, vector<8x48xbf16>
    %c0_1 = arith.constant 0 : index
    %c0_2 = arith.constant 0 : index
    %1 = vector.load %arg3[%c0_1, %c0_2] : memref<8x1xf32, #tpu.memory_space<vmem>>, vector<8x1xf32>
    %c0_3 = arith.constant 0 : index
    %c0_4 = arith.constant 0 : index
    %2 = vector.load %arg5[%c0_3, %c0_4] : memref<1x128xf32, #tpu.memory_space<vmem>>, vector<1x128xf32>
    %cst = arith.constant 0.000000e+00 : f32
    %3 = vector.broadcast %cst : f32 to vector<8x256xf32>
    %cst_5 = arith.constant 0.000000e+00 : f32
    %4 = vector.broadcast %cst_5 : f32 to vector<1x128xf32>
    %cst_6 = arith.constant 0.000000e+00 : f32
    %5 = vector.broadcast %cst_6 : f32 to vector<1x128xf32>
    %c0_i32 = arith.constant 0 : i32
    %c0_7 = arith.constant 0 : index
    %6 = arith.index_cast %c0_i32 : i32 to index
    %c0_8 = arith.constant 0 : index
    %c0_9 = arith.constant 0 : index
    %7 = vector.load %arg1[%c0_7, %6, %c0_8, %c0_9] : memref<1x8x48x256xbf16, #tpu.memory_space<vmem>>, vector<1x1x48x256xbf16>
    %8 = vector.shape_cast %7 : vector<1x1x48x256xbf16> to vector<48x256xbf16>
    %cst_10 = arith.constant dense<0.000000e+00> : vector<8x256xf32>
    %9 = tpu.matmul %0, %8, %cst_10 {dimension_numbers = #tpu.dot_dimension_numbers<[1], [0], [0], [1], [0, 0, 1, 1], [], []>} : vector<8x48xbf16>, vector<48x256xbf16>, vector<8x256xf32> -> vector<8x256xf32>
    %10 = vector.broadcast %1 : vector<8x1xf32> to vector<8x256xf32>
    %11 = arith.addf %9, %10 : vector<8x256xf32>
    %cst_11 = arith.constant 0.899999976 : f32
    %12 = vector.broadcast %cst_11 : f32 to vector<8x256xf32>
    %13 = arith.mulf %3, %12 : vector<8x256xf32>
    %14 = arith.addf %13, %11 : vector<8x256xf32>
    %cst_12 = arith.constant 0.000000e+00 : f32
    %15 = vector.broadcast %cst_12 : f32 to vector<8x256xf32>
    %16 = arith.addf %14, %15 : vector<8x256xf32>
    %cst_13 = arith.constant 1.000000e+00 : f32
    %17 = vector.broadcast %cst_13 : f32 to vector<8x256xf32>
    %18 = arith.cmpf oge, %16, %17 : vector<8x256xf32>
    %19 = arith.extui %18 : vector<8x256xi1> to vector<8x256xi32>
    %20 = arith.sitofp %19 : vector<8x256xi32> to vector<8x256xf32>
    %cst_14 = arith.constant 1.000000e+00 : f32
    %21 = vector.broadcast %cst_14 : f32 to vector<8x256xf32>
    %22 = arith.mulf %20, %21 : vector<8x256xf32>
    %23 = arith.subf %16, %22 : vector<8x256xf32>
    %24 = arith.truncf %20 : vector<8x256xf32> to vector<8x256xbf16>
    %25 = vector.extract_strided_slice %24 {offsets = [0, 0], sizes = [1, 256], strides = [1, 1]} : vector<8x256xbf16> to vector<1x256xbf16>
    %c0_15 = arith.constant 0 : index
    %c0_16 = arith.constant 0 : index
    %c0_17 = arith.constant 0 : index
    %26 = vector.load %arg4[%c0_15, %c0_16, %c0_17] : memref<8x256x128xbf16, #tpu.memory_space<vmem>>, vector<1x256x128xbf16>
    %27 = vector.shape_cast %26 : vector<1x256x128xbf16> to vector<256x128xbf16>
    %cst_18 = arith.constant dense<0.000000e+00> : vector<1x128xf32>
    %28 = tpu.matmul %25, %27, %cst_18 {dimension_numbers = #tpu.dot_dimension_numbers<[1], [0], [0], [1], [0, 0, 1, 1], [], []>} : vector<1x256xbf16>, vector<256x128xbf16>, vector<1x128xf32> -> vector<1x128xf32>
    %29 = vector.extract_strided_slice %24 {offsets = [1, 0], sizes = [1, 256], strides = [1, 1]} : vector<8x256xbf16> to vector<1x256xbf16>
    %c1 = arith.constant 1 : index
    %c0_19 = arith.constant 0 : index
    %c0_20 = arith.constant 0 : index
    %30 = vector.load %arg4[%c1, %c0_19, %c0_20] : memref<8x256x128xbf16, #tpu.memory_space<vmem>>, vector<1x256x128xbf16>
    %31 = vector.shape_cast %30 : vector<1x256x128xbf16> to vector<256x128xbf16>
    %cst_21 = arith.constant dense<0.000000e+00> : vector<1x128xf32>
    %32 = tpu.matmul %29, %31, %cst_21 {dimension_numbers = #tpu.dot_dimension_numbers<[1], [0], [0], [1], [0, 0, 1, 1], [], []>} : vector<1x256xbf16>, vector<256x128xbf16>, vector<1x128xf32> -> vector<1x128xf32>
    %33 = vector.extract_strided_slice %24 {offsets = [2, 0], sizes = [1, 256], strides = [1, 1]} : vector<8x256xbf16> to vector<1x256xbf16>
    %c2 = arith.constant 2 : index
    %c0_22 = arith.constant 0 : index
    %c0_23 = arith.constant 0 : index
    %34 = vector.load %arg4[%c2, %c0_22, %c0_23] : memref<8x256x128xbf16, #tpu.memory_space<vmem>>, vector<1x256x128xbf16>
    %35 = vector.shape_cast %34 : vector<1x256x128xbf16> to vector<256x128xbf16>
    %cst_24 = arith.constant dense<0.000000e+00> : vector<1x128xf32>
    %36 = tpu.matmul %33, %35, %cst_24 {dimension_numbers = #tpu.dot_dimension_numbers<[1], [0], [0], [1], [0, 0, 1, 1], [], []>} : vector<1x256xbf16>, vector<256x128xbf16>, vector<1x128xf32> -> vector<1x128xf32>
    %37 = vector.extract_strided_slice %24 {offsets = [3, 0], sizes = [1, 256], strides = [1, 1]} : vector<8x256xbf16> to vector<1x256xbf16>
    %c3 = arith.constant 3 : index
    %c0_25 = arith.constant 0 : index
    %c0_26 = arith.constant 0 : index
    %38 = vector.load %arg4[%c3, %c0_25, %c0_26] : memref<8x256x128xbf16, #tpu.memory_space<vmem>>, vector<1x256x128xbf16>
    %39 = vector.shape_cast %38 : vector<1x256x128xbf16> to vector<256x128xbf16>
    %cst_27 = arith.constant dense<0.000000e+00> : vector<1x128xf32>
    %40 = tpu.matmul %37, %39, %cst_27 {dimension_numbers = #tpu.dot_dimension_numbers<[1], [0], [0], [1], [0, 0, 1, 1], [], []>} : vector<1x256xbf16>, vector<256x128xbf16>, vector<1x128xf32> -> vector<1x128xf32>
    %41 = vector.extract_strided_slice %24 {offsets = [4, 0], sizes = [1, 256], strides = [1, 1]} : vector<8x256xbf16> to vector<1x256xbf16>
    %c4 = arith.constant 4 : index
    %c0_28 = arith.constant 0 : index
    %c0_29 = arith.constant 0 : index
    %42 = vector.load %arg4[%c4, %c0_28, %c0_29] : memref<8x256x128xbf16, #tpu.memory_space<vmem>>, vector<1x256x128xbf16>
    %43 = vector.shape_cast %42 : vector<1x256x128xbf16> to vector<256x128xbf16>
    %cst_30 = arith.constant dense<0.000000e+00> : vector<1x128xf32>
    %44 = tpu.matmul %41, %43, %cst_30 {dimension_numbers = #tpu.dot_dimension_numbers<[1], [0], [0], [1], [0, 0, 1, 1], [], []>} : vector<1x256xbf16>, vector<256x128xbf16>, vector<1x128xf32> -> vector<1x128xf32>
    %45 = vector.extract_strided_slice %24 {offsets = [5, 0], sizes = [1, 256], strides = [1, 1]} : vector<8x256xbf16> to vector<1x256xbf16>
    %c5 = arith.constant 5 : index
    %c0_31 = arith.constant 0 : index
    %c0_32 = arith.constant 0 : index
    %46 = vector.load %arg4[%c5, %c0_31, %c0_32] : memref<8x256x128xbf16, #tpu.memory_space<vmem>>, vector<1x256x128xbf16>
    %47 = vector.shape_cast %46 : vector<1x256x128xbf16> to vector<256x128xbf16>
    %cst_33 = arith.constant dense<0.000000e+00> : vector<1x128xf32>
    %48 = tpu.matmul %45, %47, %cst_33 {dimension_numbers = #tpu.dot_dimension_numbers<[1], [0], [0], [1], [0, 0, 1, 1], [], []>} : vector<1x256xbf16>, vector<256x128xbf16>, vector<1x128xf32> -> vector<1x128xf32>
    %49 = vector.extract_strided_slice %24 {offsets = [6, 0], sizes = [1, 256], strides = [1, 1]} : vector<8x256xbf16> to vector<1x256xbf16>
    %c6 = arith.constant 6 : index
    %c0_34 = arith.constant 0 : index
    %c0_35 = arith.constant 0 : index
    %50 = vector.load %arg4[%c6, %c0_34, %c0_35] : memref<8x256x128xbf16, #tpu.memory_space<vmem>>, vector<1x256x128xbf16>
    %51 = vector.shape_cast %50 : vector<1x256x128xbf16> to vector<256x128xbf16>
    %cst_36 = arith.constant dense<0.000000e+00> : vector<1x128xf32>
    %52 = tpu.matmul %49, %51, %cst_36 {dimension_numbers = #tpu.dot_dimension_numbers<[1], [0], [0], [1], [0, 0, 1, 1], [], []>} : vector<1x256xbf16>, vector<256x128xbf16>, vector<1x128xf32> -> vector<1x128xf32>
    %53 = vector.extract_strided_slice %24 {offsets = [7, 0], sizes = [1, 256], strides = [1, 1]} : vector<8x256xbf16> to vector<1x256xbf16>
    %c7 = arith.constant 7 : index
    %c0_37 = arith.constant 0 : index
    %c0_38 = arith.constant 0 : index
    %54 = vector.load %arg4[%c7, %c0_37, %c0_38] : memref<8x256x128xbf16, #tpu.memory_space<vmem>>, vector<1x256x128xbf16>
    %55 = vector.shape_cast %54 : vector<1x256x128xbf16> to vector<256x128xbf16>
    %cst_39 = arith.constant dense<0.000000e+00> : vector<1x128xf32>
    %56 = tpu.matmul %53, %55, %cst_39 {dimension_numbers = #tpu.dot_dimension_numbers<[1], [0], [0], [1], [0, 0, 1, 1], [], []>} : vector<1x256xbf16>, vector<256x128xbf16>, vector<1x128xf32> -> vector<1x128xf32>
    %57 = arith.addf %28, %32 : vector<1x128xf32>
    %58 = arith.addf %36, %40 : vector<1x128xf32>
    %59 = arith.addf %44, %48 : vector<1x128xf32>
    %60 = arith.addf %52, %56 : vector<1x128xf32>
    %61 = arith.addf %57, %58 : vector<1x128xf32>
    %62 = arith.addf %59, %60 : vector<1x128xf32>
    %63 = arith.addf %61, %62 : vector<1x128xf32>
    %64 = arith.addf %63, %2 : vector<1x128xf32>
    %cst_40 = arith.constant 0.899999976 : f32
    %65 = vector.broadcast %cst_40 : f32 to vector<1x128xf32>
    %66 = arith.mulf %4, %65 : vector<1x128xf32>
    %67 = arith.addf %66, %64 : vector<1x128xf32>
    %cst_41 = arith.constant 0.000000e+00 : f32
    %68 = vector.broadcast %cst_41 : f32 to vector<1x128xf32>
    %69 = arith.addf %67, %68 : vector<1x128xf32>
    %cst_42 = arith.constant 1.000000e+00 : f32
    %70 = vector.broadcast %cst_42 : f32 to vector<1x128xf32>
    %71 = arith.cmpf oge, %69, %70 : vector<1x128xf32>
    %72 = arith.extui %71 : vector<1x128xi1> to vector<1x128xi32>
    %73 = arith.sitofp %72 : vector<1x128xi32> to vector<1x128xf32>
    %cst_43 = arith.constant 1.000000e+00 : f32
    %74 = vector.broadcast %cst_43 : f32 to vector<1x128xf32>
    %75 = arith.mulf %73, %74 : vector<1x128xf32>
    %76 = arith.subf %69, %75 : vector<1x128xf32>
    %77 = arith.addf %5, %73 : vector<1x128xf32>
    %c1_i32 = arith.constant 1 : i32
    %c0_44 = arith.constant 0 : index
    %78 = arith.index_cast %c1_i32 : i32 to index
    %c0_45 = arith.constant 0 : index
    %c0_46 = arith.constant 0 : index
    %79 = vector.load %arg1[%c0_44, %78, %c0_45, %c0_46] : memref<1x8x48x256xbf16, #tpu.memory_space<vmem>>, vector<1x1x48x256xbf16>
    %80 = vector.shape_cast %79 : vector<1x1x48x256xbf16> to vector<48x256xbf16>
    %cst_47 = arith.constant dense<0.000000e+00> : vector<8x256xf32>
    %81 = tpu.matmul %0, %80, %cst_47 {dimension_numbers = #tpu.dot_dimension_numbers<[1], [0], [0], [1], [0, 0, 1, 1], [], []>} : vector<8x48xbf16>, vector<48x256xbf16>, vector<8x256xf32> -> vector<8x256xf32>
    %82 = vector.broadcast %1 : vector<8x1xf32> to vector<8x256xf32>
    %83 = arith.addf %81, %82 : vector<8x256xf32>
    %cst_48 = arith.constant 0.899999976 : f32
    %84 = vector.broadcast %cst_48 : f32 to vector<8x256xf32>
    %85 = arith.mulf %23, %84 : vector<8x256xf32>
    %86 = arith.addf %85, %83 : vector<8x256xf32>
    %cst_49 = arith.constant 0.000000e+00 : f32
    %87 = vector.broadcast %cst_49 : f32 to vector<8x256xf32>
    %88 = arith.addf %86, %87 : vector<8x256xf32>
    %cst_50 = arith.constant 1.000000e+00 : f32
    %89 = vector.broadcast %cst_50 : f32 to vector<8x256xf32>
    %90 = arith.cmpf oge, %88, %89 : vector<8x256xf32>
    %91 = arith.extui %90 : vector<8x256xi1> to vector<8x256xi32>
    %92 = arith.sitofp %91 : vector<8x256xi32> to vector<8x256xf32>
    %cst_51 = arith.constant 1.000000e+00 : f32
    %93 = vector.broadcast %cst_51 : f32 to vector<8x256xf32>
    %94 = arith.mulf %92, %93 : vector<8x256xf32>
    %95 = arith.subf %88, %94 : vector<8x256xf32>
    %96 = arith.truncf %92 : vector<8x256xf32> to vector<8x256xbf16>
    %97 = vector.extract_strided_slice %96 {offsets = [0, 0], sizes = [1, 256], strides = [1, 1]} : vector<8x256xbf16> to vector<1x256xbf16>
    %c0_52 = arith.constant 0 : index
    %c0_53 = arith.constant 0 : index
    %c0_54 = arith.constant 0 : index
    %98 = vector.load %arg4[%c0_52, %c0_53, %c0_54] : memref<8x256x128xbf16, #tpu.memory_space<vmem>>, vector<1x256x128xbf16>
    %99 = vector.shape_cast %98 : vector<1x256x128xbf16> to vector<256x128xbf16>
    %cst_55 = arith.constant dense<0.000000e+00> : vector<1x128xf32>
    %100 = tpu.matmul %97, %99, %cst_55 {dimension_numbers = #tpu.dot_dimension_numbers<[1], [0], [0], [1], [0, 0, 1, 1], [], []>} : vector<1x256xbf16>, vector<256x128xbf16>, vector<1x128xf32> -> vector<1x128xf32>
    %101 = vector.extract_strided_slice %96 {offsets = [1, 0], sizes = [1, 256], strides = [1, 1]} : vector<8x256xbf16> to vector<1x256xbf16>
    %c1_56 = arith.constant 1 : index
    %c0_57 = arith.constant 0 : index
    %c0_58 = arith.constant 0 : index
    %102 = vector.load %arg4[%c1_56, %c0_57, %c0_58] : memref<8x256x128xbf16, #tpu.memory_space<vmem>>, vector<1x256x128xbf16>
    %103 = vector.shape_cast %102 : vector<1x256x128xbf16> to vector<256x128xbf16>
    %cst_59 = arith.constant dense<0.000000e+00> : vector<1x128xf32>
    %104 = tpu.matmul %101, %103, %cst_59 {dimension_numbers = #tpu.dot_dimension_numbers<[1], [0], [0], [1], [0, 0, 1, 1], [], []>} : vector<1x256xbf16>, vector<256x128xbf16>, vector<1x128xf32> -> vector<1x128xf32>
    %105 = vector.extract_strided_slice %96 {offsets = [2, 0], sizes = [1, 256], strides = [1, 1]} : vector<8x256xbf16> to vector<1x256xbf16>
    %c2_60 = arith.constant 2 : index
    %c0_61 = arith.constant 0 : index
    %c0_62 = arith.constant 0 : index
    %106 = vector.load %arg4[%c2_60, %c0_61, %c0_62] : memref<8x256x128xbf16, #tpu.memory_space<vmem>>, vector<1x256x128xbf16>
    %107 = vector.shape_cast %106 : vector<1x256x128xbf16> to vector<256x128xbf16>
    %cst_63 = arith.constant dense<0.000000e+00> : vector<1x128xf32>
    %108 = tpu.matmul %105, %107, %cst_63 {dimension_numbers = #tpu.dot_dimension_numbers<[1], [0], [0], [1], [0, 0, 1, 1], [], []>} : vector<1x256xbf16>, vector<256x128xbf16>, vector<1x128xf32> -> vector<1x128xf32>
    %109 = vector.extract_strided_slice %96 {offsets = [3, 0], sizes = [1, 256], strides = [1, 1]} : vector<8x256xbf16> to vector<1x256xbf16>
    %c3_64 = arith.constant 3 : index
    %c0_65 = arith.constant 0 : index
    %c0_66 = arith.constant 0 : index
    %110 = vector.load %arg4[%c3_64, %c0_65, %c0_66] : memref<8x256x128xbf16, #tpu.memory_space<vmem>>, vector<1x256x128xbf16>
    %111 = vector.shape_cast %110 : vector<1x256x128xbf16> to vector<256x128xbf16>
    %cst_67 = arith.constant dense<0.000000e+00> : vector<1x128xf32>
    %112 = tpu.matmul %109, %111, %cst_67 {dimension_numbers = #tpu.dot_dimension_numbers<[1], [0], [0], [1], [0, 0, 1, 1], [], []>} : vector<1x256xbf16>, vector<256x128xbf16>, vector<1x128xf32> -> vector<1x128xf32>
    %113 = vector.extract_strided_slice %96 {offsets = [4, 0], sizes = [1, 256], strides = [1, 1]} : vector<8x256xbf16> to vector<1x256xbf16>
    %c4_68 = arith.constant 4 : index
    %c0_69 = arith.constant 0 : index
    %c0_70 = arith.constant 0 : index
    %114 = vector.load %arg4[%c4_68, %c0_69, %c0_70] : memref<8x256x128xbf16, #tpu.memory_space<vmem>>, vector<1x256x128xbf16>
    %115 = vector.shape_cast %114 : vector<1x256x128xbf16> to vector<256x128xbf16>
    %cst_71 = arith.constant dense<0.000000e+00> : vector<1x128xf32>
    %116 = tpu.matmul %113, %115, %cst_71 {dimension_numbers = #tpu.dot_dimension_numbers<[1], [0], [0], [1], [0, 0, 1, 1], [], []>} : vector<1x256xbf16>, vector<256x128xbf16>, vector<1x128xf32> -> vector<1x128xf32>
    %117 = vector.extract_strided_slice %96 {offsets = [5, 0], sizes = [1, 256], strides = [1, 1]} : vector<8x256xbf16> to vector<1x256xbf16>
    %c5_72 = arith.constant 5 : index
    %c0_73 = arith.constant 0 : index
    %c0_74 = arith.constant 0 : index
    %118 = vector.load %arg4[%c5_72, %c0_73, %c0_74] : memref<8x256x128xbf16, #tpu.memory_space<vmem>>, vector<1x256x128xbf16>
    %119 = vector.shape_cast %118 : vector<1x256x128xbf16> to vector<256x128xbf16>
    %cst_75 = arith.constant dense<0.000000e+00> : vector<1x128xf32>
    %120 = tpu.matmul %117, %119, %cst_75 {dimension_numbers = #tpu.dot_dimension_numbers<[1], [0], [0], [1], [0, 0, 1, 1], [], []>} : vector<1x256xbf16>, vector<256x128xbf16>, vector<1x128xf32> -> vector<1x128xf32>
    %121 = vector.extract_strided_slice %96 {offsets = [6, 0], sizes = [1, 256], strides = [1, 1]} : vector<8x256xbf16> to vector<1x256xbf16>
    %c6_76 = arith.constant 6 : index
    %c0_77 = arith.constant 0 : index
    %c0_78 = arith.constant 0 : index
    %122 = vector.load %arg4[%c6_76, %c0_77, %c0_78] : memref<8x256x128xbf16, #tpu.memory_space<vmem>>, vector<1x256x128xbf16>
    %123 = vector.shape_cast %122 : vector<1x256x128xbf16> to vector<256x128xbf16>
    %cst_79 = arith.constant dense<0.000000e+00> : vector<1x128xf32>
    %124 = tpu.matmul %121, %123, %cst_79 {dimension_numbers = #tpu.dot_dimension_numbers<[1], [0], [0], [1], [0, 0, 1, 1], [], []>} : vector<1x256xbf16>, vector<256x128xbf16>, vector<1x128xf32> -> vector<1x128xf32>
    %125 = vector.extract_strided_slice %96 {offsets = [7, 0], sizes = [1, 256], strides = [1, 1]} : vector<8x256xbf16> to vector<1x256xbf16>
    %c7_80 = arith.constant 7 : index
    %c0_81 = arith.constant 0 : index
    %c0_82 = arith.constant 0 : index
    %126 = vector.load %arg4[%c7_80, %c0_81, %c0_82] : memref<8x256x128xbf16, #tpu.memory_space<vmem>>, vector<1x256x128xbf16>
    %127 = vector.shape_cast %126 : vector<1x256x128xbf16> to vector<256x128xbf16>
    %cst_83 = arith.constant dense<0.000000e+00> : vector<1x128xf32>
    %128 = tpu.matmul %125, %127, %cst_83 {dimension_numbers = #tpu.dot_dimension_numbers<[1], [0], [0], [1], [0, 0, 1, 1], [], []>} : vector<1x256xbf16>, vector<256x128xbf16>, vector<1x128xf32> -> vector<1x128xf32>
    %129 = arith.addf %100, %104 : vector<1x128xf32>
    %130 = arith.addf %108, %112 : vector<1x128xf32>
    %131 = arith.addf %116, %120 : vector<1x128xf32>
    %132 = arith.addf %124, %128 : vector<1x128xf32>
    %133 = arith.addf %129, %130 : vector<1x128xf32>
    %134 = arith.addf %131, %132 : vector<1x128xf32>
    %135 = arith.addf %133, %134 : vector<1x128xf32>
    %136 = arith.addf %135, %2 : vector<1x128xf32>
    %cst_84 = arith.constant 0.899999976 : f32
    %137 = vector.broadcast %cst_84 : f32 to vector<1x128xf32>
    %138 = arith.mulf %76, %137 : vector<1x128xf32>
    %139 = arith.addf %138, %136 : vector<1x128xf32>
    %cst_85 = arith.constant 0.000000e+00 : f32
    %140 = vector.broadcast %cst_85 : f32 to vector<1x128xf32>
    %141 = arith.addf %139, %140 : vector<1x128xf32>
    %cst_86 = arith.constant 1.000000e+00 : f32
    %142 = vector.broadcast %cst_86 : f32 to vector<1x128xf32>
    %143 = arith.cmpf oge, %141, %142 : vector<1x128xf32>
    %144 = arith.extui %143 : vector<1x128xi1> to vector<1x128xi32>
    %145 = arith.sitofp %144 : vector<1x128xi32> to vector<1x128xf32>
    %cst_87 = arith.constant 1.000000e+00 : f32
    %146 = vector.broadcast %cst_87 : f32 to vector<1x128xf32>
    %147 = arith.mulf %145, %146 : vector<1x128xf32>
    %148 = arith.subf %141, %147 : vector<1x128xf32>
    %149 = arith.addf %77, %145 : vector<1x128xf32>
    %c2_i32 = arith.constant 2 : i32
    %c0_88 = arith.constant 0 : index
    %150 = arith.index_cast %c2_i32 : i32 to index
    %c0_89 = arith.constant 0 : index
    %c0_90 = arith.constant 0 : index
    %151 = vector.load %arg1[%c0_88, %150, %c0_89, %c0_90] : memref<1x8x48x256xbf16, #tpu.memory_space<vmem>>, vector<1x1x48x256xbf16>
    %152 = vector.shape_cast %151 : vector<1x1x48x256xbf16> to vector<48x256xbf16>
    %cst_91 = arith.constant dense<0.000000e+00> : vector<8x256xf32>
    %153 = tpu.matmul %0, %152, %cst_91 {dimension_numbers = #tpu.dot_dimension_numbers<[1], [0], [0], [1], [0, 0, 1, 1], [], []>} : vector<8x48xbf16>, vector<48x256xbf16>, vector<8x256xf32> -> vector<8x256xf32>
    %154 = vector.broadcast %1 : vector<8x1xf32> to vector<8x256xf32>
    %155 = arith.addf %153, %154 : vector<8x256xf32>
    %cst_92 = arith.constant 0.899999976 : f32
    %156 = vector.broadcast %cst_92 : f32 to vector<8x256xf32>
    %157 = arith.mulf %95, %156 : vector<8x256xf32>
    %158 = arith.addf %157, %155 : vector<8x256xf32>
    %cst_93 = arith.constant 0.000000e+00 : f32
    %159 = vector.broadcast %cst_93 : f32 to vector<8x256xf32>
    %160 = arith.addf %158, %159 : vector<8x256xf32>
    %cst_94 = arith.constant 1.000000e+00 : f32
    %161 = vector.broadcast %cst_94 : f32 to vector<8x256xf32>
    %162 = arith.cmpf oge, %160, %161 : vector<8x256xf32>
    %163 = arith.extui %162 : vector<8x256xi1> to vector<8x256xi32>
    %164 = arith.sitofp %163 : vector<8x256xi32> to vector<8x256xf32>
    %cst_95 = arith.constant 1.000000e+00 : f32
    %165 = vector.broadcast %cst_95 : f32 to vector<8x256xf32>
    %166 = arith.mulf %164, %165 : vector<8x256xf32>
    %167 = arith.subf %160, %166 : vector<8x256xf32>
    %168 = arith.truncf %164 : vector<8x256xf32> to vector<8x256xbf16>
    %169 = vector.extract_strided_slice %168 {offsets = [0, 0], sizes = [1, 256], strides = [1, 1]} : vector<8x256xbf16> to vector<1x256xbf16>
    %c0_96 = arith.constant 0 : index
    %c0_97 = arith.constant 0 : index
    %c0_98 = arith.constant 0 : index
    %170 = vector.load %arg4[%c0_96, %c0_97, %c0_98] : memref<8x256x128xbf16, #tpu.memory_space<vmem>>, vector<1x256x128xbf16>
    %171 = vector.shape_cast %170 : vector<1x256x128xbf16> to vector<256x128xbf16>
    %cst_99 = arith.constant dense<0.000000e+00> : vector<1x128xf32>
    %172 = tpu.matmul %169, %171, %cst_99 {dimension_numbers = #tpu.dot_dimension_numbers<[1], [0], [0], [1], [0, 0, 1, 1], [], []>} : vector<1x256xbf16>, vector<256x128xbf16>, vector<1x128xf32> -> vector<1x128xf32>
    %173 = vector.extract_strided_slice %168 {offsets = [1, 0], sizes = [1, 256], strides = [1, 1]} : vector<8x256xbf16> to vector<1x256xbf16>
    %c1_100 = arith.constant 1 : index
    %c0_101 = arith.constant 0 : index
    %c0_102 = arith.constant 0 : index
    %174 = vector.load %arg4[%c1_100, %c0_101, %c0_102] : memref<8x256x128xbf16, #tpu.memory_space<vmem>>, vector<1x256x128xbf16>
    %175 = vector.shape_cast %174 : vector<1x256x128xbf16> to vector<256x128xbf16>
    %cst_103 = arith.constant dense<0.000000e+00> : vector<1x128xf32>
    %176 = tpu.matmul %173, %175, %cst_103 {dimension_numbers = #tpu.dot_dimension_numbers<[1], [0], [0], [1], [0, 0, 1, 1], [], []>} : vector<1x256xbf16>, vector<256x128xbf16>, vector<1x128xf32> -> vector<1x128xf32>
    %177 = vector.extract_strided_slice %168 {offsets = [2, 0], sizes = [1, 256], strides = [1, 1]} : vector<8x256xbf16> to vector<1x256xbf16>
    %c2_104 = arith.constant 2 : index
    %c0_105 = arith.constant 0 : index
    %c0_106 = arith.constant 0 : index
    %178 = vector.load %arg4[%c2_104, %c0_105, %c0_106] : memref<8x256x128xbf16, #tpu.memory_space<vmem>>, vector<1x256x128xbf16>
    %179 = vector.shape_cast %178 : vector<1x256x128xbf16> to vector<256x128xbf16>
    %cst_107 = arith.constant dense<0.000000e+00> : vector<1x128xf32>
    %180 = tpu.matmul %177, %179, %cst_107 {dimension_numbers = #tpu.dot_dimension_numbers<[1], [0], [0], [1], [0, 0, 1, 1], [], []>} : vector<1x256xbf16>, vector<256x128xbf16>, vector<1x128xf32> -> vector<1x128xf32>
    %181 = vector.extract_strided_slice %168 {offsets = [3, 0], sizes = [1, 256], strides = [1, 1]} : vector<8x256xbf16> to vector<1x256xbf16>
    %c3_108 = arith.constant 3 : index
    %c0_109 = arith.constant 0 : index
    %c0_110 = arith.constant 0 : index
    %182 = vector.load %arg4[%c3_108, %c0_109, %c0_110] : memref<8x256x128xbf16, #tpu.memory_space<vmem>>, vector<1x256x128xbf16>
    %183 = vector.shape_cast %182 : vector<1x256x128xbf16> to vector<256x128xbf16>
    %cst_111 = arith.constant dense<0.000000e+00> : vector<1x128xf32>
    %184 = tpu.matmul %181, %183, %cst_111 {dimension_numbers = #tpu.dot_dimension_numbers<[1], [0], [0], [1], [0, 0, 1, 1], [], []>} : vector<1x256xbf16>, vector<256x128xbf16>, vector<1x128xf32> -> vector<1x128xf32>
    %185 = vector.extract_strided_slice %168 {offsets = [4, 0], sizes = [1, 256], strides = [1, 1]} : vector<8x256xbf16> to vector<1x256xbf16>
    %c4_112 = arith.constant 4 : index
    %c0_113 = arith.constant 0 : index
    %c0_114 = arith.constant 0 : index
    %186 = vector.load %arg4[%c4_112, %c0_113, %c0_114] : memref<8x256x128xbf16, #tpu.memory_space<vmem>>, vector<1x256x128xbf16>
    %187 = vector.shape_cast %186 : vector<1x256x128xbf16> to vector<256x128xbf16>
    %cst_115 = arith.constant dense<0.000000e+00> : vector<1x128xf32>
    %188 = tpu.matmul %185, %187, %cst_115 {dimension_numbers = #tpu.dot_dimension_numbers<[1], [0], [0], [1], [0, 0, 1, 1], [], []>} : vector<1x256xbf16>, vector<256x128xbf16>, vector<1x128xf32> -> vector<1x128xf32>
    %189 = vector.extract_strided_slice %168 {offsets = [5, 0], sizes = [1, 256], strides = [1, 1]} : vector<8x256xbf16> to vector<1x256xbf16>
    %c5_116 = arith.constant 5 : index
    %c0_117 = arith.constant 0 : index
    %c0_118 = arith.constant 0 : index
    %190 = vector.load %arg4[%c5_116, %c0_117, %c0_118] : memref<8x256x128xbf16, #tpu.memory_space<vmem>>, vector<1x256x128xbf16>
    %191 = vector.shape_cast %190 : vector<1x256x128xbf16> to vector<256x128xbf16>
    %cst_119 = arith.constant dense<0.000000e+00> : vector<1x128xf32>
    %192 = tpu.matmul %189, %191, %cst_119 {dimension_numbers = #tpu.dot_dimension_numbers<[1], [0], [0], [1], [0, 0, 1, 1], [], []>} : vector<1x256xbf16>, vector<256x128xbf16>, vector<1x128xf32> -> vector<1x128xf32>
    %193 = vector.extract_strided_slice %168 {offsets = [6, 0], sizes = [1, 256], strides = [1, 1]} : vector<8x256xbf16> to vector<1x256xbf16>
    %c6_120 = arith.constant 6 : index
    %c0_121 = arith.constant 0 : index
    %c0_122 = arith.constant 0 : index
    %194 = vector.load %arg4[%c6_120, %c0_121, %c0_122] : memref<8x256x128xbf16, #tpu.memory_space<vmem>>, vector<1x256x128xbf16>
    %195 = vector.shape_cast %194 : vector<1x256x128xbf16> to vector<256x128xbf16>
    %cst_123 = arith.constant dense<0.000000e+00> : vector<1x128xf32>
    %196 = tpu.matmul %193, %195, %cst_123 {dimension_numbers = #tpu.dot_dimension_numbers<[1], [0], [0], [1], [0, 0, 1, 1], [], []>} : vector<1x256xbf16>, vector<256x128xbf16>, vector<1x128xf32> -> vector<1x128xf32>
    %197 = vector.extract_strided_slice %168 {offsets = [7, 0], sizes = [1, 256], strides = [1, 1]} : vector<8x256xbf16> to vector<1x256xbf16>
    %c7_124 = arith.constant 7 : index
    %c0_125 = arith.constant 0 : index
    %c0_126 = arith.constant 0 : index
    %198 = vector.load %arg4[%c7_124, %c0_125, %c0_126] : memref<8x256x128xbf16, #tpu.memory_space<vmem>>, vector<1x256x128xbf16>
    %199 = vector.shape_cast %198 : vector<1x256x128xbf16> to vector<256x128xbf16>
    %cst_127 = arith.constant dense<0.000000e+00> : vector<1x128xf32>
    %200 = tpu.matmul %197, %199, %cst_127 {dimension_numbers = #tpu.dot_dimension_numbers<[1], [0], [0], [1], [0, 0, 1, 1], [], []>} : vector<1x256xbf16>, vector<256x128xbf16>, vector<1x128xf32> -> vector<1x128xf32>
    %201 = arith.addf %172, %176 : vector<1x128xf32>
    %202 = arith.addf %180, %184 : vector<1x128xf32>
    %203 = arith.addf %188, %192 : vector<1x128xf32>
    %204 = arith.addf %196, %200 : vector<1x128xf32>
    %205 = arith.addf %201, %202 : vector<1x128xf32>
    %206 = arith.addf %203, %204 : vector<1x128xf32>
    %207 = arith.addf %205, %206 : vector<1x128xf32>
    %208 = arith.addf %207, %2 : vector<1x128xf32>
    %cst_128 = arith.constant 0.899999976 : f32
    %209 = vector.broadcast %cst_128 : f32 to vector<1x128xf32>
    %210 = arith.mulf %148, %209 : vector<1x128xf32>
    %211 = arith.addf %210, %208 : vector<1x128xf32>
    %cst_129 = arith.constant 0.000000e+00 : f32
    %212 = vector.broadcast %cst_129 : f32 to vector<1x128xf32>
    %213 = arith.addf %211, %212 : vector<1x128xf32>
    %cst_130 = arith.constant 1.000000e+00 : f32
    %214 = vector.broadcast %cst_130 : f32 to vector<1x128xf32>
    %215 = arith.cmpf oge, %213, %214 : vector<1x128xf32>
    %216 = arith.extui %215 : vector<1x128xi1> to vector<1x128xi32>
    %217 = arith.sitofp %216 : vector<1x128xi32> to vector<1x128xf32>
    %cst_131 = arith.constant 1.000000e+00 : f32
    %218 = vector.broadcast %cst_131 : f32 to vector<1x128xf32>
    %219 = arith.mulf %217, %218 : vector<1x128xf32>
    %220 = arith.subf %213, %219 : vector<1x128xf32>
    %221 = arith.addf %149, %217 : vector<1x128xf32>
    %c3_i32 = arith.constant 3 : i32
    %c0_132 = arith.constant 0 : index
    %222 = arith.index_cast %c3_i32 : i32 to index
    %c0_133 = arith.constant 0 : index
    %c0_134 = arith.constant 0 : index
    %223 = vector.load %arg1[%c0_132, %222, %c0_133, %c0_134] : memref<1x8x48x256xbf16, #tpu.memory_space<vmem>>, vector<1x1x48x256xbf16>
    %224 = vector.shape_cast %223 : vector<1x1x48x256xbf16> to vector<48x256xbf16>
    %cst_135 = arith.constant dense<0.000000e+00> : vector<8x256xf32>
    %225 = tpu.matmul %0, %224, %cst_135 {dimension_numbers = #tpu.dot_dimension_numbers<[1], [0], [0], [1], [0, 0, 1, 1], [], []>} : vector<8x48xbf16>, vector<48x256xbf16>, vector<8x256xf32> -> vector<8x256xf32>
    %226 = vector.broadcast %1 : vector<8x1xf32> to vector<8x256xf32>
    %227 = arith.addf %225, %226 : vector<8x256xf32>
    %cst_136 = arith.constant 0.899999976 : f32
    %228 = vector.broadcast %cst_136 : f32 to vector<8x256xf32>
    %229 = arith.mulf %167, %228 : vector<8x256xf32>
    %230 = arith.addf %229, %227 : vector<8x256xf32>
    %cst_137 = arith.constant 0.000000e+00 : f32
    %231 = vector.broadcast %cst_137 : f32 to vector<8x256xf32>
    %232 = arith.addf %230, %231 : vector<8x256xf32>
    %cst_138 = arith.constant 1.000000e+00 : f32
    %233 = vector.broadcast %cst_138 : f32 to vector<8x256xf32>
    %234 = arith.cmpf oge, %232, %233 : vector<8x256xf32>
    %235 = arith.extui %234 : vector<8x256xi1> to vector<8x256xi32>
    %236 = arith.sitofp %235 : vector<8x256xi32> to vector<8x256xf32>
    %cst_139 = arith.constant 1.000000e+00 : f32
    %237 = vector.broadcast %cst_139 : f32 to vector<8x256xf32>
    %238 = arith.mulf %236, %237 : vector<8x256xf32>
    %239 = arith.subf %232, %238 : vector<8x256xf32>
    %240 = arith.truncf %236 : vector<8x256xf32> to vector<8x256xbf16>
    %241 = vector.extract_strided_slice %240 {offsets = [0, 0], sizes = [1, 256], strides = [1, 1]} : vector<8x256xbf16> to vector<1x256xbf16>
    %c0_140 = arith.constant 0 : index
    %c0_141 = arith.constant 0 : index
    %c0_142 = arith.constant 0 : index
    %242 = vector.load %arg4[%c0_140, %c0_141, %c0_142] : memref<8x256x128xbf16, #tpu.memory_space<vmem>>, vector<1x256x128xbf16>
    %243 = vector.shape_cast %242 : vector<1x256x128xbf16> to vector<256x128xbf16>
    %cst_143 = arith.constant dense<0.000000e+00> : vector<1x128xf32>
    %244 = tpu.matmul %241, %243, %cst_143 {dimension_numbers = #tpu.dot_dimension_numbers<[1], [0], [0], [1], [0, 0, 1, 1], [], []>} : vector<1x256xbf16>, vector<256x128xbf16>, vector<1x128xf32> -> vector<1x128xf32>
    %245 = vector.extract_strided_slice %240 {offsets = [1, 0], sizes = [1, 256], strides = [1, 1]} : vector<8x256xbf16> to vector<1x256xbf16>
    %c1_144 = arith.constant 1 : index
    %c0_145 = arith.constant 0 : index
    %c0_146 = arith.constant 0 : index
    %246 = vector.load %arg4[%c1_144, %c0_145, %c0_146] : memref<8x256x128xbf16, #tpu.memory_space<vmem>>, vector<1x256x128xbf16>
    %247 = vector.shape_cast %246 : vector<1x256x128xbf16> to vector<256x128xbf16>
    %cst_147 = arith.constant dense<0.000000e+00> : vector<1x128xf32>
    %248 = tpu.matmul %245, %247, %cst_147 {dimension_numbers = #tpu.dot_dimension_numbers<[1], [0], [0], [1], [0, 0, 1, 1], [], []>} : vector<1x256xbf16>, vector<256x128xbf16>, vector<1x128xf32> -> vector<1x128xf32>
    %249 = vector.extract_strided_slice %240 {offsets = [2, 0], sizes = [1, 256], strides = [1, 1]} : vector<8x256xbf16> to vector<1x256xbf16>
    %c2_148 = arith.constant 2 : index
    %c0_149 = arith.constant 0 : index
    %c0_150 = arith.constant 0 : index
    %250 = vector.load %arg4[%c2_148, %c0_149, %c0_150] : memref<8x256x128xbf16, #tpu.memory_space<vmem>>, vector<1x256x128xbf16>
    %251 = vector.shape_cast %250 : vector<1x256x128xbf16> to vector<256x128xbf16>
    %cst_151 = arith.constant dense<0.000000e+00> : vector<1x128xf32>
    %252 = tpu.matmul %249, %251, %cst_151 {dimension_numbers = #tpu.dot_dimension_numbers<[1], [0], [0], [1], [0, 0, 1, 1], [], []>} : vector<1x256xbf16>, vector<256x128xbf16>, vector<1x128xf32> -> vector<1x128xf32>
    %253 = vector.extract_strided_slice %240 {offsets = [3, 0], sizes = [1, 256], strides = [1, 1]} : vector<8x256xbf16> to vector<1x256xbf16>
    %c3_152 = arith.constant 3 : index
    %c0_153 = arith.constant 0 : index
    %c0_154 = arith.constant 0 : index
    %254 = vector.load %arg4[%c3_152, %c0_153, %c0_154] : memref<8x256x128xbf16, #tpu.memory_space<vmem>>, vector<1x256x128xbf16>
    %255 = vector.shape_cast %254 : vector<1x256x128xbf16> to vector<256x128xbf16>
    %cst_155 = arith.constant dense<0.000000e+00> : vector<1x128xf32>
    %256 = tpu.matmul %253, %255, %cst_155 {dimension_numbers = #tpu.dot_dimension_numbers<[1], [0], [0], [1], [0, 0, 1, 1], [], []>} : vector<1x256xbf16>, vector<256x128xbf16>, vector<1x128xf32> -> vector<1x128xf32>
    %257 = vector.extract_strided_slice %240 {offsets = [4, 0], sizes = [1, 256], strides = [1, 1]} : vector<8x256xbf16> to vector<1x256xbf16>
    %c4_156 = arith.constant 4 : index
    %c0_157 = arith.constant 0 : index
    %c0_158 = arith.constant 0 : index
    %258 = vector.load %arg4[%c4_156, %c0_157, %c0_158] : memref<8x256x128xbf16, #tpu.memory_space<vmem>>, vector<1x256x128xbf16>
    %259 = vector.shape_cast %258 : vector<1x256x128xbf16> to vector<256x128xbf16>
    %cst_159 = arith.constant dense<0.000000e+00> : vector<1x128xf32>
    %260 = tpu.matmul %257, %259, %cst_159 {dimension_numbers = #tpu.dot_dimension_numbers<[1], [0], [0], [1], [0, 0, 1, 1], [], []>} : vector<1x256xbf16>, vector<256x128xbf16>, vector<1x128xf32> -> vector<1x128xf32>
    %261 = vector.extract_strided_slice %240 {offsets = [5, 0], sizes = [1, 256], strides = [1, 1]} : vector<8x256xbf16> to vector<1x256xbf16>
    %c5_160 = arith.constant 5 : index
    %c0_161 = arith.constant 0 : index
    %c0_162 = arith.constant 0 : index
    %262 = vector.load %arg4[%c5_160, %c0_161, %c0_162] : memref<8x256x128xbf16, #tpu.memory_space<vmem>>, vector<1x256x128xbf16>
    %263 = vector.shape_cast %262 : vector<1x256x128xbf16> to vector<256x128xbf16>
    %cst_163 = arith.constant dense<0.000000e+00> : vector<1x128xf32>
    %264 = tpu.matmul %261, %263, %cst_163 {dimension_numbers = #tpu.dot_dimension_numbers<[1], [0], [0], [1], [0, 0, 1, 1], [], []>} : vector<1x256xbf16>, vector<256x128xbf16>, vector<1x128xf32> -> vector<1x128xf32>
    %265 = vector.extract_strided_slice %240 {offsets = [6, 0], sizes = [1, 256], strides = [1, 1]} : vector<8x256xbf16> to vector<1x256xbf16>
    %c6_164 = arith.constant 6 : index
    %c0_165 = arith.constant 0 : index
    %c0_166 = arith.constant 0 : index
    %266 = vector.load %arg4[%c6_164, %c0_165, %c0_166] : memref<8x256x128xbf16, #tpu.memory_space<vmem>>, vector<1x256x128xbf16>
    %267 = vector.shape_cast %266 : vector<1x256x128xbf16> to vector<256x128xbf16>
    %cst_167 = arith.constant dense<0.000000e+00> : vector<1x128xf32>
    %268 = tpu.matmul %265, %267, %cst_167 {dimension_numbers = #tpu.dot_dimension_numbers<[1], [0], [0], [1], [0, 0, 1, 1], [], []>} : vector<1x256xbf16>, vector<256x128xbf16>, vector<1x128xf32> -> vector<1x128xf32>
    %269 = vector.extract_strided_slice %240 {offsets = [7, 0], sizes = [1, 256], strides = [1, 1]} : vector<8x256xbf16> to vector<1x256xbf16>
    %c7_168 = arith.constant 7 : index
    %c0_169 = arith.constant 0 : index
    %c0_170 = arith.constant 0 : index
    %270 = vector.load %arg4[%c7_168, %c0_169, %c0_170] : memref<8x256x128xbf16, #tpu.memory_space<vmem>>, vector<1x256x128xbf16>
    %271 = vector.shape_cast %270 : vector<1x256x128xbf16> to vector<256x128xbf16>
    %cst_171 = arith.constant dense<0.000000e+00> : vector<1x128xf32>
    %272 = tpu.matmul %269, %271, %cst_171 {dimension_numbers = #tpu.dot_dimension_numbers<[1], [0], [0], [1], [0, 0, 1, 1], [], []>} : vector<1x256xbf16>, vector<256x128xbf16>, vector<1x128xf32> -> vector<1x128xf32>
    %273 = arith.addf %244, %248 : vector<1x128xf32>
    %274 = arith.addf %252, %256 : vector<1x128xf32>
    %275 = arith.addf %260, %264 : vector<1x128xf32>
    %276 = arith.addf %268, %272 : vector<1x128xf32>
    %277 = arith.addf %273, %274 : vector<1x128xf32>
    %278 = arith.addf %275, %276 : vector<1x128xf32>
    %279 = arith.addf %277, %278 : vector<1x128xf32>
    %280 = arith.addf %279, %2 : vector<1x128xf32>
    %cst_172 = arith.constant 0.899999976 : f32
    %281 = vector.broadcast %cst_172 : f32 to vector<1x128xf32>
    %282 = arith.mulf %220, %281 : vector<1x128xf32>
    %283 = arith.addf %282, %280 : vector<1x128xf32>
    %cst_173 = arith.constant 0.000000e+00 : f32
    %284 = vector.broadcast %cst_173 : f32 to vector<1x128xf32>
    %285 = arith.addf %283, %284 : vector<1x128xf32>
    %cst_174 = arith.constant 1.000000e+00 : f32
    %286 = vector.broadcast %cst_174 : f32 to vector<1x128xf32>
    %287 = arith.cmpf oge, %285, %286 : vector<1x128xf32>
    %288 = arith.extui %287 : vector<1x128xi1> to vector<1x128xi32>
    %289 = arith.sitofp %288 : vector<1x128xi32> to vector<1x128xf32>
    %cst_175 = arith.constant 1.000000e+00 : f32
    %290 = vector.broadcast %cst_175 : f32 to vector<1x128xf32>
    %291 = arith.mulf %289, %290 : vector<1x128xf32>
    %292 = arith.subf %285, %291 : vector<1x128xf32>
    %293 = arith.addf %221, %289 : vector<1x128xf32>
    %c4_i32 = arith.constant 4 : i32
    %c0_176 = arith.constant 0 : index
    %294 = arith.index_cast %c4_i32 : i32 to index
    %c0_177 = arith.constant 0 : index
    %c0_178 = arith.constant 0 : index
    %295 = vector.load %arg1[%c0_176, %294, %c0_177, %c0_178] : memref<1x8x48x256xbf16, #tpu.memory_space<vmem>>, vector<1x1x48x256xbf16>
    %296 = vector.shape_cast %295 : vector<1x1x48x256xbf16> to vector<48x256xbf16>
    %cst_179 = arith.constant dense<0.000000e+00> : vector<8x256xf32>
    %297 = tpu.matmul %0, %296, %cst_179 {dimension_numbers = #tpu.dot_dimension_numbers<[1], [0], [0], [1], [0, 0, 1, 1], [], []>} : vector<8x48xbf16>, vector<48x256xbf16>, vector<8x256xf32> -> vector<8x256xf32>
    %298 = vector.broadcast %1 : vector<8x1xf32> to vector<8x256xf32>
    %299 = arith.addf %297, %298 : vector<8x256xf32>
    %cst_180 = arith.constant 0.899999976 : f32
    %300 = vector.broadcast %cst_180 : f32 to vector<8x256xf32>
    %301 = arith.mulf %239, %300 : vector<8x256xf32>
    %302 = arith.addf %301, %299 : vector<8x256xf32>
    %cst_181 = arith.constant 0.000000e+00 : f32
    %303 = vector.broadcast %cst_181 : f32 to vector<8x256xf32>
    %304 = arith.addf %302, %303 : vector<8x256xf32>
    %cst_182 = arith.constant 1.000000e+00 : f32
    %305 = vector.broadcast %cst_182 : f32 to vector<8x256xf32>
    %306 = arith.cmpf oge, %304, %305 : vector<8x256xf32>
    %307 = arith.extui %306 : vector<8x256xi1> to vector<8x256xi32>
    %308 = arith.sitofp %307 : vector<8x256xi32> to vector<8x256xf32>
    %cst_183 = arith.constant 1.000000e+00 : f32
    %309 = vector.broadcast %cst_183 : f32 to vector<8x256xf32>
    %310 = arith.mulf %308, %309 : vector<8x256xf32>
    %311 = arith.subf %304, %310 : vector<8x256xf32>
    %312 = arith.truncf %308 : vector<8x256xf32> to vector<8x256xbf16>
    %313 = vector.extract_strided_slice %312 {offsets = [0, 0], sizes = [1, 256], strides = [1, 1]} : vector<8x256xbf16> to vector<1x256xbf16>
    %c0_184 = arith.constant 0 : index
    %c0_185 = arith.constant 0 : index
    %c0_186 = arith.constant 0 : index
    %314 = vector.load %arg4[%c0_184, %c0_185, %c0_186] : memref<8x256x128xbf16, #tpu.memory_space<vmem>>, vector<1x256x128xbf16>
    %315 = vector.shape_cast %314 : vector<1x256x128xbf16> to vector<256x128xbf16>
    %cst_187 = arith.constant dense<0.000000e+00> : vector<1x128xf32>
    %316 = tpu.matmul %313, %315, %cst_187 {dimension_numbers = #tpu.dot_dimension_numbers<[1], [0], [0], [1], [0, 0, 1, 1], [], []>} : vector<1x256xbf16>, vector<256x128xbf16>, vector<1x128xf32> -> vector<1x128xf32>
    %317 = vector.extract_strided_slice %312 {offsets = [1, 0], sizes = [1, 256], strides = [1, 1]} : vector<8x256xbf16> to vector<1x256xbf16>
    %c1_188 = arith.constant 1 : index
    %c0_189 = arith.constant 0 : index
    %c0_190 = arith.constant 0 : index
    %318 = vector.load %arg4[%c1_188, %c0_189, %c0_190] : memref<8x256x128xbf16, #tpu.memory_space<vmem>>, vector<1x256x128xbf16>
    %319 = vector.shape_cast %318 : vector<1x256x128xbf16> to vector<256x128xbf16>
    %cst_191 = arith.constant dense<0.000000e+00> : vector<1x128xf32>
    %320 = tpu.matmul %317, %319, %cst_191 {dimension_numbers = #tpu.dot_dimension_numbers<[1], [0], [0], [1], [0, 0, 1, 1], [], []>} : vector<1x256xbf16>, vector<256x128xbf16>, vector<1x128xf32> -> vector<1x128xf32>
    %321 = vector.extract_strided_slice %312 {offsets = [2, 0], sizes = [1, 256], strides = [1, 1]} : vector<8x256xbf16> to vector<1x256xbf16>
    %c2_192 = arith.constant 2 : index
    %c0_193 = arith.constant 0 : index
    %c0_194 = arith.constant 0 : index
    %322 = vector.load %arg4[%c2_192, %c0_193, %c0_194] : memref<8x256x128xbf16, #tpu.memory_space<vmem>>, vector<1x256x128xbf16>
    %323 = vector.shape_cast %322 : vector<1x256x128xbf16> to vector<256x128xbf16>
    %cst_195 = arith.constant dense<0.000000e+00> : vector<1x128xf32>
    %324 = tpu.matmul %321, %323, %cst_195 {dimension_numbers = #tpu.dot_dimension_numbers<[1], [0], [0], [1], [0, 0, 1, 1], [], []>} : vector<1x256xbf16>, vector<256x128xbf16>, vector<1x128xf32> -> vector<1x128xf32>
    %325 = vector.extract_strided_slice %312 {offsets = [3, 0], sizes = [1, 256], strides = [1, 1]} : vector<8x256xbf16> to vector<1x256xbf16>
    %c3_196 = arith.constant 3 : index
    %c0_197 = arith.constant 0 : index
    %c0_198 = arith.constant 0 : index
    %326 = vector.load %arg4[%c3_196, %c0_197, %c0_198] : memref<8x256x128xbf16, #tpu.memory_space<vmem>>, vector<1x256x128xbf16>
    %327 = vector.shape_cast %326 : vector<1x256x128xbf16> to vector<256x128xbf16>
    %cst_199 = arith.constant dense<0.000000e+00> : vector<1x128xf32>
    %328 = tpu.matmul %325, %327, %cst_199 {dimension_numbers = #tpu.dot_dimension_numbers<[1], [0], [0], [1], [0, 0, 1, 1], [], []>} : vector<1x256xbf16>, vector<256x128xbf16>, vector<1x128xf32> -> vector<1x128xf32>
    %329 = vector.extract_strided_slice %312 {offsets = [4, 0], sizes = [1, 256], strides = [1, 1]} : vector<8x256xbf16> to vector<1x256xbf16>
    %c4_200 = arith.constant 4 : index
    %c0_201 = arith.constant 0 : index
    %c0_202 = arith.constant 0 : index
    %330 = vector.load %arg4[%c4_200, %c0_201, %c0_202] : memref<8x256x128xbf16, #tpu.memory_space<vmem>>, vector<1x256x128xbf16>
    %331 = vector.shape_cast %330 : vector<1x256x128xbf16> to vector<256x128xbf16>
    %cst_203 = arith.constant dense<0.000000e+00> : vector<1x128xf32>
    %332 = tpu.matmul %329, %331, %cst_203 {dimension_numbers = #tpu.dot_dimension_numbers<[1], [0], [0], [1], [0, 0, 1, 1], [], []>} : vector<1x256xbf16>, vector<256x128xbf16>, vector<1x128xf32> -> vector<1x128xf32>
    %333 = vector.extract_strided_slice %312 {offsets = [5, 0], sizes = [1, 256], strides = [1, 1]} : vector<8x256xbf16> to vector<1x256xbf16>
    %c5_204 = arith.constant 5 : index
    %c0_205 = arith.constant 0 : index
    %c0_206 = arith.constant 0 : index
    %334 = vector.load %arg4[%c5_204, %c0_205, %c0_206] : memref<8x256x128xbf16, #tpu.memory_space<vmem>>, vector<1x256x128xbf16>
    %335 = vector.shape_cast %334 : vector<1x256x128xbf16> to vector<256x128xbf16>
    %cst_207 = arith.constant dense<0.000000e+00> : vector<1x128xf32>
    %336 = tpu.matmul %333, %335, %cst_207 {dimension_numbers = #tpu.dot_dimension_numbers<[1], [0], [0], [1], [0, 0, 1, 1], [], []>} : vector<1x256xbf16>, vector<256x128xbf16>, vector<1x128xf32> -> vector<1x128xf32>
    %337 = vector.extract_strided_slice %312 {offsets = [6, 0], sizes = [1, 256], strides = [1, 1]} : vector<8x256xbf16> to vector<1x256xbf16>
    %c6_208 = arith.constant 6 : index
    %c0_209 = arith.constant 0 : index
    %c0_210 = arith.constant 0 : index
    %338 = vector.load %arg4[%c6_208, %c0_209, %c0_210] : memref<8x256x128xbf16, #tpu.memory_space<vmem>>, vector<1x256x128xbf16>
    %339 = vector.shape_cast %338 : vector<1x256x128xbf16> to vector<256x128xbf16>
    %cst_211 = arith.constant dense<0.000000e+00> : vector<1x128xf32>
    %340 = tpu.matmul %337, %339, %cst_211 {dimension_numbers = #tpu.dot_dimension_numbers<[1], [0], [0], [1], [0, 0, 1, 1], [], []>} : vector<1x256xbf16>, vector<256x128xbf16>, vector<1x128xf32> -> vector<1x128xf32>
    %341 = vector.extract_strided_slice %312 {offsets = [7, 0], sizes = [1, 256], strides = [1, 1]} : vector<8x256xbf16> to vector<1x256xbf16>
    %c7_212 = arith.constant 7 : index
    %c0_213 = arith.constant 0 : index
    %c0_214 = arith.constant 0 : index
    %342 = vector.load %arg4[%c7_212, %c0_213, %c0_214] : memref<8x256x128xbf16, #tpu.memory_space<vmem>>, vector<1x256x128xbf16>
    %343 = vector.shape_cast %342 : vector<1x256x128xbf16> to vector<256x128xbf16>
    %cst_215 = arith.constant dense<0.000000e+00> : vector<1x128xf32>
    %344 = tpu.matmul %341, %343, %cst_215 {dimension_numbers = #tpu.dot_dimension_numbers<[1], [0], [0], [1], [0, 0, 1, 1], [], []>} : vector<1x256xbf16>, vector<256x128xbf16>, vector<1x128xf32> -> vector<1x128xf32>
    %345 = arith.addf %316, %320 : vector<1x128xf32>
    %346 = arith.addf %324, %328 : vector<1x128xf32>
    %347 = arith.addf %332, %336 : vector<1x128xf32>
    %348 = arith.addf %340, %344 : vector<1x128xf32>
    %349 = arith.addf %345, %346 : vector<1x128xf32>
    %350 = arith.addf %347, %348 : vector<1x128xf32>
    %351 = arith.addf %349, %350 : vector<1x128xf32>
    %352 = arith.addf %351, %2 : vector<1x128xf32>
    %cst_216 = arith.constant 0.899999976 : f32
    %353 = vector.broadcast %cst_216 : f32 to vector<1x128xf32>
    %354 = arith.mulf %292, %353 : vector<1x128xf32>
    %355 = arith.addf %354, %352 : vector<1x128xf32>
    %cst_217 = arith.constant 0.000000e+00 : f32
    %356 = vector.broadcast %cst_217 : f32 to vector<1x128xf32>
    %357 = arith.addf %355, %356 : vector<1x128xf32>
    %cst_218 = arith.constant 1.000000e+00 : f32
    %358 = vector.broadcast %cst_218 : f32 to vector<1x128xf32>
    %359 = arith.cmpf oge, %357, %358 : vector<1x128xf32>
    %360 = arith.extui %359 : vector<1x128xi1> to vector<1x128xi32>
    %361 = arith.sitofp %360 : vector<1x128xi32> to vector<1x128xf32>
    %cst_219 = arith.constant 1.000000e+00 : f32
    %362 = vector.broadcast %cst_219 : f32 to vector<1x128xf32>
    %363 = arith.mulf %361, %362 : vector<1x128xf32>
    %364 = arith.subf %357, %363 : vector<1x128xf32>
    %365 = arith.addf %293, %361 : vector<1x128xf32>
    %c5_i32 = arith.constant 5 : i32
    %c0_220 = arith.constant 0 : index
    %366 = arith.index_cast %c5_i32 : i32 to index
    %c0_221 = arith.constant 0 : index
    %c0_222 = arith.constant 0 : index
    %367 = vector.load %arg1[%c0_220, %366, %c0_221, %c0_222] : memref<1x8x48x256xbf16, #tpu.memory_space<vmem>>, vector<1x1x48x256xbf16>
    %368 = vector.shape_cast %367 : vector<1x1x48x256xbf16> to vector<48x256xbf16>
    %cst_223 = arith.constant dense<0.000000e+00> : vector<8x256xf32>
    %369 = tpu.matmul %0, %368, %cst_223 {dimension_numbers = #tpu.dot_dimension_numbers<[1], [0], [0], [1], [0, 0, 1, 1], [], []>} : vector<8x48xbf16>, vector<48x256xbf16>, vector<8x256xf32> -> vector<8x256xf32>
    %370 = vector.broadcast %1 : vector<8x1xf32> to vector<8x256xf32>
    %371 = arith.addf %369, %370 : vector<8x256xf32>
    %cst_224 = arith.constant 0.899999976 : f32
    %372 = vector.broadcast %cst_224 : f32 to vector<8x256xf32>
    %373 = arith.mulf %311, %372 : vector<8x256xf32>
    %374 = arith.addf %373, %371 : vector<8x256xf32>
    %cst_225 = arith.constant 0.000000e+00 : f32
    %375 = vector.broadcast %cst_225 : f32 to vector<8x256xf32>
    %376 = arith.addf %374, %375 : vector<8x256xf32>
    %cst_226 = arith.constant 1.000000e+00 : f32
    %377 = vector.broadcast %cst_226 : f32 to vector<8x256xf32>
    %378 = arith.cmpf oge, %376, %377 : vector<8x256xf32>
    %379 = arith.extui %378 : vector<8x256xi1> to vector<8x256xi32>
    %380 = arith.sitofp %379 : vector<8x256xi32> to vector<8x256xf32>
    %cst_227 = arith.constant 1.000000e+00 : f32
    %381 = vector.broadcast %cst_227 : f32 to vector<8x256xf32>
    %382 = arith.mulf %380, %381 : vector<8x256xf32>
    %383 = arith.subf %376, %382 : vector<8x256xf32>
    %384 = arith.truncf %380 : vector<8x256xf32> to vector<8x256xbf16>
    %385 = vector.extract_strided_slice %384 {offsets = [0, 0], sizes = [1, 256], strides = [1, 1]} : vector<8x256xbf16> to vector<1x256xbf16>
    %c0_228 = arith.constant 0 : index
    %c0_229 = arith.constant 0 : index
    %c0_230 = arith.constant 0 : index
    %386 = vector.load %arg4[%c0_228, %c0_229, %c0_230] : memref<8x256x128xbf16, #tpu.memory_space<vmem>>, vector<1x256x128xbf16>
    %387 = vector.shape_cast %386 : vector<1x256x128xbf16> to vector<256x128xbf16>
    %cst_231 = arith.constant dense<0.000000e+00> : vector<1x128xf32>
    %388 = tpu.matmul %385, %387, %cst_231 {dimension_numbers = #tpu.dot_dimension_numbers<[1], [0], [0], [1], [0, 0, 1, 1], [], []>} : vector<1x256xbf16>, vector<256x128xbf16>, vector<1x128xf32> -> vector<1x128xf32>
    %389 = vector.extract_strided_slice %384 {offsets = [1, 0], sizes = [1, 256], strides = [1, 1]} : vector<8x256xbf16> to vector<1x256xbf16>
    %c1_232 = arith.constant 1 : index
    %c0_233 = arith.constant 0 : index
    %c0_234 = arith.constant 0 : index
    %390 = vector.load %arg4[%c1_232, %c0_233, %c0_234] : memref<8x256x128xbf16, #tpu.memory_space<vmem>>, vector<1x256x128xbf16>
    %391 = vector.shape_cast %390 : vector<1x256x128xbf16> to vector<256x128xbf16>
    %cst_235 = arith.constant dense<0.000000e+00> : vector<1x128xf32>
    %392 = tpu.matmul %389, %391, %cst_235 {dimension_numbers = #tpu.dot_dimension_numbers<[1], [0], [0], [1], [0, 0, 1, 1], [], []>} : vector<1x256xbf16>, vector<256x128xbf16>, vector<1x128xf32> -> vector<1x128xf32>
    %393 = vector.extract_strided_slice %384 {offsets = [2, 0], sizes = [1, 256], strides = [1, 1]} : vector<8x256xbf16> to vector<1x256xbf16>
    %c2_236 = arith.constant 2 : index
    %c0_237 = arith.constant 0 : index
    %c0_238 = arith.constant 0 : index
    %394 = vector.load %arg4[%c2_236, %c0_237, %c0_238] : memref<8x256x128xbf16, #tpu.memory_space<vmem>>, vector<1x256x128xbf16>
    %395 = vector.shape_cast %394 : vector<1x256x128xbf16> to vector<256x128xbf16>
    %cst_239 = arith.constant dense<0.000000e+00> : vector<1x128xf32>
    %396 = tpu.matmul %393, %395, %cst_239 {dimension_numbers = #tpu.dot_dimension_numbers<[1], [0], [0], [1], [0, 0, 1, 1], [], []>} : vector<1x256xbf16>, vector<256x128xbf16>, vector<1x128xf32> -> vector<1x128xf32>
    %397 = vector.extract_strided_slice %384 {offsets = [3, 0], sizes = [1, 256], strides = [1, 1]} : vector<8x256xbf16> to vector<1x256xbf16>
    %c3_240 = arith.constant 3 : index
    %c0_241 = arith.constant 0 : index
    %c0_242 = arith.constant 0 : index
    %398 = vector.load %arg4[%c3_240, %c0_241, %c0_242] : memref<8x256x128xbf16, #tpu.memory_space<vmem>>, vector<1x256x128xbf16>
    %399 = vector.shape_cast %398 : vector<1x256x128xbf16> to vector<256x128xbf16>
    %cst_243 = arith.constant dense<0.000000e+00> : vector<1x128xf32>
    %400 = tpu.matmul %397, %399, %cst_243 {dimension_numbers = #tpu.dot_dimension_numbers<[1], [0], [0], [1], [0, 0, 1, 1], [], []>} : vector<1x256xbf16>, vector<256x128xbf16>, vector<1x128xf32> -> vector<1x128xf32>
    %401 = vector.extract_strided_slice %384 {offsets = [4, 0], sizes = [1, 256], strides = [1, 1]} : vector<8x256xbf16> to vector<1x256xbf16>
    %c4_244 = arith.constant 4 : index
    %c0_245 = arith.constant 0 : index
    %c0_246 = arith.constant 0 : index
    %402 = vector.load %arg4[%c4_244, %c0_245, %c0_246] : memref<8x256x128xbf16, #tpu.memory_space<vmem>>, vector<1x256x128xbf16>
    %403 = vector.shape_cast %402 : vector<1x256x128xbf16> to vector<256x128xbf16>
    %cst_247 = arith.constant dense<0.000000e+00> : vector<1x128xf32>
    %404 = tpu.matmul %401, %403, %cst_247 {dimension_numbers = #tpu.dot_dimension_numbers<[1], [0], [0], [1], [0, 0, 1, 1], [], []>} : vector<1x256xbf16>, vector<256x128xbf16>, vector<1x128xf32> -> vector<1x128xf32>
    %405 = vector.extract_strided_slice %384 {offsets = [5, 0], sizes = [1, 256], strides = [1, 1]} : vector<8x256xbf16> to vector<1x256xbf16>
    %c5_248 = arith.constant 5 : index
    %c0_249 = arith.constant 0 : index
    %c0_250 = arith.constant 0 : index
    %406 = vector.load %arg4[%c5_248, %c0_249, %c0_250] : memref<8x256x128xbf16, #tpu.memory_space<vmem>>, vector<1x256x128xbf16>
    %407 = vector.shape_cast %406 : vector<1x256x128xbf16> to vector<256x128xbf16>
    %cst_251 = arith.constant dense<0.000000e+00> : vector<1x128xf32>
    %408 = tpu.matmul %405, %407, %cst_251 {dimension_numbers = #tpu.dot_dimension_numbers<[1], [0], [0], [1], [0, 0, 1, 1], [], []>} : vector<1x256xbf16>, vector<256x128xbf16>, vector<1x128xf32> -> vector<1x128xf32>
    %409 = vector.extract_strided_slice %384 {offsets = [6, 0], sizes = [1, 256], strides = [1, 1]} : vector<8x256xbf16> to vector<1x256xbf16>
    %c6_252 = arith.constant 6 : index
    %c0_253 = arith.constant 0 : index
    %c0_254 = arith.constant 0 : index
    %410 = vector.load %arg4[%c6_252, %c0_253, %c0_254] : memref<8x256x128xbf16, #tpu.memory_space<vmem>>, vector<1x256x128xbf16>
    %411 = vector.shape_cast %410 : vector<1x256x128xbf16> to vector<256x128xbf16>
    %cst_255 = arith.constant dense<0.000000e+00> : vector<1x128xf32>
    %412 = tpu.matmul %409, %411, %cst_255 {dimension_numbers = #tpu.dot_dimension_numbers<[1], [0], [0], [1], [0, 0, 1, 1], [], []>} : vector<1x256xbf16>, vector<256x128xbf16>, vector<1x128xf32> -> vector<1x128xf32>
    %413 = vector.extract_strided_slice %384 {offsets = [7, 0], sizes = [1, 256], strides = [1, 1]} : vector<8x256xbf16> to vector<1x256xbf16>
    %c7_256 = arith.constant 7 : index
    %c0_257 = arith.constant 0 : index
    %c0_258 = arith.constant 0 : index
    %414 = vector.load %arg4[%c7_256, %c0_257, %c0_258] : memref<8x256x128xbf16, #tpu.memory_space<vmem>>, vector<1x256x128xbf16>
    %415 = vector.shape_cast %414 : vector<1x256x128xbf16> to vector<256x128xbf16>
    %cst_259 = arith.constant dense<0.000000e+00> : vector<1x128xf32>
    %416 = tpu.matmul %413, %415, %cst_259 {dimension_numbers = #tpu.dot_dimension_numbers<[1], [0], [0], [1], [0, 0, 1, 1], [], []>} : vector<1x256xbf16>, vector<256x128xbf16>, vector<1x128xf32> -> vector<1x128xf32>
    %417 = arith.addf %388, %392 : vector<1x128xf32>
    %418 = arith.addf %396, %400 : vector<1x128xf32>
    %419 = arith.addf %404, %408 : vector<1x128xf32>
    %420 = arith.addf %412, %416 : vector<1x128xf32>
    %421 = arith.addf %417, %418 : vector<1x128xf32>
    %422 = arith.addf %419, %420 : vector<1x128xf32>
    %423 = arith.addf %421, %422 : vector<1x128xf32>
    %424 = arith.addf %423, %2 : vector<1x128xf32>
    %cst_260 = arith.constant 0.899999976 : f32
    %425 = vector.broadcast %cst_260 : f32 to vector<1x128xf32>
    %426 = arith.mulf %364, %425 : vector<1x128xf32>
    %427 = arith.addf %426, %424 : vector<1x128xf32>
    %cst_261 = arith.constant 0.000000e+00 : f32
    %428 = vector.broadcast %cst_261 : f32 to vector<1x128xf32>
    %429 = arith.addf %427, %428 : vector<1x128xf32>
    %cst_262 = arith.constant 1.000000e+00 : f32
    %430 = vector.broadcast %cst_262 : f32 to vector<1x128xf32>
    %431 = arith.cmpf oge, %429, %430 : vector<1x128xf32>
    %432 = arith.extui %431 : vector<1x128xi1> to vector<1x128xi32>
    %433 = arith.sitofp %432 : vector<1x128xi32> to vector<1x128xf32>
    %cst_263 = arith.constant 1.000000e+00 : f32
    %434 = vector.broadcast %cst_263 : f32 to vector<1x128xf32>
    %435 = arith.mulf %433, %434 : vector<1x128xf32>
    %436 = arith.subf %429, %435 : vector<1x128xf32>
    %437 = arith.addf %365, %433 : vector<1x128xf32>
    %c6_i32 = arith.constant 6 : i32
    %c0_264 = arith.constant 0 : index
    %438 = arith.index_cast %c6_i32 : i32 to index
    %c0_265 = arith.constant 0 : index
    %c0_266 = arith.constant 0 : index
    %439 = vector.load %arg1[%c0_264, %438, %c0_265, %c0_266] : memref<1x8x48x256xbf16, #tpu.memory_space<vmem>>, vector<1x1x48x256xbf16>
    %440 = vector.shape_cast %439 : vector<1x1x48x256xbf16> to vector<48x256xbf16>
    %cst_267 = arith.constant dense<0.000000e+00> : vector<8x256xf32>
    %441 = tpu.matmul %0, %440, %cst_267 {dimension_numbers = #tpu.dot_dimension_numbers<[1], [0], [0], [1], [0, 0, 1, 1], [], []>} : vector<8x48xbf16>, vector<48x256xbf16>, vector<8x256xf32> -> vector<8x256xf32>
    %442 = vector.broadcast %1 : vector<8x1xf32> to vector<8x256xf32>
    %443 = arith.addf %441, %442 : vector<8x256xf32>
    %cst_268 = arith.constant 0.899999976 : f32
    %444 = vector.broadcast %cst_268 : f32 to vector<8x256xf32>
    %445 = arith.mulf %383, %444 : vector<8x256xf32>
    %446 = arith.addf %445, %443 : vector<8x256xf32>
    %cst_269 = arith.constant 0.000000e+00 : f32
    %447 = vector.broadcast %cst_269 : f32 to vector<8x256xf32>
    %448 = arith.addf %446, %447 : vector<8x256xf32>
    %cst_270 = arith.constant 1.000000e+00 : f32
    %449 = vector.broadcast %cst_270 : f32 to vector<8x256xf32>
    %450 = arith.cmpf oge, %448, %449 : vector<8x256xf32>
    %451 = arith.extui %450 : vector<8x256xi1> to vector<8x256xi32>
    %452 = arith.sitofp %451 : vector<8x256xi32> to vector<8x256xf32>
    %cst_271 = arith.constant 1.000000e+00 : f32
    %453 = vector.broadcast %cst_271 : f32 to vector<8x256xf32>
    %454 = arith.mulf %452, %453 : vector<8x256xf32>
    %455 = arith.subf %448, %454 : vector<8x256xf32>
    %456 = arith.truncf %452 : vector<8x256xf32> to vector<8x256xbf16>
    %457 = vector.extract_strided_slice %456 {offsets = [0, 0], sizes = [1, 256], strides = [1, 1]} : vector<8x256xbf16> to vector<1x256xbf16>
    %c0_272 = arith.constant 0 : index
    %c0_273 = arith.constant 0 : index
    %c0_274 = arith.constant 0 : index
    %458 = vector.load %arg4[%c0_272, %c0_273, %c0_274] : memref<8x256x128xbf16, #tpu.memory_space<vmem>>, vector<1x256x128xbf16>
    %459 = vector.shape_cast %458 : vector<1x256x128xbf16> to vector<256x128xbf16>
    %cst_275 = arith.constant dense<0.000000e+00> : vector<1x128xf32>
    %460 = tpu.matmul %457, %459, %cst_275 {dimension_numbers = #tpu.dot_dimension_numbers<[1], [0], [0], [1], [0, 0, 1, 1], [], []>} : vector<1x256xbf16>, vector<256x128xbf16>, vector<1x128xf32> -> vector<1x128xf32>
    %461 = vector.extract_strided_slice %456 {offsets = [1, 0], sizes = [1, 256], strides = [1, 1]} : vector<8x256xbf16> to vector<1x256xbf16>
    %c1_276 = arith.constant 1 : index
    %c0_277 = arith.constant 0 : index
    %c0_278 = arith.constant 0 : index
    %462 = vector.load %arg4[%c1_276, %c0_277, %c0_278] : memref<8x256x128xbf16, #tpu.memory_space<vmem>>, vector<1x256x128xbf16>
    %463 = vector.shape_cast %462 : vector<1x256x128xbf16> to vector<256x128xbf16>
    %cst_279 = arith.constant dense<0.000000e+00> : vector<1x128xf32>
    %464 = tpu.matmul %461, %463, %cst_279 {dimension_numbers = #tpu.dot_dimension_numbers<[1], [0], [0], [1], [0, 0, 1, 1], [], []>} : vector<1x256xbf16>, vector<256x128xbf16>, vector<1x128xf32> -> vector<1x128xf32>
    %465 = vector.extract_strided_slice %456 {offsets = [2, 0], sizes = [1, 256], strides = [1, 1]} : vector<8x256xbf16> to vector<1x256xbf16>
    %c2_280 = arith.constant 2 : index
    %c0_281 = arith.constant 0 : index
    %c0_282 = arith.constant 0 : index
    %466 = vector.load %arg4[%c2_280, %c0_281, %c0_282] : memref<8x256x128xbf16, #tpu.memory_space<vmem>>, vector<1x256x128xbf16>
    %467 = vector.shape_cast %466 : vector<1x256x128xbf16> to vector<256x128xbf16>
    %cst_283 = arith.constant dense<0.000000e+00> : vector<1x128xf32>
    %468 = tpu.matmul %465, %467, %cst_283 {dimension_numbers = #tpu.dot_dimension_numbers<[1], [0], [0], [1], [0, 0, 1, 1], [], []>} : vector<1x256xbf16>, vector<256x128xbf16>, vector<1x128xf32> -> vector<1x128xf32>
    %469 = vector.extract_strided_slice %456 {offsets = [3, 0], sizes = [1, 256], strides = [1, 1]} : vector<8x256xbf16> to vector<1x256xbf16>
    %c3_284 = arith.constant 3 : index
    %c0_285 = arith.constant 0 : index
    %c0_286 = arith.constant 0 : index
    %470 = vector.load %arg4[%c3_284, %c0_285, %c0_286] : memref<8x256x128xbf16, #tpu.memory_space<vmem>>, vector<1x256x128xbf16>
    %471 = vector.shape_cast %470 : vector<1x256x128xbf16> to vector<256x128xbf16>
    %cst_287 = arith.constant dense<0.000000e+00> : vector<1x128xf32>
    %472 = tpu.matmul %469, %471, %cst_287 {dimension_numbers = #tpu.dot_dimension_numbers<[1], [0], [0], [1], [0, 0, 1, 1], [], []>} : vector<1x256xbf16>, vector<256x128xbf16>, vector<1x128xf32> -> vector<1x128xf32>
    %473 = vector.extract_strided_slice %456 {offsets = [4, 0], sizes = [1, 256], strides = [1, 1]} : vector<8x256xbf16> to vector<1x256xbf16>
    %c4_288 = arith.constant 4 : index
    %c0_289 = arith.constant 0 : index
    %c0_290 = arith.constant 0 : index
    %474 = vector.load %arg4[%c4_288, %c0_289, %c0_290] : memref<8x256x128xbf16, #tpu.memory_space<vmem>>, vector<1x256x128xbf16>
    %475 = vector.shape_cast %474 : vector<1x256x128xbf16> to vector<256x128xbf16>
    %cst_291 = arith.constant dense<0.000000e+00> : vector<1x128xf32>
    %476 = tpu.matmul %473, %475, %cst_291 {dimension_numbers = #tpu.dot_dimension_numbers<[1], [0], [0], [1], [0, 0, 1, 1], [], []>} : vector<1x256xbf16>, vector<256x128xbf16>, vector<1x128xf32> -> vector<1x128xf32>
    %477 = vector.extract_strided_slice %456 {offsets = [5, 0], sizes = [1, 256], strides = [1, 1]} : vector<8x256xbf16> to vector<1x256xbf16>
    %c5_292 = arith.constant 5 : index
    %c0_293 = arith.constant 0 : index
    %c0_294 = arith.constant 0 : index
    %478 = vector.load %arg4[%c5_292, %c0_293, %c0_294] : memref<8x256x128xbf16, #tpu.memory_space<vmem>>, vector<1x256x128xbf16>
    %479 = vector.shape_cast %478 : vector<1x256x128xbf16> to vector<256x128xbf16>
    %cst_295 = arith.constant dense<0.000000e+00> : vector<1x128xf32>
    %480 = tpu.matmul %477, %479, %cst_295 {dimension_numbers = #tpu.dot_dimension_numbers<[1], [0], [0], [1], [0, 0, 1, 1], [], []>} : vector<1x256xbf16>, vector<256x128xbf16>, vector<1x128xf32> -> vector<1x128xf32>
    %481 = vector.extract_strided_slice %456 {offsets = [6, 0], sizes = [1, 256], strides = [1, 1]} : vector<8x256xbf16> to vector<1x256xbf16>
    %c6_296 = arith.constant 6 : index
    %c0_297 = arith.constant 0 : index
    %c0_298 = arith.constant 0 : index
    %482 = vector.load %arg4[%c6_296, %c0_297, %c0_298] : memref<8x256x128xbf16, #tpu.memory_space<vmem>>, vector<1x256x128xbf16>
    %483 = vector.shape_cast %482 : vector<1x256x128xbf16> to vector<256x128xbf16>
    %cst_299 = arith.constant dense<0.000000e+00> : vector<1x128xf32>
    %484 = tpu.matmul %481, %483, %cst_299 {dimension_numbers = #tpu.dot_dimension_numbers<[1], [0], [0], [1], [0, 0, 1, 1], [], []>} : vector<1x256xbf16>, vector<256x128xbf16>, vector<1x128xf32> -> vector<1x128xf32>
    %485 = vector.extract_strided_slice %456 {offsets = [7, 0], sizes = [1, 256], strides = [1, 1]} : vector<8x256xbf16> to vector<1x256xbf16>
    %c7_300 = arith.constant 7 : index
    %c0_301 = arith.constant 0 : index
    %c0_302 = arith.constant 0 : index
    %486 = vector.load %arg4[%c7_300, %c0_301, %c0_302] : memref<8x256x128xbf16, #tpu.memory_space<vmem>>, vector<1x256x128xbf16>
    %487 = vector.shape_cast %486 : vector<1x256x128xbf16> to vector<256x128xbf16>
    %cst_303 = arith.constant dense<0.000000e+00> : vector<1x128xf32>
    %488 = tpu.matmul %485, %487, %cst_303 {dimension_numbers = #tpu.dot_dimension_numbers<[1], [0], [0], [1], [0, 0, 1, 1], [], []>} : vector<1x256xbf16>, vector<256x128xbf16>, vector<1x128xf32> -> vector<1x128xf32>
    %489 = arith.addf %460, %464 : vector<1x128xf32>
    %490 = arith.addf %468, %472 : vector<1x128xf32>
    %491 = arith.addf %476, %480 : vector<1x128xf32>
    %492 = arith.addf %484, %488 : vector<1x128xf32>
    %493 = arith.addf %489, %490 : vector<1x128xf32>
    %494 = arith.addf %491, %492 : vector<1x128xf32>
    %495 = arith.addf %493, %494 : vector<1x128xf32>
    %496 = arith.addf %495, %2 : vector<1x128xf32>
    %cst_304 = arith.constant 0.899999976 : f32
    %497 = vector.broadcast %cst_304 : f32 to vector<1x128xf32>
    %498 = arith.mulf %436, %497 : vector<1x128xf32>
    %499 = arith.addf %498, %496 : vector<1x128xf32>
    %cst_305 = arith.constant 0.000000e+00 : f32
    %500 = vector.broadcast %cst_305 : f32 to vector<1x128xf32>
    %501 = arith.addf %499, %500 : vector<1x128xf32>
    %cst_306 = arith.constant 1.000000e+00 : f32
    %502 = vector.broadcast %cst_306 : f32 to vector<1x128xf32>
    %503 = arith.cmpf oge, %501, %502 : vector<1x128xf32>
    %504 = arith.extui %503 : vector<1x128xi1> to vector<1x128xi32>
    %505 = arith.sitofp %504 : vector<1x128xi32> to vector<1x128xf32>
    %cst_307 = arith.constant 1.000000e+00 : f32
    %506 = vector.broadcast %cst_307 : f32 to vector<1x128xf32>
    %507 = arith.mulf %505, %506 : vector<1x128xf32>
    %508 = arith.subf %501, %507 : vector<1x128xf32>
    %509 = arith.addf %437, %505 : vector<1x128xf32>
    %c7_i32 = arith.constant 7 : i32
    %c0_308 = arith.constant 0 : index
    %510 = arith.index_cast %c7_i32 : i32 to index
    %c0_309 = arith.constant 0 : index
    %c0_310 = arith.constant 0 : index
    %511 = vector.load %arg1[%c0_308, %510, %c0_309, %c0_310] : memref<1x8x48x256xbf16, #tpu.memory_space<vmem>>, vector<1x1x48x256xbf16>
    %512 = vector.shape_cast %511 : vector<1x1x48x256xbf16> to vector<48x256xbf16>
    %cst_311 = arith.constant dense<0.000000e+00> : vector<8x256xf32>
    %513 = tpu.matmul %0, %512, %cst_311 {dimension_numbers = #tpu.dot_dimension_numbers<[1], [0], [0], [1], [0, 0, 1, 1], [], []>} : vector<8x48xbf16>, vector<48x256xbf16>, vector<8x256xf32> -> vector<8x256xf32>
    %514 = vector.broadcast %1 : vector<8x1xf32> to vector<8x256xf32>
    %515 = arith.addf %513, %514 : vector<8x256xf32>
    %cst_312 = arith.constant 0.899999976 : f32
    %516 = vector.broadcast %cst_312 : f32 to vector<8x256xf32>
    %517 = arith.mulf %455, %516 : vector<8x256xf32>
    %518 = arith.addf %517, %515 : vector<8x256xf32>
    %cst_313 = arith.constant 0.000000e+00 : f32
    %519 = vector.broadcast %cst_313 : f32 to vector<8x256xf32>
    %520 = arith.addf %518, %519 : vector<8x256xf32>
    %cst_314 = arith.constant 1.000000e+00 : f32
    %521 = vector.broadcast %cst_314 : f32 to vector<8x256xf32>
    %522 = arith.cmpf oge, %520, %521 : vector<8x256xf32>
    %523 = arith.extui %522 : vector<8x256xi1> to vector<8x256xi32>
    %524 = arith.sitofp %523 : vector<8x256xi32> to vector<8x256xf32>
    %cst_315 = arith.constant 1.000000e+00 : f32
    %525 = vector.broadcast %cst_315 : f32 to vector<8x256xf32>
    %526 = arith.mulf %524, %525 : vector<8x256xf32>
    %527 = arith.subf %520, %526 : vector<8x256xf32>
    %528 = arith.truncf %524 : vector<8x256xf32> to vector<8x256xbf16>
    %529 = vector.extract_strided_slice %528 {offsets = [0, 0], sizes = [1, 256], strides = [1, 1]} : vector<8x256xbf16> to vector<1x256xbf16>
    %c0_316 = arith.constant 0 : index
    %c0_317 = arith.constant 0 : index
    %c0_318 = arith.constant 0 : index
    %530 = vector.load %arg4[%c0_316, %c0_317, %c0_318] : memref<8x256x128xbf16, #tpu.memory_space<vmem>>, vector<1x256x128xbf16>
    %531 = vector.shape_cast %530 : vector<1x256x128xbf16> to vector<256x128xbf16>
    %cst_319 = arith.constant dense<0.000000e+00> : vector<1x128xf32>
    %532 = tpu.matmul %529, %531, %cst_319 {dimension_numbers = #tpu.dot_dimension_numbers<[1], [0], [0], [1], [0, 0, 1, 1], [], []>} : vector<1x256xbf16>, vector<256x128xbf16>, vector<1x128xf32> -> vector<1x128xf32>
    %533 = vector.extract_strided_slice %528 {offsets = [1, 0], sizes = [1, 256], strides = [1, 1]} : vector<8x256xbf16> to vector<1x256xbf16>
    %c1_320 = arith.constant 1 : index
    %c0_321 = arith.constant 0 : index
    %c0_322 = arith.constant 0 : index
    %534 = vector.load %arg4[%c1_320, %c0_321, %c0_322] : memref<8x256x128xbf16, #tpu.memory_space<vmem>>, vector<1x256x128xbf16>
    %535 = vector.shape_cast %534 : vector<1x256x128xbf16> to vector<256x128xbf16>
    %cst_323 = arith.constant dense<0.000000e+00> : vector<1x128xf32>
    %536 = tpu.matmul %533, %535, %cst_323 {dimension_numbers = #tpu.dot_dimension_numbers<[1], [0], [0], [1], [0, 0, 1, 1], [], []>} : vector<1x256xbf16>, vector<256x128xbf16>, vector<1x128xf32> -> vector<1x128xf32>
    %537 = vector.extract_strided_slice %528 {offsets = [2, 0], sizes = [1, 256], strides = [1, 1]} : vector<8x256xbf16> to vector<1x256xbf16>
    %c2_324 = arith.constant 2 : index
    %c0_325 = arith.constant 0 : index
    %c0_326 = arith.constant 0 : index
    %538 = vector.load %arg4[%c2_324, %c0_325, %c0_326] : memref<8x256x128xbf16, #tpu.memory_space<vmem>>, vector<1x256x128xbf16>
    %539 = vector.shape_cast %538 : vector<1x256x128xbf16> to vector<256x128xbf16>
    %cst_327 = arith.constant dense<0.000000e+00> : vector<1x128xf32>
    %540 = tpu.matmul %537, %539, %cst_327 {dimension_numbers = #tpu.dot_dimension_numbers<[1], [0], [0], [1], [0, 0, 1, 1], [], []>} : vector<1x256xbf16>, vector<256x128xbf16>, vector<1x128xf32> -> vector<1x128xf32>
    %541 = vector.extract_strided_slice %528 {offsets = [3, 0], sizes = [1, 256], strides = [1, 1]} : vector<8x256xbf16> to vector<1x256xbf16>
    %c3_328 = arith.constant 3 : index
    %c0_329 = arith.constant 0 : index
    %c0_330 = arith.constant 0 : index
    %542 = vector.load %arg4[%c3_328, %c0_329, %c0_330] : memref<8x256x128xbf16, #tpu.memory_space<vmem>>, vector<1x256x128xbf16>
    %543 = vector.shape_cast %542 : vector<1x256x128xbf16> to vector<256x128xbf16>
    %cst_331 = arith.constant dense<0.000000e+00> : vector<1x128xf32>
    %544 = tpu.matmul %541, %543, %cst_331 {dimension_numbers = #tpu.dot_dimension_numbers<[1], [0], [0], [1], [0, 0, 1, 1], [], []>} : vector<1x256xbf16>, vector<256x128xbf16>, vector<1x128xf32> -> vector<1x128xf32>
    %545 = vector.extract_strided_slice %528 {offsets = [4, 0], sizes = [1, 256], strides = [1, 1]} : vector<8x256xbf16> to vector<1x256xbf16>
    %c4_332 = arith.constant 4 : index
    %c0_333 = arith.constant 0 : index
    %c0_334 = arith.constant 0 : index
    %546 = vector.load %arg4[%c4_332, %c0_333, %c0_334] : memref<8x256x128xbf16, #tpu.memory_space<vmem>>, vector<1x256x128xbf16>
    %547 = vector.shape_cast %546 : vector<1x256x128xbf16> to vector<256x128xbf16>
    %cst_335 = arith.constant dense<0.000000e+00> : vector<1x128xf32>
    %548 = tpu.matmul %545, %547, %cst_335 {dimension_numbers = #tpu.dot_dimension_numbers<[1], [0], [0], [1], [0, 0, 1, 1], [], []>} : vector<1x256xbf16>, vector<256x128xbf16>, vector<1x128xf32> -> vector<1x128xf32>
    %549 = vector.extract_strided_slice %528 {offsets = [5, 0], sizes = [1, 256], strides = [1, 1]} : vector<8x256xbf16> to vector<1x256xbf16>
    %c5_336 = arith.constant 5 : index
    %c0_337 = arith.constant 0 : index
    %c0_338 = arith.constant 0 : index
    %550 = vector.load %arg4[%c5_336, %c0_337, %c0_338] : memref<8x256x128xbf16, #tpu.memory_space<vmem>>, vector<1x256x128xbf16>
    %551 = vector.shape_cast %550 : vector<1x256x128xbf16> to vector<256x128xbf16>
    %cst_339 = arith.constant dense<0.000000e+00> : vector<1x128xf32>
    %552 = tpu.matmul %549, %551, %cst_339 {dimension_numbers = #tpu.dot_dimension_numbers<[1], [0], [0], [1], [0, 0, 1, 1], [], []>} : vector<1x256xbf16>, vector<256x128xbf16>, vector<1x128xf32> -> vector<1x128xf32>
    %553 = vector.extract_strided_slice %528 {offsets = [6, 0], sizes = [1, 256], strides = [1, 1]} : vector<8x256xbf16> to vector<1x256xbf16>
    %c6_340 = arith.constant 6 : index
    %c0_341 = arith.constant 0 : index
    %c0_342 = arith.constant 0 : index
    %554 = vector.load %arg4[%c6_340, %c0_341, %c0_342] : memref<8x256x128xbf16, #tpu.memory_space<vmem>>, vector<1x256x128xbf16>
    %555 = vector.shape_cast %554 : vector<1x256x128xbf16> to vector<256x128xbf16>
    %cst_343 = arith.constant dense<0.000000e+00> : vector<1x128xf32>
    %556 = tpu.matmul %553, %555, %cst_343 {dimension_numbers = #tpu.dot_dimension_numbers<[1], [0], [0], [1], [0, 0, 1, 1], [], []>} : vector<1x256xbf16>, vector<256x128xbf16>, vector<1x128xf32> -> vector<1x128xf32>
    %557 = vector.extract_strided_slice %528 {offsets = [7, 0], sizes = [1, 256], strides = [1, 1]} : vector<8x256xbf16> to vector<1x256xbf16>
    %c7_344 = arith.constant 7 : index
    %c0_345 = arith.constant 0 : index
    %c0_346 = arith.constant 0 : index
    %558 = vector.load %arg4[%c7_344, %c0_345, %c0_346] : memref<8x256x128xbf16, #tpu.memory_space<vmem>>, vector<1x256x128xbf16>
    %559 = vector.shape_cast %558 : vector<1x256x128xbf16> to vector<256x128xbf16>
    %cst_347 = arith.constant dense<0.000000e+00> : vector<1x128xf32>
    %560 = tpu.matmul %557, %559, %cst_347 {dimension_numbers = #tpu.dot_dimension_numbers<[1], [0], [0], [1], [0, 0, 1, 1], [], []>} : vector<1x256xbf16>, vector<256x128xbf16>, vector<1x128xf32> -> vector<1x128xf32>
    %561 = arith.addf %532, %536 : vector<1x128xf32>
    %562 = arith.addf %540, %544 : vector<1x128xf32>
    %563 = arith.addf %548, %552 : vector<1x128xf32>
    %564 = arith.addf %556, %560 : vector<1x128xf32>
    %565 = arith.addf %561, %562 : vector<1x128xf32>
    %566 = arith.addf %563, %564 : vector<1x128xf32>
    %567 = arith.addf %565, %566 : vector<1x128xf32>
    %568 = arith.addf %567, %2 : vector<1x128xf32>
    %cst_348 = arith.constant 0.899999976 : f32
    %569 = vector.broadcast %cst_348 : f32 to vector<1x128xf32>
    %570 = arith.mulf %508, %569 : vector<1x128xf32>
    %571 = arith.addf %570, %568 : vector<1x128xf32>
    %cst_349 = arith.constant 0.000000e+00 : f32
    %572 = vector.broadcast %cst_349 : f32 to vector<1x128xf32>
    %573 = arith.addf %571, %572 : vector<1x128xf32>
    %cst_350 = arith.constant 1.000000e+00 : f32
    %574 = vector.broadcast %cst_350 : f32 to vector<1x128xf32>
    %575 = arith.cmpf oge, %573, %574 : vector<1x128xf32>
    %576 = arith.extui %575 : vector<1x128xi1> to vector<1x128xi32>
    %577 = arith.sitofp %576 : vector<1x128xi32> to vector<1x128xf32>
    %cst_351 = arith.constant 1.000000e+00 : f32
    %578 = vector.broadcast %cst_351 : f32 to vector<1x128xf32>
    %579 = arith.mulf %577, %578 : vector<1x128xf32>
    %580 = arith.subf %573, %579 : vector<1x128xf32>
    %581 = arith.addf %509, %577 : vector<1x128xf32>
    %c8_i32 = arith.constant 8 : i32
    %cst_352 = arith.constant 1.250000e-01 : f32
    %582 = vector.broadcast %cst_352 : f32 to vector<1x128xf32>
    %583 = arith.mulf %581, %582 : vector<1x128xf32>
    %c0_353 = arith.constant 0 : index
    %c0_354 = arith.constant 0 : index
    %c0_355 = arith.constant 0 : index
    %584 = vector.load %arg6[%c0_353, %c0_354, %c0_355] : memref<1x1x128xf32, #tpu.memory_space<vmem>>, vector<1x1x128xf32>
    %585 = vector.shape_cast %584 : vector<1x1x128xf32> to vector<1x128xf32>
    %586 = vector.shape_cast %583 : vector<1x128xf32> to vector<1x1x128xf32>
    tpu.vector_store %arg6[%c0_353, %c0_354, %c0_355], %586 {strides = array<i32>} : memref<1x1x128xf32, #tpu.memory_space<vmem>>, vector<1x1x128xf32>,
    return
  }
  func.func @transform_0(%arg0: i32) -> (i32, i32, i32, i32) {
    %c0_i32 = arith.constant 0 : i32
    %c0_i32_0 = arith.constant 0 : i32
    %c0_i32_1 = arith.constant 0 : i32
    %c0_i32_2 = arith.constant 0 : i32
    return %arg0, %c0_i32, %c0_i32_0, %c0_i32_1 : i32, i32, i32, i32
  }
  func.func @transform_1(%arg0: i32) -> (i32, i32) {
    %c0_i32 = arith.constant 0 : i32
    %c0_i32_0 = arith.constant 0 : i32
    %c0_i32_1 = arith.constant 0 : i32
    return %c0_i32, %c0_i32_0 : i32, i32
  }
  func.func @transform_2(%arg0: i32) -> (i32, i32) {
    %c0_i32 = arith.constant 0 : i32
    %c0_i32_0 = arith.constant 0 : i32
    %c0_i32_1 = arith.constant 0 : i32
    return %c0_i32, %c0_i32_0 : i32, i32
  }
  func.func @transform_3(%arg0: i32) -> (i32, i32, i32) {
    %c0_i32 = arith.constant 0 : i32
    %c0_i32_0 = arith.constant 0 : i32
    %c0_i32_1 = arith.constant 0 : i32
    %c0_i32_2 = arith.constant 0 : i32
    return %c0_i32, %c0_i32_0, %c0_i32_1 : i32, i32, i32
  }
  func.func @transform_4(%arg0: i32) -> (i32, i32) {
    %c0_i32 = arith.constant 0 : i32
    %c0_i32_0 = arith.constant 0 : i32
    %c0_i32_1 = arith.constant 0 : i32
    return %c0_i32, %c0_i32_0 : i32, i32
  }
  func.func @transform_5(%arg0: i32) -> (i32, i32, i32) {
    %c0_i32 = arith.constant 0 : i32
    %c0_i32_0 = arith.constant 0 : i32
    %c0_i32_1 = arith.constant 0 : i32
    return %arg0, %c0_i32, %c0_i32_0 : i32, i32, i32
  }
}

</mosaic_0001>

<llo_original>
// kernel: isomorphic_snn_forward.1
$region0: #{isomorphic_snn_forward.1}
  #allocation0 [shape = 'u32[]', space=smem, size = 0x4, offset = 0x4, fixed_abs, tag = 'smem constant byte address 0x4 - core index']
  #allocation1 [shape = 'u32[144,128]{1,0:T(1,128)}', space=vmem, size = 0x12000, scoped, tag = 'internal scratch']
  %s0 = inlined_call_operand.vmem [shape: bf16[2,8,48,256], index: 0, kind: input, shape index: {}]
  %s1 = inlined_call_operand.vmem [shape: bf16[8,48], index: 1, kind: input, shape index: {}]
  %s2 = inlined_call_operand.vmem [shape: f32[8,1], index: 2, kind: input, shape index: {}]
  %s3 = inlined_call_operand.vmem [shape: bf16[8,256,128], index: 3, kind: input, shape index: {}]
  %s4 = inlined_call_operand.vmem [shape: f32[1,128], index: 4, kind: input, shape index: {}]
  %s5 = inlined_call_operand.hbm [shape: f32[2,1,128], index: 5, kind: output, shape index: {}]
  %s6 = sld [smem:[#allocation0]]
  $region53: #{isomorphic_snn_forward.1} parent=0
    _
  %s8 = ssub.s32 1, %s6
  %s9 = scalar_select 0, %s8, %s6
  $region1: #{isomorphic_snn_forward.1} parent=0
    #allocation2 [shape = 'u8[1024]{0}', space=vmem, size = 0x400, scoped, tag = 'output window, operand 0']
    #allocation3 [shape = 's32[2]{0}', space=sflag, size = 0x8, scoped, tag = 'scoped memory for isomorphic_snn_forward.1']
    %10 = vsyncpa [#allocation3], 0
    %s11 = scalar_lea.sflag [#allocation3], 1
    %12 = vsyncpa %s11, 0
    loop: start=0, step=1, limit=4
    $region2: #{isomorphic_snn_forward.1} parent=1 // loop_pre_header
      _
    $region3: #{isomorphic_snn_forward.1} parent=1 // loop_header
      %s14 = sphi 0, %s18
      %p15 = scmp.ge.s32.totalorder %s14, 4
      %s24 = sphi 0, %s26
      %s27 = sphi 0, %s24
      %s28 = sphi 0, %s27
      %s44 = sphi 0, %s28
      %s48 = sphi 0, %s48
      %s50 = sphi 0, %s48
      %s51 = sphi 0, %s50
      %s65 = sphi 0, %s51
      %s69 = sphi 0, %s69
      %s71 = sphi 0, %s69
      %s72 = sphi 0, %s71
      %s86 = sphi 0, %s72
      %s90 = sphi 0, %s90
      %s92 = sphi 0, %s90
      %s93 = sphi 0, %s92
      %s107 = sphi 0, %s93
      %s111 = sphi 0, %s111
      %s113 = sphi 0, %s111
      %s114 = sphi 0, %s113
      %s128 = sphi 0, %s114
      %s134 = sphi 0, %s136
      %s137 = sphi 0, %s134
      %s138 = sphi 0, %s137
      %s154 = sphi 0, %s138
    $region4: #{isomorphic_snn_forward.1} parent=1 // loop_header_branch
      %17 = sbr.rel (%p15) target = $region8
    $region5: #{isomorphic_snn_forward.1} parent=1 // loop_body
      %s19 = ssub.s32 %s14, 1
      %s20 = ssub.s32 %s14, 2
      %s21 = sadd.s32 %s14, 1
      %s22 = ssub.s32 %s14, %s21
      %p23 = scmp.eq.s32.totalorder %s22, 0
      %s25 = sadd.s32 %s24, 1
      %s26 = scalar_select %p23, %s24, %s25
      %p29 = pneg %p23
      %p30 = scmp.eq.s32.totalorder %s14, 1
      %p31 = por %p29, %p30
      %p32 = scmp.ne.s32.totalorder %s24, %s27
      %p33 = scmp.eq.s32.totalorder %s14, 0
      %p34 = por %p32, %p33
      %p35 = scmp.ne.s32.totalorder %s24, %s27
      %p36 = scmp.eq.s32.totalorder %s19, 1
      %p37 = por %p35, %p36
      %p38 = scmp.ne.s32.totalorder %s27, %s28
      %p39 = scmp.eq.s32.totalorder %s19, 0
      %p40 = por %p38, %p39
      %p41 = scmp.ne.s32.totalorder %s27, %s28
      %p42 = scmp.eq.s32.totalorder %s20, 1
      %p43 = por %p41, %p42
      %p45 = scmp.ne.s32.totalorder %s28, %s44
      %p46 = scmp.eq.s32.totalorder %s20, 0
      %p47 = por %p45, %p46
      %s49 = sadd.s32 %s48, 1
      %p52 = scmp.eq.s32.totalorder %s14, 1
      %p53 = scmp.ne.s32.totalorder %s48, %s50
      %p54 = scmp.eq.s32.totalorder %s14, 0
      %p55 = por %p53, %p54
      %p56 = scmp.ne.s32.totalorder %s48, %s50
      %p57 = scmp.eq.s32.totalorder %s19, 1
      %p58 = por %p56, %p57
      %p59 = scmp.ne.s32.totalorder %s50, %s51
      %p60 = scmp.eq.s32.totalorder %s19, 0
      %p61 = por %p59, %p60
      %p62 = scmp.ne.s32.totalorder %s50, %s51
      %p63 = scmp.eq.s32.totalorder %s20, 1
      %p64 = por %p62, %p63
      %p66 = scmp.ne.s32.totalorder %s51, %s65
      %p67 = scmp.eq.s32.totalorder %s20, 0
      %p68 = por %p66, %p67
      %s70 = sadd.s32 %s69, 1
      %p73 = scmp.eq.s32.totalorder %s14, 1
      %p74 = scmp.ne.s32.totalorder %s69, %s71
      %p75 = scmp.eq.s32.totalorder %s14, 0
      %p76 = por %p74, %p75
      %p77 = scmp.ne.s32.totalorder %s69, %s71
      %p78 = scmp.eq.s32.totalorder %s19, 1
      %p79 = por %p77, %p78
      %p80 = scmp.ne.s32.totalorder %s71, %s72
      %p81 = scmp.eq.s32.totalorder %s19, 0
      %p82 = por %p80, %p81
      %p83 = scmp.ne.s32.totalorder %s71, %s72
      %p84 = scmp.eq.s32.totalorder %s20, 1
      %p85 = por %p83, %p84
      %p87 = scmp.ne.s32.totalorder %s72, %s86
      %p88 = scmp.eq.s32.totalorder %s20, 0
      %p89 = por %p87, %p88
      %s91 = sadd.s32 %s90, 1
      %p94 = scmp.eq.s32.totalorder %s14, 1
      %p95 = scmp.ne.s32.totalorder %s90, %s92
      %p96 = scmp.eq.s32.totalorder %s14, 0
      %p97 = por %p95, %p96
      %p98 = scmp.ne.s32.totalorder %s90, %s92
      %p99 = scmp.eq.s32.totalorder %s19, 1
      %p100 = por %p98, %p99
      %p101 = scmp.ne.s32.totalorder %s92, %s93
      %p102 = scmp.eq.s32.totalorder %s19, 0
      %p103 = por %p101, %p102
      %p104 = scmp.ne.s32.totalorder %s92, %s93
      %p105 = scmp.eq.s32.totalorder %s20, 1
      %p106 = por %p104, %p105
      %p108 = scmp.ne.s32.totalorder %s93, %s107
      %p109 = scmp.eq.s32.totalorder %s20, 0
      %p110 = por %p108, %p109
      %s112 = sadd.s32 %s111, 1
      %p115 = scmp.eq.s32.totalorder %s14, 1
      %p116 = scmp.ne.s32.totalorder %s111, %s113
      %p117 = scmp.eq.s32.totalorder %s14, 0
      %p118 = por %p116, %p117
      %p119 = scmp.ne.s32.totalorder %s111, %s113
      %p120 = scmp.eq.s32.totalorder %s19, 1
      %p121 = por %p119, %p120
      %p122 = scmp.ne.s32.totalorder %s113, %s114
      %p123 = scmp.eq.s32.totalorder %s19, 0
      %p124 = por %p122, %p123
      %p125 = scmp.ne.s32.totalorder %s113, %s114
      %p126 = scmp.eq.s32.totalorder %s20, 1
      %p127 = por %p125, %p126
      %p129 = scmp.ne.s32.totalorder %s114, %s128
      %p130 = scmp.eq.s32.totalorder %s20, 0
      %p131 = por %p129, %p130
      %s132 = ssub.s32 %s14, %s21
      %p133 = scmp.eq.s32.totalorder %s132, 0
      %s135 = sadd.s32 %s134, 1
      %s136 = scalar_select %p133, %s134, %s135
      %p139 = pneg %p133
      %p140 = scmp.eq.s32.totalorder %s14, 1
      %p141 = por %p139, %p140
      %p142 = scmp.ne.s32.totalorder %s134, %s137
      %p143 = scmp.eq.s32.totalorder %s14, 0
      %p144 = por %p142, %p143
      %p145 = scmp.ne.s32.totalorder %s134, %s137
      %p146 = scmp.eq.s32.totalorder %s19, 1
      %p147 = por %p145, %p146
      %p148 = scmp.ne.s32.totalorder %s137, %s138
      %p149 = scmp.eq.s32.totalorder %s19, 0
      %p150 = por %p148, %p149
      %p151 = scmp.ne.s32.totalorder %s137, %s138
      %p152 = scmp.eq.s32.totalorder %s20, 1
      %p153 = por %p151, %p152
      %p155 = scmp.ne.s32.totalorder %s138, %s154
      %p156 = scmp.eq.s32.totalorder %s20, 0
      %p157 = por %p155, %p156
      %p158 = scmp.le.s32.totalorder 1, %s14
      %p159 = scmp.lt.s32.totalorder %s14, 3
      %p160 = pnand %p158, %p159
      %p161 = pneg %p160
      // Predicated region
      $region9: #{isomorphic_snn_forward.1} parent=5 // pred_check
        _
      $region10: #{isomorphic_snn_forward.1} parent=5 // pred_check_branch
        %163 = sbr.rel (%p160) target = $region12
      $region11: #{isomorphic_snn_forward.1} parent=5 // pred_region
        %s164 = ssub.s32 %s14, 1
        // Predicated region
        $region13: #{isomorphic_snn_forward.1} parent=11 // pred_check
          %p165 = pneg %p61
        $region14: #{isomorphic_snn_forward.1} parent=11 // pred_check_branch
          %167 = sbr.rel (%p165) target = $region16
        $region15: #{isomorphic_snn_forward.1} parent=11 // pred_region
          _
        $region16: #{isomorphic_snn_forward.1} parent=11 // pred_fallthru
          _
        // Predicated region
        $region17: #{isomorphic_snn_forward.1} parent=11 // pred_check
          %p168 = pneg %p82
        $region18: #{isomorphic_snn_forward.1} parent=11 // pred_check_branch
          %170 = sbr.rel (%p168) target = $region20
        $region19: #{isomorphic_snn_forward.1} parent=11 // pred_region
          _
        $region20: #{isomorphic_snn_forward.1} parent=11 // pred_fallthru
          _
        // Predicated region
        $region21: #{isomorphic_snn_forward.1} parent=11 // pred_check
          %p171 = pneg %p103
        $region22: #{isomorphic_snn_forward.1} parent=11 // pred_check_branch
          %173 = sbr.rel (%p171) target = $region24
        $region23: #{isomorphic_snn_forward.1} parent=11 // pred_region
          _
        $region24: #{isomorphic_snn_forward.1} parent=11 // pred_fallthru
          _
        // Predicated region
        $region25: #{isomorphic_snn_forward.1} parent=11 // pred_check
          %p174 = pneg %p124
        $region26: #{isomorphic_snn_forward.1} parent=11 // pred_check_branch
          %176 = sbr.rel (%p174) target = $region28
        $region27: #{isomorphic_snn_forward.1} parent=11 // pred_region
          _
        $region28: #{isomorphic_snn_forward.1} parent=11 // pred_fallthru
          _
      $region12: #{isomorphic_snn_forward.1} parent=5 // pred_fallthru
        _
      %p177 = scmp.lt.s32.totalorder %s14, 2
      // Predicated region
      $region29: #{isomorphic_snn_forward.1} parent=5 // pred_check
        %p178 = pneg %p177
      $region30: #{isomorphic_snn_forward.1} parent=5 // pred_check_branch
        %180 = sbr.rel (%p178) target = $region32
      $region31: #{isomorphic_snn_forward.1} parent=5 // pred_region
        // Predicated region
        $region33: #{isomorphic_snn_forward.1} parent=31 // pred_check
          %p181 = pneg %p34
        $region34: #{isomorphic_snn_forward.1} parent=31 // pred_check_branch
          %183 = sbr.rel (%p181) target = $region36
        $region35: #{isomorphic_snn_forward.1} parent=31 // pred_region
          %p184 = scmp.lt.s32.totalorder %s14, 1
          %s185 = scalar_select %p184, %s14, 1
          %s186 = smul.addr %s185, 96
          %s187 = smul.addr %s186, 4
          %s188 = scalar_lea.vmem %s0, %s187
        $region36: #{isomorphic_snn_forward.1} parent=31 // pred_fallthru
          _
      $region32: #{isomorphic_snn_forward.1} parent=5 // pred_fallthru
        _
      %p189 = scmp.le.s32.totalorder 1, %s14
      %p190 = scmp.lt.s32.totalorder %s14, 3
      %p191 = pnand %p189, %p190
      %p192 = pneg %p191
      // Predicated region
      $region37: #{isomorphic_snn_forward.1} parent=5 // pred_check
        _
      $region38: #{isomorphic_snn_forward.1} parent=5 // pred_check_branch
        %194 = sbr.rel (%p191) target = $region40
      $region39: #{isomorphic_snn_forward.1} parent=5 // pred_region
        %s195 = ssub.s32 %s14, 1
        %p196 = scmp.lt.s32.totalorder %s19, 1
        %s197 = scalar_select %p196, %s19, 1
        %s198 = smul.addr %s197, 96
        %s199 = smul.addr %s198, 4
        %s200 = scalar_lea.vmem %s0, %s199
        %p201 = pneg %p40
        %p202 = pneg %p37
        %p203 = pneg %p61
        %p204 = pneg %p58
        %p205 = pneg %p82
        %p206 = pneg %p79
        %p207 = pneg %p103
        %p208 = pneg %p100
        %p209 = pneg %p124
        %p210 = pneg %p121
        %p211 = pneg %p150
        %p212 = pneg %p147
        %s213 = sand.u32 %s137, 1
        %s214 = scalar_lea.sflag [#allocation3], %s213
        %s215 = sand.u32 %s137, 1
        %s216 = scalar_lea.vmem [#allocation2], %s215
        %p217 = scmp.lt.s32.totalorder %s19, 1
        %s218 = scalar_select %p217, %s19, 1
        %s219 = smul.addr %s218, 96
        %s220 = smul.addr %s219, 4
        %s221 = scalar_lea.vmem %s0, %s220
        %v223 = vld [vmem:[%s1] sm:$0xf]
        %v224 = vld [vmem:[%s2] sm:$0xff]
        %v225 = vld [vmem:[%s4] sm:$0x1]
        %v226 = vld [vmem:[%s221] sm:$0xff]
        %v227 = vld [vmem:[%s221 + $0x8] sm:$0xff]
        %v228 = vld [vmem:[%s221 + $0x10] sm:$0xff]
        %v229 = vld [vmem:[%s221 + $0x18] sm:$0xff]
        %v230 = vld [vmem:[%s221 + $0x20] sm:$0xff]
        %v231 = vld [vmem:[%s221 + $0x28] sm:$0xff]
        %233 = vset.pattern.permute.xlu0 0
        %234 = vperm.xlu0 %233, %v224
        %v235 = vpop.permute.xlu0 %234
        %v243 = vunpack.c.l.b16 %v226
        %v244 = vunpack.c.h.b16 %v226
        %v245 = vunpack.c.l.b16 %v227
        %v246 = vunpack.c.h.b16 %v227
        %v247 = vunpack.c.l.b16 %v228
        %v248 = vunpack.c.h.b16 %v228
        %v249 = vunpack.c.l.b16 %v229
        %v250 = vunpack.c.h.b16 %v229
        %v251 = vunpack.c.l.b16 %v230
        %v252 = vunpack.c.h.b16 %v230
        %v253 = vunpack.c.l.b16 %v231
        %v254 = vunpack.c.h.b16 %v231
        %v255 = vpack.c.b16 %v245, %v243
        %v256 = vpack.c.b16 %v246, %v244
        %v257 = vpack.c.b16 %v249, %v247
        %v258 = vpack.c.b16 %v250, %v248
        %v259 = vpack.c.b16 %v253, %v251
        %v260 = vpack.c.b16 %v254, %v252
        %vm267 = vcmask 392192
        %v269 = vsel %vm267, %v223, 0
        %271 = vmatprep.subr.bf16.mxu0 %v256
        %272 = vmatpush1.bf16.msra.mxu0 %v255
        %273 = vmatprep.subr.bf16.mxu0 %v258
        %274 = vmatpush1.bf16.msra.mxu0 %v257
        %275 = vmatprep.subr.bf16.mxu0 %v260
        %276 = vmatpush1.bf16.msra.mxu0 %v259
        %277 = vmatprep.subr.bf16.mxu0 0
        %278 = vmatpush1.bf16.msra.mxu0 0
        %279 = vmatprep.subr.bf16.mxu0 0
        %280 = vmatpush1.bf16.msra.mxu0 0
        %281 = vmatprep.subr.bf16.mxu0 0
        %282 = vmatpush1.bf16.msra.mxu0 0
        %283 = vmatprep.subr.bf16.mxu0 0
        %284 = vmatpush1.bf16.msra.mxu0 0
        %285 = vmatprep.subr.bf16.mxu0 0
        %286 = vmatpush1.bf16.msra.mxu0 0
        %287 = vmatprep.subr.bf16.mxu0 0
        %288 = vmatpush1.bf16.msra.mxu0 0
        %289 = vmatprep.subr.bf16.mxu0 0
        %290 = vmatpush1.bf16.msra.mxu0 0
        %291 = vmatprep.subr.bf16.mxu0 0
        %292 = vmatpush1.bf16.msra.mxu0 0
        %293 = vmatprep.subr.bf16.mxu0 0
        %294 = vmatpush1.bf16.msra.mxu0 0
        %295 = vmatprep.subr.bf16.mxu0 0
        %296 = vmatpush1.bf16.msra.mxu0 0
        %297 = vmatprep.subr.bf16.mxu0 0
        %298 = vmatpush1.bf16.msra.mxu0 0
        %299 = vmatprep.subr.bf16.mxu0 0
        %300 = vmatpush1.bf16.msra.mxu0 0
        %301 = vmatprep.subr.bf16.mxu0 0
        %302 = vmatpush1.bf16.msra.mxu0 0
        %303 = vmatprep.mubr.bf16.mxu0 0
        %304 = vmatmul.mubr.bf16.gmra.mrb[0].mxu0 %v269
        %v305 = vpop.f32.mrb[0].mxu0
        %v306 = vadd.f32 %v235, %v305
        %v307 = vpop.f32.mrb[0].mxu0
        %v308 = vadd.f32 %v235, %v307
        %v309 = vpop.f32.mrb[0].mxu0
        %v310 = vpop.f32.mrb[0].mxu0
        %311 = vdwg.mxu0
        %v312 = vadd.f32 %v306, 0.0
        %v313 = vadd.f32 %v308, 0.0
        %v314 = vadd.f32 %v312, 0.0
        %v315 = vadd.f32 %v313, 0.0
        %vm316 = vcmp.ge.f32.partialorder %v314, 1.0
        %vm317 = vcmp.ge.f32.partialorder %v315, 1.0
        %v318 = vsel %vm316, 1, 0
        %v319 = vsel %vm317, 1, 0
        %v320 = vcvt.s32.f32 %v318
        %v321 = vcvt.s32.f32 %v319
        %v322 = vsub.f32 %v314, %v320
        %v323 = vsub.f32 %v315, %v321
        %v324 = vpack.c.bf16 %v320, %v320
        %v325 = vpack.c.bf16 %v321, %v321
        %v326 = vld [vmem:[%s3] sm:$0xf]
        %v327 = vld [vmem:[%s3 + $0x4] sm:$0xf]
        %v328 = vld [vmem:[%s3 + $0x8] sm:$0xf]
        %v329 = vld [vmem:[%s3 + $0xc] sm:$0xf]
        %v330 = vld [vmem:[%s3 + $0x10] sm:$0xf]
        %v331 = vld [vmem:[%s3 + $0x14] sm:$0xf]
        %v332 = vld [vmem:[%s3 + $0x18] sm:$0xf]
        %v333 = vld [vmem:[%s3 + $0x1c] sm:$0xf]
        %v334 = vld [vmem:[%s3 + $0x20] sm:$0xf]
        %v335 = vld [vmem:[%s3 + $0x24] sm:$0xf]
        %v336 = vld [vmem:[%s3 + $0x28] sm:$0xf]
        %v337 = vld [vmem:[%s3 + $0x2c] sm:$0xf]
        %v338 = vld [vmem:[%s3 + $0x30] sm:$0xf]
        %v339 = vld [vmem:[%s3 + $0x34] sm:$0xf]
        %v340 = vld [vmem:[%s3 + $0x38] sm:$0xf]
        %v341 = vld [vmem:[%s3 + $0x3c] sm:$0xf]
        %v342 = vld [vmem:[%s3 + $0x40] sm:$0xf]
        %v343 = vld [vmem:[%s3 + $0x44] sm:$0xf]
        %v344 = vld [vmem:[%s3 + $0x48] sm:$0xf]
        %v345 = vld [vmem:[%s3 + $0x4c] sm:$0xf]
        %v346 = vld [vmem:[%s3 + $0x50] sm:$0xf]
        %v347 = vld [vmem:[%s3 + $0x54] sm:$0xf]
        %v348 = vld [vmem:[%s3 + $0x58] sm:$0xf]
        %v349 = vld [vmem:[%s3 + $0x5c] sm:$0xf]
        %v350 = vld [vmem:[%s3 + $0x60] sm:$0xf]
        %v351 = vld [vmem:[%s3 + $0x64] sm:$0xf]
        %v352 = vld [vmem:[%s3 + $0x68] sm:$0xf]
        %v353 = vld [vmem:[%s3 + $0x6c] sm:$0xf]
        %v354 = vld [vmem:[%s3 + $0x70] sm:$0xf]
        %v355 = vld [vmem:[%s3 + $0x74] sm:$0xf]
        %v356 = vld [vmem:[%s3 + $0x78] sm:$0xf]
        %v357 = vld [vmem:[%s3 + $0x7c] sm:$0xf]
        %s358 = scalar_lea.vmem %s3, 128
        %v359 = vld [vmem:[%s358] sm:$0xf]
        %v360 = vld [vmem:[%s358 + $0x4] sm:$0xf]
        %v361 = vld [vmem:[%s358 + $0x8] sm:$0xf]
        %v362 = vld [vmem:[%s358 + $0xc] sm:$0xf]
        %v363 = vld [vmem:[%s358 + $0x10] sm:$0xf]
        %v364 = vld [vmem:[%s358 + $0x14] sm:$0xf]
        %v365 = vld [vmem:[%s358 + $0x18] sm:$0xf]
        %v366 = vld [vmem:[%s358 + $0x1c] sm:$0xf]
        %v367 = vld [vmem:[%s358 + $0x20] sm:$0xf]
        %v368 = vld [vmem:[%s358 + $0x24] sm:$0xf]
        %v369 = vld [vmem:[%s358 + $0x28] sm:$0xf]
        %v370 = vld [vmem:[%s358 + $0x2c] sm:$0xf]
        %v371 = vld [vmem:[%s358 + $0x30] sm:$0xf]
        %v372 = vld [vmem:[%s358 + $0x34] sm:$0xf]
        %v373 = vld [vmem:[%s358 + $0x38] sm:$0xf]
        %v374 = vld [vmem:[%s358 + $0x3c] sm:$0xf]
        %v375 = vld [vmem:[%s358 + $0x40] sm:$0xf]
        %v376 = vld [vmem:[%s358 + $0x44] sm:$0xf]
        %v377 = vld [vmem:[%s358 + $0x48] sm:$0xf]
        %v378 = vld [vmem:[%s358 + $0x4c] sm:$0xf]
        %v379 = vld [vmem:[%s358 + $0x50] sm:$0xf]
        %v380 = vld [vmem:[%s358 + $0x54] sm:$0xf]
        %v381 = vld [vmem:[%s358 + $0x58] sm:$0xf]
        %v382 = vld [vmem:[%s358 + $0x5c] sm:$0xf]
        %v383 = vld [vmem:[%s358 + $0x60] sm:$0xf]
        %v384 = vld [vmem:[%s358 + $0x64] sm:$0xf]
        %v385 = vld [vmem:[%s358 + $0x68] sm:$0xf]
        %v386 = vld [vmem:[%s358 + $0x6c] sm:$0xf]
        %v387 = vld [vmem:[%s358 + $0x70] sm:$0xf]
        %v388 = vld [vmem:[%s358 + $0x74] sm:$0xf]
        %v389 = vld [vmem:[%s358 + $0x78] sm:$0xf]
        %v390 = vld [vmem:[%s358 + $0x7c] sm:$0xf]
        %v392 = vshrl.u32 %v324, 16
        %v395 = vshrl.u32 %v325, 16
        %v431 = vunpack.c.l.b16 %v359
        %v432 = vunpack.c.l.b16 %v360
        %v433 = vunpack.c.l.b16 %v361
        %v434 = vunpack.c.l.b16 %v362
        %v435 = vunpack.c.l.b16 %v363
        %v436 = vunpack.c.l.b16 %v364
        %v437 = vunpack.c.l.b16 %v365
        %v438 = vunpack.c.l.b16 %v366
        %v439 = vunpack.c.l.b16 %v367
        %v440 = vunpack.c.l.b16 %v368
        %v441 = vunpack.c.l.b16 %v369
        %v442 = vunpack.c.l.b16 %v370
        %v443 = vunpack.c.l.b16 %v371
        %v444 = vunpack.c.l.b16 %v372
        %v445 = vunpack.c.l.b16 %v373
        %v446 = vunpack.c.l.b16 %v374
        %v447 = vunpack.c.l.b16 %v375
        %v448 = vunpack.c.l.b16 %v376
        %v449 = vunpack.c.l.b16 %v377
        %v450 = vunpack.c.l.b16 %v378
        %v451 = vunpack.c.l.b16 %v379
        %v452 = vunpack.c.l.b16 %v380
        %v453 = vunpack.c.l.b16 %v381
        %v454 = vunpack.c.l.b16 %v382
        %v455 = vunpack.c.l.b16 %v383
        %v456 = vunpack.c.l.b16 %v384
        %v457 = vunpack.c.l.b16 %v385
        %v458 = vunpack.c.l.b16 %v386
        %v459 = vunpack.c.l.b16 %v387
        %v460 = vunpack.c.l.b16 %v388
        %v461 = vunpack.c.l.b16 %v389
        %v462 = vunpack.c.l.b16 %v390
        %v463 = vpack.c.b16 %v432, %v431
        %v464 = vpack.c.b16 %v434, %v433
        %v465 = vpack.c.b16 %v436, %v435
        %v466 = vpack.c.b16 %v438, %v437
        %v467 = vpack.c.b16 %v440, %v439
        %v468 = vpack.c.b16 %v442, %v441
        %v469 = vpack.c.b16 %v444, %v443
        %v470 = vpack.c.b16 %v446, %v445
        %v471 = vpack.c.b16 %v448, %v447
        %v472 = vpack.c.b16 %v450, %v449
        %v473 = vpack.c.b16 %v452, %v451
        %v474 = vpack.c.b16 %v454, %v453
        %v475 = vpack.c.b16 %v456, %v455
        %v476 = vpack.c.b16 %v458, %v457
        %v477 = vpack.c.b16 %v460, %v459
        %v478 = vpack.c.b16 %v462, %v461
        %495 = vmatprep.subr.bf16.mxu0 0
        %496 = vmatpush1.bf16.msra.mxu0 %v463
        %497 = vmatprep.subr.bf16.mxu0 0
        %498 = vmatpush1.bf16.msra.mxu0 %v464
        %499 = vmatprep.subr.bf16.mxu0 0
        %500 = vmatpush1.bf16.msra.mxu0 %v465
        %501 = vmatprep.subr.bf16.mxu0 0
        %502 = vmatpush1.bf16.msra.mxu0 %v466
        %503 = vmatprep.subr.bf16.mxu0 0
        %504 = vmatpush1.bf16.msra.mxu0 %v467
        %505 = vmatprep.subr.bf16.mxu0 0
        %506 = vmatpush1.bf16.msra.mxu0 %v468
        %507 = vmatprep.subr.bf16.mxu0 0
        %508 = vmatpush1.bf16.msra.mxu0 %v469
        %509 = vmatprep.subr.bf16.mxu0 0
        %510 = vmatpush1.bf16.msra.mxu0 %v470
        %511 = vmatprep.subr.bf16.mxu0 0
        %512 = vmatpush1.bf16.msra.mxu0 %v471
        %513 = vmatprep.subr.bf16.mxu0 0
        %514 = vmatpush1.bf16.msra.mxu0 %v472
        %515 = vmatprep.subr.bf16.mxu0 0
        %516 = vmatpush1.bf16.msra.mxu0 %v473
        %517 = vmatprep.subr.bf16.mxu0 0
        %518 = vmatpush1.bf16.msra.mxu0 %v474
        %519 = vmatprep.subr.bf16.mxu0 0
        %520 = vmatpush1.bf16.msra.mxu0 %v475
        %521 = vmatprep.subr.bf16.mxu0 0
        %522 = vmatpush1.bf16.msra.mxu0 %v476
        %523 = vmatprep.subr.bf16.mxu0 0
        %524 = vmatpush1.bf16.msra.mxu0 %v477
        %525 = vmatprep.subr.bf16.mxu0 0
        %526 = vmatpush1.bf16.msra.mxu0 %v478
        %527 = vmatprep.mubr.bf16.mxu0 %v395
        %528 = vmatmul.mubr.bf16.gmra.mrb[0].mxu0 %v392
        %v529 = vpop.f32.mrb[0].mxu0
        %v530 = vadd.f32 0.0, %v529
        %v531 = vpop.f32.mrb[0].mxu0
        %v532 = vpop.f32.mrb[0].mxu0
        %v533 = vpop.f32.mrb[0].mxu0
        %534 = vdwg.mxu0
        %s535 = scalar_lea.vmem %s3, 256
        %v536 = vld [vmem:[%s535] sm:$0xf]
        %v537 = vld [vmem:[%s535 + $0x4] sm:$0xf]
        %v538 = vld [vmem:[%s535 + $0x8] sm:$0xf]
        %v539 = vld [vmem:[%s535 + $0xc] sm:$0xf]
        %v540 = vld [vmem:[%s535 + $0x10] sm:$0xf]
        %v541 = vld [vmem:[%s535 + $0x14] sm:$0xf]
        %v542 = vld [vmem:[%s535 + $0x18] sm:$0xf]
        %v543 = vld [vmem:[%s535 + $0x1c] sm:$0xf]
        %v544 = vld [vmem:[%s535 + $0x20] sm:$0xf]
        %v545 = vld [vmem:[%s535 + $0x24] sm:$0xf]
        %v546 = vld [vmem:[%s535 + $0x28] sm:$0xf]
        %v547 = vld [vmem:[%s535 + $0x2c] sm:$0xf]
        %v548 = vld [vmem:[%s535 + $0x30] sm:$0xf]
        %v549 = vld [vmem:[%s535 + $0x34] sm:$0xf]
        %v550 = vld [vmem:[%s535 + $0x38] sm:$0xf]
        %v551 = vld [vmem:[%s535 + $0x3c] sm:$0xf]
        %v552 = vld [vmem:[%s535 + $0x40] sm:$0xf]
        %v553 = vld [vmem:[%s535 + $0x44] sm:$0xf]
        %v554 = vld [vmem:[%s535 + $0x48] sm:$0xf]
        %v555 = vld [vmem:[%s535 + $0x4c] sm:$0xf]
        %v556 = vld [vmem:[%s535 + $0x50] sm:$0xf]
        %v557 = vld [vmem:[%s535 + $0x54] sm:$0xf]
        %v558 = vld [vmem:[%s535 + $0x58] sm:$0xf]
        %v559 = vld [vmem:[%s535 + $0x5c] sm:$0xf]
        %v560 = vld [vmem:[%s535 + $0x60] sm:$0xf]
        %v561 = vld [vmem:[%s535 + $0x64] sm:$0xf]
        %v562 = vld [vmem:[%s535 + $0x68] sm:$0xf]
        %v563 = vld [vmem:[%s535 + $0x6c] sm:$0xf]
        %v564 = vld [vmem:[%s535 + $0x70] sm:$0xf]
        %v565 = vld [vmem:[%s535 + $0x74] sm:$0xf]
        %v566 = vld [vmem:[%s535 + $0x78] sm:$0xf]
        %v567 = vld [vmem:[%s535 + $0x7c] sm:$0xf]
        %s568 = scalar_lea.vmem %s3, 384
        %v569 = vld [vmem:[%s568] sm:$0xf]
        %v570 = vld [vmem:[%s568 + $0x4] sm:$0xf]
        %v571 = vld [vmem:[%s568 + $0x8] sm:$0xf]
        %v572 = vld [vmem:[%s568 + $0xc] sm:$0xf]
        %v573 = vld [vmem:[%s568 + $0x10] sm:$0xf]
        %v574 = vld [vmem:[%s568 + $0x14] sm:$0xf]
        %v575 = vld [vmem:[%s568 + $0x18] sm:$0xf]
        %v576 = vld [vmem:[%s568 + $0x1c] sm:$0xf]
        %v577 = vld [vmem:[%s568 + $0x20] sm:$0xf]
        %v578 = vld [vmem:[%s568 + $0x24] sm:$0xf]
        %v579 = vld [vmem:[%s568 + $0x28] sm:$0xf]
        %v580 = vld [vmem:[%s568 + $0x2c] sm:$0xf]
        %v581 = vld [vmem:[%s568 + $0x30] sm:$0xf]
        %v582 = vld [vmem:[%s568 + $0x34] sm:$0xf]
        %v583 = vld [vmem:[%s568 + $0x38] sm:$0xf]
        %v584 = vld [vmem:[%s568 + $0x3c] sm:$0xf]
        %v585 = vld [vmem:[%s568 + $0x40] sm:$0xf]
        %v586 = vld [vmem:[%s568 + $0x44] sm:$0xf]
        %v587 = vld [vmem:[%s568 + $0x48] sm:$0xf]
        %v588 = vld [vmem:[%s568 + $0x4c] sm:$0xf]
        %v589 = vld [vmem:[%s568 + $0x50] sm:$0xf]
        %v590 = vld [vmem:[%s568 + $0x54] sm:$0xf]
        %v591 = vld [vmem:[%s568 + $0x58] sm:$0xf]
        %v592 = vld [vmem:[%s568 + $0x5c] sm:$0xf]
        %v593 = vld [vmem:[%s568 + $0x60] sm:$0xf]
        %v594 = vld [vmem:[%s568 + $0x64] sm:$0xf]
        %v595 = vld [vmem:[%s568 + $0x68] sm:$0xf]
        %v596 = vld [vmem:[%s568 + $0x6c] sm:$0xf]
        %v597 = vld [vmem:[%s568 + $0x70] sm:$0xf]
        %v598 = vld [vmem:[%s568 + $0x74] sm:$0xf]
        %v599 = vld [vmem:[%s568 + $0x78] sm:$0xf]
        %v600 = vld [vmem:[%s568 + $0x7c] sm:$0xf]
        %v601 = vrot.slane %v392, 1
        %v602 = vrot.slane %v395, 1
        %v637 = vunpack.c.l.b16 %v569
        %v638 = vunpack.c.l.b16 %v570
        %v639 = vunpack.c.l.b16 %v571
        %v640 = vunpack.c.l.b16 %v572
        %v641 = vunpack.c.l.b16 %v573
        %v642 = vunpack.c.l.b16 %v574
        %v643 = vunpack.c.l.b16 %v575
        %v644 = vunpack.c.l.b16 %v576
        %v645 = vunpack.c.l.b16 %v577
        %v646 = vunpack.c.l.b16 %v578
        %v647 = vunpack.c.l.b16 %v579
        %v648 = vunpack.c.l.b16 %v580
        %v649 = vunpack.c.l.b16 %v581
        %v650 = vunpack.c.l.b16 %v582
        %v651 = vunpack.c.l.b16 %v583
        %v652 = vunpack.c.l.b16 %v584
        %v653 = vunpack.c.l.b16 %v585
        %v654 = vunpack.c.l.b16 %v586
        %v655 = vunpack.c.l.b16 %v587
        %v656 = vunpack.c.l.b16 %v588
        %v657 = vunpack.c.l.b16 %v589
        %v658 = vunpack.c.l.b16 %v590
        %v659 = vunpack.c.l.b16 %v591
        %v660 = vunpack.c.l.b16 %v592
        %v661 = vunpack.c.l.b16 %v593
        %v662 = vunpack.c.l.b16 %v594
        %v663 = vunpack.c.l.b16 %v595
        %v664 = vunpack.c.l.b16 %v596
        %v665 = vunpack.c.l.b16 %v597
        %v666 = vunpack.c.l.b16 %v598
        %v667 = vunpack.c.l.b16 %v599
        %v668 = vunpack.c.l.b16 %v600
        %v669 = vpack.c.b16 %v638, %v637
        %v670 = vpack.c.b16 %v640, %v639
        %v671 = vpack.c.b16 %v642, %v641
        %v672 = vpack.c.b16 %v644, %v643
        %v673 = vpack.c.b16 %v646, %v645
        %v674 = vpack.c.b16 %v648, %v647
        %v675 = vpack.c.b16 %v650, %v649
        %v676 = vpack.c.b16 %v652, %v651
        %v677 = vpack.c.b16 %v654, %v653
        %v678 = vpack.c.b16 %v656, %v655
        %v679 = vpack.c.b16 %v658, %v657
        %v680 = vpack.c.b16 %v660, %v659
        %v681 = vpack.c.b16 %v662, %v661
        %v682 = vpack.c.b16 %v664, %v663
        %v683 = vpack.c.b16 %v666, %v665
        %v684 = vpack.c.b16 %v668, %v667
        %701 = vmatprep.subr.bf16.mxu0 0
        %702 = vmatpush1.bf16.msra.mxu0 %v669
        %703 = vmatprep.subr.bf16.mxu0 0
        %704 = vmatpush1.bf16.msra.mxu0 %v670
        %705 = vmatprep.subr.bf16.mxu0 0
        %706 = vmatpush1.bf16.msra.mxu0 %v671
        %707 = vmatprep.subr.bf16.mxu0 0
        %708 = vmatpush1.bf16.msra.mxu0 %v672
        %709 = vmatprep.subr.bf16.mxu0 0
        %710 = vmatpush1.bf16.msra.mxu0 %v673
        %711 = vmatprep.subr.bf16.mxu0 0
        %712 = vmatpush1.bf16.msra.mxu0 %v674
        %713 = vmatprep.subr.bf16.mxu0 0
        %714 = vmatpush1.bf16.msra.mxu0 %v675
        %715 = vmatprep.subr.bf16.mxu0 0
        %716 = vmatpush1.bf16.msra.mxu0 %v676
        %717 = vmatprep.subr.bf16.mxu0 0
        %718 = vmatpush1.bf16.msra.mxu0 %v677
        %719 = vmatprep.subr.bf16.mxu0 0
        %720 = vmatpush1.bf16.msra.mxu0 %v678
        %721 = vmatprep.subr.bf16.mxu0 0
        %722 = vmatpush1.bf16.msra.mxu0 %v679
        %723 = vmatprep.subr.bf16.mxu0 0
        %724 = vmatpush1.bf16.msra.mxu0 %v680
        %725 = vmatprep.subr.bf16.mxu0 0
        %726 = vmatpush1.bf16.msra.mxu0 %v681
        %727 = vmatprep.subr.bf16.mxu0 0
        %728 = vmatpush1.bf16.msra.mxu0 %v682
        %729 = vmatprep.subr.bf16.mxu0 0
        %730 = vmatpush1.bf16.msra.mxu0 %v683
        %731 = vmatprep.subr.bf16.mxu0 0
        %732 = vmatpush1.bf16.msra.mxu0 %v684
        %733 = vmatprep.mubr.bf16.mxu0 %v602
        %734 = vmatmul.mubr.bf16.gmra.mrb[0].mxu0 %v601
        %v735 = vpop.f32.mrb[0].mxu0
        %v736 = vadd.f32 0.0, %v735
        %v737 = vpop.f32.mrb[0].mxu0
        %v738 = vpop.f32.mrb[0].mxu0
        %v739 = vpop.f32.mrb[0].mxu0
        %740 = vdwg.mxu0
        %s741 = scalar_lea.vmem %s3, 512
        %v742 = vld [vmem:[%s741] sm:$0xf]
        %v743 = vld [vmem:[%s741 + $0x4] sm:$0xf]
        %v744 = vld [vmem:[%s741 + $0x8] sm:$0xf]
        %v745 = vld [vmem:[%s741 + $0xc] sm:$0xf]
        %v746 = vld [vmem:[%s741 + $0x10] sm:$0xf]
        %v747 = vld [vmem:[%s741 + $0x14] sm:$0xf]
        %v748 = vld [vmem:[%s741 + $0x18] sm:$0xf]
        %v749 = vld [vmem:[%s741 + $0x1c] sm:$0xf]
        %v750 = vld [vmem:[%s741 + $0x20] sm:$0xf]
        %v751 = vld [vmem:[%s741 + $0x24] sm:$0xf]
        %v752 = vld [vmem:[%s741 + $0x28] sm:$0xf]
        %v753 = vld [vmem:[%s741 + $0x2c] sm:$0xf]
        %v754 = vld [vmem:[%s741 + $0x30] sm:$0xf]
        %v755 = vld [vmem:[%s741 + $0x34] sm:$0xf]
        %v756 = vld [vmem:[%s741 + $0x38] sm:$0xf]
        %v757 = vld [vmem:[%s741 + $0x3c] sm:$0xf]
        %v758 = vld [vmem:[%s741 + $0x40] sm:$0xf]
        %v759 = vld [vmem:[%s741 + $0x44] sm:$0xf]
        %v760 = vld [vmem:[%s741 + $0x48] sm:$0xf]
        %v761 = vld [vmem:[%s741 + $0x4c] sm:$0xf]
        %v762 = vld [vmem:[%s741 + $0x50] sm:$0xf]
        %v763 = vld [vmem:[%s741 + $0x54] sm:$0xf]
        %v764 = vld [vmem:[%s741 + $0x58] sm:$0xf]
        %v765 = vld [vmem:[%s741 + $0x5c] sm:$0xf]
        %v766 = vld [vmem:[%s741 + $0x60] sm:$0xf]
        %v767 = vld [vmem:[%s741 + $0x64] sm:$0xf]
        %v768 = vld [vmem:[%s741 + $0x68] sm:$0xf]
        %v769 = vld [vmem:[%s741 + $0x6c] sm:$0xf]
        %v770 = vld [vmem:[%s741 + $0x70] sm:$0xf]
        %v771 = vld [vmem:[%s741 + $0x74] sm:$0xf]
        %v772 = vld [vmem:[%s741 + $0x78] sm:$0xf]
        %v773 = vld [vmem:[%s741 + $0x7c] sm:$0xf]
        %s774 = scalar_lea.vmem %s3, 640
        %v775 = vld [vmem:[%s774] sm:$0xf]
        %v776 = vld [vmem:[%s774 + $0x4] sm:$0xf]
        %v777 = vld [vmem:[%s774 + $0x8] sm:$0xf]
        %v778 = vld [vmem:[%s774 + $0xc] sm:$0xf]
        %v779 = vld [vmem:[%s774 + $0x10] sm:$0xf]
        %v780 = vld [vmem:[%s774 + $0x14] sm:$0xf]
        %v781 = vld [vmem:[%s774 + $0x18] sm:$0xf]
        %v782 = vld [vmem:[%s774 + $0x1c] sm:$0xf]
        %v783 = vld [vmem:[%s774 + $0x20] sm:$0xf]
        %v784 = vld [vmem:[%s774 + $0x24] sm:$0xf]
        %v785 = vld [vmem:[%s774 + $0x28] sm:$0xf]
        %v786 = vld [vmem:[%s774 + $0x2c] sm:$0xf]
        %v787 = vld [vmem:[%s774 + $0x30] sm:$0xf]
        %v788 = vld [vmem:[%s774 + $0x34] sm:$0xf]
        %v789 = vld [vmem:[%s774 + $0x38] sm:$0xf]
        %v790 = vld [vmem:[%s774 + $0x3c] sm:$0xf]
        %v791 = vld [vmem:[%s774 + $0x40] sm:$0xf]
        %v792 = vld [vmem:[%s774 + $0x44] sm:$0xf]
        %v793 = vld [vmem:[%s774 + $0x48] sm:$0xf]
        %v794 = vld [vmem:[%s774 + $0x4c] sm:$0xf]
        %v795 = vld [vmem:[%s774 + $0x50] sm:$0xf]
        %v796 = vld [vmem:[%s774 + $0x54] sm:$0xf]
        %v797 = vld [vmem:[%s774 + $0x58] sm:$0xf]
        %v798 = vld [vmem:[%s774 + $0x5c] sm:$0xf]
        %v799 = vld [vmem:[%s774 + $0x60] sm:$0xf]
        %v800 = vld [vmem:[%s774 + $0x64] sm:$0xf]
        %v801 = vld [vmem:[%s774 + $0x68] sm:$0xf]
        %v802 = vld [vmem:[%s774 + $0x6c] sm:$0xf]
        %v803 = vld [vmem:[%s774 + $0x70] sm:$0xf]
        %v804 = vld [vmem:[%s774 + $0x74] sm:$0xf]
        %v805 = vld [vmem:[%s774 + $0x78] sm:$0xf]
        %v806 = vld [vmem:[%s774 + $0x7c] sm:$0xf]
        %v807 = vrot.slane %v392, 2
        %v808 = vrot.slane %v395, 2
        %v843 = vunpack.c.l.b16 %v775
        %v844 = vunpack.c.l.b16 %v776
        %v845 = vunpack.c.l.b16 %v777
        %v846 = vunpack.c.l.b16 %v778
        %v847 = vunpack.c.l.b16 %v779
        %v848 = vunpack.c.l.b16 %v780
        %v849 = vunpack.c.l.b16 %v781
        %v850 = vunpack.c.l.b16 %v782
        %v851 = vunpack.c.l.b16 %v783
        %v852 = vunpack.c.l.b16 %v784
        %v853 = vunpack.c.l.b16 %v785
        %v854 = vunpack.c.l.b16 %v786
        %v855 = vunpack.c.l.b16 %v787
        %v856 = vunpack.c.l.b16 %v788
        %v857 = vunpack.c.l.b16 %v789
        %v858 = vunpack.c.l.b16 %v790
        %v859 = vunpack.c.l.b16 %v791
        %v860 = vunpack.c.l.b16 %v792
        %v861 = vunpack.c.l.b16 %v793
        %v862 = vunpack.c.l.b16 %v794
        %v863 = vunpack.c.l.b16 %v795
        %v864 = vunpack.c.l.b16 %v796
        %v865 = vunpack.c.l.b16 %v797
        %v866 = vunpack.c.l.b16 %v798
        %v867 = vunpack.c.l.b16 %v799
        %v868 = vunpack.c.l.b16 %v800
        %v869 = vunpack.c.l.b16 %v801
        %v870 = vunpack.c.l.b16 %v802
        %v871 = vunpack.c.l.b16 %v803
        %v872 = vunpack.c.l.b16 %v804
        %v873 = vunpack.c.l.b16 %v805
        %v874 = vunpack.c.l.b16 %v806
        %v875 = vpack.c.b16 %v844, %v843
        %v876 = vpack.c.b16 %v846, %v845
        %v877 = vpack.c.b16 %v848, %v847
        %v878 = vpack.c.b16 %v850, %v849
        %v879 = vpack.c.b16 %v852, %v851
        %v880 = vpack.c.b16 %v854, %v853
        %v881 = vpack.c.b16 %v856, %v855
        %v882 = vpack.c.b16 %v858, %v857
        %v883 = vpack.c.b16 %v860, %v859
        %v884 = vpack.c.b16 %v862, %v861
        %v885 = vpack.c.b16 %v864, %v863
        %v886 = vpack.c.b16 %v866, %v865
        %v887 = vpack.c.b16 %v868, %v867
        %v888 = vpack.c.b16 %v870, %v869
        %v889 = vpack.c.b16 %v872, %v871
        %v890 = vpack.c.b16 %v874, %v873
        %907 = vmatprep.subr.bf16.mxu0 0
        %908 = vmatpush1.bf16.msra.mxu0 %v875
        %909 = vmatprep.subr.bf16.mxu0 0
        %910 = vmatpush1.bf16.msra.mxu0 %v876
        %911 = vmatprep.subr.bf16.mxu0 0
        %912 = vmatpush1.bf16.msra.mxu0 %v877
        %913 = vmatprep.subr.bf16.mxu0 0
        %914 = vmatpush1.bf16.msra.mxu0 %v878
        %915 = vmatprep.subr.bf16.mxu0 0
        %916 = vmatpush1.bf16.msra.mxu0 %v879
        %917 = vmatprep.subr.bf16.mxu0 0
        %918 = vmatpush1.bf16.msra.mxu0 %v880
        %919 = vmatprep.subr.bf16.mxu0 0
        %920 = vmatpush1.bf16.msra.mxu0 %v881
        %921 = vmatprep.subr.bf16.mxu0 0
        %922 = vmatpush1.bf16.msra.mxu0 %v882
        %923 = vmatprep.subr.bf16.mxu0 0
        %924 = vmatpush1.bf16.msra.mxu0 %v883
        %925 = vmatprep.subr.bf16.mxu0 0
        %926 = vmatpush1.bf16.msra.mxu0 %v884
        %927 = vmatprep.subr.bf16.mxu0 0
        %928 = vmatpush1.bf16.msra.mxu0 %v885
        %929 = vmatprep.subr.bf16.mxu0 0
        %930 = vmatpush1.bf16.msra.mxu0 %v886
        %931 = vmatprep.subr.bf16.mxu0 0
        %932 = vmatpush1.bf16.msra.mxu0 %v887
        %933 = vmatprep.subr.bf16.mxu0 0
        %934 = vmatpush1.bf16.msra.mxu0 %v888
        %935 = vmatprep.subr.bf16.mxu0 0
        %936 = vmatpush1.bf16.msra.mxu0 %v889
        %937 = vmatprep.subr.bf16.mxu0 0
        %938 = vmatpush1.bf16.msra.mxu0 %v890
        %939 = vmatprep.mubr.bf16.mxu0 %v808
        %940 = vmatmul.mubr.bf16.gmra.mrb[0].mxu0 %v807
        %v941 = vpop.f32.mrb[0].mxu0
        %v942 = vadd.f32 0.0, %v941
        %v943 = vpop.f32.mrb[0].mxu0
        %v944 = vpop.f32.mrb[0].mxu0
        %v945 = vpop.f32.mrb[0].mxu0
        %946 = vdwg.mxu0
        %s947 = scalar_lea.vmem %s3, 768
        %v948 = vld [vmem:[%s947] sm:$0xf]
        %v949 = vld [vmem:[%s947 + $0x4] sm:$0xf]
        %v950 = vld [vmem:[%s947 + $0x8] sm:$0xf]
        %v951 = vld [vmem:[%s947 + $0xc] sm:$0xf]
        %v952 = vld [vmem:[%s947 + $0x10] sm:$0xf]
        %v953 = vld [vmem:[%s947 + $0x14] sm:$0xf]
        %v954 = vld [vmem:[%s947 + $0x18] sm:$0xf]
        %v955 = vld [vmem:[%s947 + $0x1c] sm:$0xf]
        %v956 = vld [vmem:[%s947 + $0x20] sm:$0xf]
        %v957 = vld [vmem:[%s947 + $0x24] sm:$0xf]
        %v958 = vld [vmem:[%s947 + $0x28] sm:$0xf]
        %v959 = vld [vmem:[%s947 + $0x2c] sm:$0xf]
        %v960 = vld [vmem:[%s947 + $0x30] sm:$0xf]
        %v961 = vld [vmem:[%s947 + $0x34] sm:$0xf]
        %v962 = vld [vmem:[%s947 + $0x38] sm:$0xf]
        %v963 = vld [vmem:[%s947 + $0x3c] sm:$0xf]
        %v964 = vld [vmem:[%s947 + $0x40] sm:$0xf]
        %v965 = vld [vmem:[%s947 + $0x44] sm:$0xf]
        %v966 = vld [vmem:[%s947 + $0x48] sm:$0xf]
        %v967 = vld [vmem:[%s947 + $0x4c] sm:$0xf]
        %v968 = vld [vmem:[%s947 + $0x50] sm:$0xf]
        %v969 = vld [vmem:[%s947 + $0x54] sm:$0xf]
        %v970 = vld [vmem:[%s947 + $0x58] sm:$0xf]
        %v971 = vld [vmem:[%s947 + $0x5c] sm:$0xf]
        %v972 = vld [vmem:[%s947 + $0x60] sm:$0xf]
        %v973 = vld [vmem:[%s947 + $0x64] sm:$0xf]
        %v974 = vld [vmem:[%s947 + $0x68] sm:$0xf]
        %v975 = vld [vmem:[%s947 + $0x6c] sm:$0xf]
        %v976 = vld [vmem:[%s947 + $0x70] sm:$0xf]
        %v977 = vld [vmem:[%s947 + $0x74] sm:$0xf]
        %v978 = vld [vmem:[%s947 + $0x78] sm:$0xf]
        %v979 = vld [vmem:[%s947 + $0x7c] sm:$0xf]
        %s980 = scalar_lea.vmem %s3, 896
        %v981 = vld [vmem:[%s980] sm:$0xf]
        %v982 = vld [vmem:[%s980 + $0x4] sm:$0xf]
        %v983 = vld [vmem:[%s980 + $0x8] sm:$0xf]
        %v984 = vld [vmem:[%s980 + $0xc] sm:$0xf]
        %v985 = vld [vmem:[%s980 + $0x10] sm:$0xf]
        %v986 = vld [vmem:[%s980 + $0x14] sm:$0xf]
        %v987 = vld [vmem:[%s980 + $0x18] sm:$0xf]
        %v988 = vld [vmem:[%s980 + $0x1c] sm:$0xf]
        %v989 = vld [vmem:[%s980 + $0x20] sm:$0xf]
        %v990 = vld [vmem:[%s980 + $0x24] sm:$0xf]
        %v991 = vld [vmem:[%s980 + $0x28] sm:$0xf]
        %v992 = vld [vmem:[%s980 + $0x2c] sm:$0xf]
        %v993 = vld [vmem:[%s980 + $0x30] sm:$0xf]
        %v994 = vld [vmem:[%s980 + $0x34] sm:$0xf]
        %v995 = vld [vmem:[%s980 + $0x38] sm:$0xf]
        %v996 = vld [vmem:[%s980 + $0x3c] sm:$0xf]
        %v997 = vld [vmem:[%s980 + $0x40] sm:$0xf]
        %v998 = vld [vmem:[%s980 + $0x44] sm:$0xf]
        %v999 = vld [vmem:[%s980 + $0x48] sm:$0xf]
        %v1000 = vld [vmem:[%s980 + $0x4c] sm:$0xf]
        %v1001 = vld [vmem:[%s980 + $0x50] sm:$0xf]
        %v1002 = vld [vmem:[%s980 + $0x54] sm:$0xf]
        %v1003 = vld [vmem:[%s980 + $0x58] sm:$0xf]
        %v1004 = vld [vmem:[%s980 + $0x5c] sm:$0xf]
        %v1005 = vld [vmem:[%s980 + $0x60] sm:$0xf]
        %v1006 = vld [vmem:[%s980 + $0x64] sm:$0xf]
        %v1007 = vld [vmem:[%s980 + $0x68] sm:$0xf]
        %v1008 = vld [vmem:[%s980 + $0x6c] sm:$0xf]
        %v1009 = vld [vmem:[%s980 + $0x70] sm:$0xf]
        %v1010 = vld [vmem:[%s980 + $0x74] sm:$0xf]
        %v1011 = vld [vmem:[%s980 + $0x78] sm:$0xf]
        %v1012 = vld [vmem:[%s980 + $0x7c] sm:$0xf]
        %v1013 = vrot.slane %v392, 3
        %v1014 = vrot.slane %v395, 3
        %v1049 = vunpack.c.l.b16 %v981
        %v1050 = vunpack.c.l.b16 %v982
        %v1051 = vunpack.c.l.b16 %v983
        %v1052 = vunpack.c.l.b16 %v984
        %v1053 = vunpack.c.l.b16 %v985
        %v1054 = vunpack.c.l.b16 %v986
        %v1055 = vunpack.c.l.b16 %v987
        %v1056 = vunpack.c.l.b16 %v988
        %v1057 = vunpack.c.l.b16 %v989
        %v1058 = vunpack.c.l.b16 %v990
        %v1059 = vunpack.c.l.b16 %v991
        %v1060 = vunpack.c.l.b16 %v992
        %v1061 = vunpack.c.l.b16 %v993
        %v1062 = vunpack.c.l.b16 %v994
        %v1063 = vunpack.c.l.b16 %v995
        %v1064 = vunpack.c.l.b16 %v996
        %v1065 = vunpack.c.l.b16 %v997
        %v1066 = vunpack.c.l.b16 %v998
        %v1067 = vunpack.c.l.b16 %v999
        %v1068 = vunpack.c.l.b16 %v1000
        %v1069 = vunpack.c.l.b16 %v1001
        %v1070 = vunpack.c.l.b16 %v1002
        %v1071 = vunpack.c.l.b16 %v1003
        %v1072 = vunpack.c.l.b16 %v1004
        %v1073 = vunpack.c.l.b16 %v1005
        %v1074 = vunpack.c.l.b16 %v1006
        %v1075 = vunpack.c.l.b16 %v1007
        %v1076 = vunpack.c.l.b16 %v1008
        %v1077 = vunpack.c.l.b16 %v1009
        %v1078 = vunpack.c.l.b16 %v1010
        %v1079 = vunpack.c.l.b16 %v1011
        %v1080 = vunpack.c.l.b16 %v1012
        %v1081 = vpack.c.b16 %v1050, %v1049
        %v1082 = vpack.c.b16 %v1052, %v1051
        %v1083 = vpack.c.b16 %v1054, %v1053
        %v1084 = vpack.c.b16 %v1056, %v1055
        %v1085 = vpack.c.b16 %v1058, %v1057
        %v1086 = vpack.c.b16 %v1060, %v1059
        %v1087 = vpack.c.b16 %v1062, %v1061
        %v1088 = vpack.c.b16 %v1064, %v1063
        %v1089 = vpack.c.b16 %v1066, %v1065
        %v1090 = vpack.c.b16 %v1068, %v1067
        %v1091 = vpack.c.b16 %v1070, %v1069
        %v1092 = vpack.c.b16 %v1072, %v1071
        %v1093 = vpack.c.b16 %v1074, %v1073
        %v1094 = vpack.c.b16 %v1076, %v1075
        %v1095 = vpack.c.b16 %v1078, %v1077
        %v1096 = vpack.c.b16 %v1080, %v1079
        %1113 = vmatprep.subr.bf16.mxu0 0
        %1114 = vmatpush1.bf16.msra.mxu0 %v1081
        %1115 = vmatprep.subr.bf16.mxu0 0
        %1116 = vmatpush1.bf16.msra.mxu0 %v1082
        %1117 = vmatprep.subr.bf16.mxu0 0
        %1118 = vmatpush1.bf16.msra.mxu0 %v1083
        %1119 = vmatprep.subr.bf16.mxu0 0
        %1120 = vmatpush1.bf16.msra.mxu0 %v1084
        %1121 = vmatprep.subr.bf16.mxu0 0
        %1122 = vmatpush1.bf16.msra.mxu0 %v1085
        %1123 = vmatprep.subr.bf16.mxu0 0
        %1124 = vmatpush1.bf16.msra.mxu0 %v1086
        %1125 = vmatprep.subr.bf16.mxu0 0
        %1126 = vmatpush1.bf16.msra.mxu0 %v1087
        %1127 = vmatprep.subr.bf16.mxu0 0
        %1128 = vmatpush1.bf16.msra.mxu0 %v1088
        %1129 = vmatprep.subr.bf16.mxu0 0
        %1130 = vmatpush1.bf16.msra.mxu0 %v1089
        %1131 = vmatprep.subr.bf16.mxu0 0
        %1132 = vmatpush1.bf16.msra.mxu0 %v1090
        %1133 = vmatprep.subr.bf16.mxu0 0
        %1134 = vmatpush1.bf16.msra.mxu0 %v1091
        %1135 = vmatprep.subr.bf16.mxu0 0
        %1136 = vmatpush1.bf16.msra.mxu0 %v1092
        %1137 = vmatprep.subr.bf16.mxu0 0
        %1138 = vmatpush1.bf16.msra.mxu0 %v1093
        %1139 = vmatprep.subr.bf16.mxu0 0
        %1140 = vmatpush1.bf16.msra.mxu0 %v1094
        %1141 = vmatprep.subr.bf16.mxu0 0
        %1142 = vmatpush1.bf16.msra.mxu0 %v1095
        %1143 = vmatprep.subr.bf16.mxu0 0
        %1144 = vmatpush1.bf16.msra.mxu0 %v1096
        %1145 = vmatprep.mubr.bf16.mxu0 %v1014
        %1146 = vmatmul.mubr.bf16.gmra.mrb[0].mxu0 %v1013
        %v1147 = vpop.f32.mrb[0].mxu0
        %v1148 = vadd.f32 0.0, %v1147
        %v1149 = vpop.f32.mrb[0].mxu0
        %v1150 = vpop.f32.mrb[0].mxu0
        %v1151 = vpop.f32.mrb[0].mxu0
        %1152 = vdwg.mxu0
        %v1185 = vunpack.c.l.b16 %v326
        %v1186 = vunpack.c.l.b16 %v327
        %v1187 = vunpack.c.l.b16 %v328
        %v1188 = vunpack.c.l.b16 %v329
        %v1189 = vunpack.c.l.b16 %v330
        %v1190 = vunpack.c.l.b16 %v331
        %v1191 = vunpack.c.l.b16 %v332
        %v1192 = vunpack.c.l.b16 %v333
        %v1193 = vunpack.c.l.b16 %v334
        %v1194 = vunpack.c.l.b16 %v335
        %v1195 = vunpack.c.l.b16 %v336
        %v1196 = vunpack.c.l.b16 %v337
        %v1197 = vunpack.c.l.b16 %v338
        %v1198 = vunpack.c.l.b16 %v339
        %v1199 = vunpack.c.l.b16 %v340
        %v1200 = vunpack.c.l.b16 %v341
        %v1201 = vunpack.c.l.b16 %v342
        %v1202 = vunpack.c.l.b16 %v343
        %v1203 = vunpack.c.l.b16 %v344
        %v1204 = vunpack.c.l.b16 %v345
        %v1205 = vunpack.c.l.b16 %v346
        %v1206 = vunpack.c.l.b16 %v347
        %v1207 = vunpack.c.l.b16 %v348
        %v1208 = vunpack.c.l.b16 %v349
        %v1209 = vunpack.c.l.b16 %v350
        %v1210 = vunpack.c.l.b16 %v351
        %v1211 = vunpack.c.l.b16 %v352
        %v1212 = vunpack.c.l.b16 %v353
        %v1213 = vunpack.c.l.b16 %v354
        %v1214 = vunpack.c.l.b16 %v355
        %v1215 = vunpack.c.l.b16 %v356
        %v1216 = vunpack.c.l.b16 %v357
        %v1217 = vpack.c.b16 %v1186, %v1185
        %v1218 = vpack.c.b16 %v1188, %v1187
        %v1219 = vpack.c.b16 %v1190, %v1189
        %v1220 = vpack.c.b16 %v1192, %v1191
        %v1221 = vpack.c.b16 %v1194, %v1193
        %v1222 = vpack.c.b16 %v1196, %v1195
        %v1223 = vpack.c.b16 %v1198, %v1197
        %v1224 = vpack.c.b16 %v1200, %v1199
        %v1225 = vpack.c.b16 %v1202, %v1201
        %v1226 = vpack.c.b16 %v1204, %v1203
        %v1227 = vpack.c.b16 %v1206, %v1205
        %v1228 = vpack.c.b16 %v1208, %v1207
        %v1229 = vpack.c.b16 %v1210, %v1209
        %v1230 = vpack.c.b16 %v1212, %v1211
        %v1231 = vpack.c.b16 %v1214, %v1213
        %v1232 = vpack.c.b16 %v1216, %v1215
        %1249 = vmatprep.subr.bf16.mxu0 0
        %1250 = vmatpush1.bf16.msra.mxu0 %v1217
        %1251 = vmatprep.subr.bf16.mxu0 0
        %1252 = vmatpush1.bf16.msra.mxu0 %v1218
        %1253 = vmatprep.subr.bf16.mxu0 0
        %1254 = vmatpush1.bf16.msra.mxu0 %v1219
        %1255 = vmatprep.subr.bf16.mxu0 0
        %1256 = vmatpush1.bf16.msra.mxu0 %v1220
        %1257 = vmatprep.subr.bf16.mxu0 0
        %1258 = vmatpush1.bf16.msra.mxu0 %v1221
        %1259 = vmatprep.subr.bf16.mxu0 0
        %1260 = vmatpush1.bf16.msra.mxu0 %v1222
        %1261 = vmatprep.subr.bf16.mxu0 0
        %1262 = vmatpush1.bf16.msra.mxu0 %v1223
        %1263 = vmatprep.subr.bf16.mxu0 0
        %1264 = vmatpush1.bf16.msra.mxu0 %v1224
        %1265 = vmatprep.subr.bf16.mxu0 0
        %1266 = vmatpush1.bf16.msra.mxu0 %v1225
        %1267 = vmatprep.subr.bf16.mxu0 0
        %1268 = vmatpush1.bf16.msra.mxu0 %v1226
        %1269 = vmatprep.subr.bf16.mxu0 0
        %1270 = vmatpush1.bf16.msra.mxu0 %v1227
        %1271 = vmatprep.subr.bf16.mxu0 0
        %1272 = vmatpush1.bf16.msra.mxu0 %v1228
        %1273 = vmatprep.subr.bf16.mxu0 0
        %1274 = vmatpush1.bf16.msra.mxu0 %v1229
        %1275 = vmatprep.subr.bf16.mxu0 0
        %1276 = vmatpush1.bf16.msra.mxu0 %v1230
        %1277 = vmatprep.subr.bf16.mxu0 0
        %1278 = vmatpush1.bf16.msra.mxu0 %v1231
        %1279 = vmatprep.subr.bf16.mxu0 0
        %1280 = vmatpush1.bf16.msra.mxu0 %v1232
        %1281 = vmatprep.mubr.bf16.mxu0 %v325
        %1282 = vmatmul.mubr.bf16.gmra.mrb[0].mxu0 %v324
        %v1283 = vpop.f32.mrb[0].mxu0
        %v1284 = vadd.f32 %v530, %v1283
        %v1285 = vpop.f32.mrb[0].mxu0
        %v1286 = vpop.f32.mrb[0].mxu0
        %v1287 = vpop.f32.mrb[0].mxu0
        %1288 = vdwg.mxu0
        %v1291 = vrot.slane %v324, 1
        %v1292 = vrot.slane %v325, 1
        %v1327 = vunpack.c.l.b16 %v536
        %v1328 = vunpack.c.l.b16 %v537
        %v1329 = vunpack.c.l.b16 %v538
        %v1330 = vunpack.c.l.b16 %v539
        %v1331 = vunpack.c.l.b16 %v540
        %v1332 = vunpack.c.l.b16 %v541
        %v1333 = vunpack.c.l.b16 %v542
        %v1334 = vunpack.c.l.b16 %v543
        %v1335 = vunpack.c.l.b16 %v544
        %v1336 = vunpack.c.l.b16 %v545
        %v1337 = vunpack.c.l.b16 %v546
        %v1338 = vunpack.c.l.b16 %v547
        %v1339 = vunpack.c.l.b16 %v548
        %v1340 = vunpack.c.l.b16 %v549
        %v1341 = vunpack.c.l.b16 %v550
        %v1342 = vunpack.c.l.b16 %v551
        %v1343 = vunpack.c.l.b16 %v552
        %v1344 = vunpack.c.l.b16 %v553
        %v1345 = vunpack.c.l.b16 %v554
        %v1346 = vunpack.c.l.b16 %v555
        %v1347 = vunpack.c.l.b16 %v556
        %v1348 = vunpack.c.l.b16 %v557
        %v1349 = vunpack.c.l.b16 %v558
        %v1350 = vunpack.c.l.b16 %v559
        %v1351 = vunpack.c.l.b16 %v560
        %v1352 = vunpack.c.l.b16 %v561
        %v1353 = vunpack.c.l.b16 %v562
        %v1354 = vunpack.c.l.b16 %v563
        %v1355 = vunpack.c.l.b16 %v564
        %v1356 = vunpack.c.l.b16 %v565
        %v1357 = vunpack.c.l.b16 %v566
        %v1358 = vunpack.c.l.b16 %v567
        %v1359 = vpack.c.b16 %v1328, %v1327
        %v1360 = vpack.c.b16 %v1330, %v1329
        %v1361 = vpack.c.b16 %v1332, %v1331
        %v1362 = vpack.c.b16 %v1334, %v1333
        %v1363 = vpack.c.b16 %v1336, %v1335
        %v1364 = vpack.c.b16 %v1338, %v1337
        %v1365 = vpack.c.b16 %v1340, %v1339
        %v1366 = vpack.c.b16 %v1342, %v1341
        %v1367 = vpack.c.b16 %v1344, %v1343
        %v1368 = vpack.c.b16 %v1346, %v1345
        %v1369 = vpack.c.b16 %v1348, %v1347
        %v1370 = vpack.c.b16 %v1350, %v1349
        %v1371 = vpack.c.b16 %v1352, %v1351
        %v1372 = vpack.c.b16 %v1354, %v1353
        %v1373 = vpack.c.b16 %v1356, %v1355
        %v1374 = vpack.c.b16 %v1358, %v1357
        %1391 = vmatprep.subr.bf16.mxu0 0
        %1392 = vmatpush1.bf16.msra.mxu0 %v1359
        %1393 = vmatprep.subr.bf16.mxu0 0
        %1394 = vmatpush1.bf16.msra.mxu0 %v1360
        %1395 = vmatprep.subr.bf16.mxu0 0
        %1396 = vmatpush1.bf16.msra.mxu0 %v1361
        %1397 = vmatprep.subr.bf16.mxu0 0
        %1398 = vmatpush1.bf16.msra.mxu0 %v1362
        %1399 = vmatprep.subr.bf16.mxu0 0
        %1400 = vmatpush1.bf16.msra.mxu0 %v1363
        %1401 = vmatprep.subr.bf16.mxu0 0
        %1402 = vmatpush1.bf16.msra.mxu0 %v1364
        %1403 = vmatprep.subr.bf16.mxu0 0
        %1404 = vmatpush1.bf16.msra.mxu0 %v1365
        %1405 = vmatprep.subr.bf16.mxu0 0
        %1406 = vmatpush1.bf16.msra.mxu0 %v1366
        %1407 = vmatprep.subr.bf16.mxu0 0
        %1408 = vmatpush1.bf16.msra.mxu0 %v1367
        %1409 = vmatprep.subr.bf16.mxu0 0
        %1410 = vmatpush1.bf16.msra.mxu0 %v1368
        %1411 = vmatprep.subr.bf16.mxu0 0
        %1412 = vmatpush1.bf16.msra.mxu0 %v1369
        %1413 = vmatprep.subr.bf16.mxu0 0
        %1414 = vmatpush1.bf16.msra.mxu0 %v1370
        %1415 = vmatprep.subr.bf16.mxu0 0
        %1416 = vmatpush1.bf16.msra.mxu0 %v1371
        %1417 = vmatprep.subr.bf16.mxu0 0
        %1418 = vmatpush1.bf16.msra.mxu0 %v1372
        %1419 = vmatprep.subr.bf16.mxu0 0
        %1420 = vmatpush1.bf16.msra.mxu0 %v1373
        %1421 = vmatprep.subr.bf16.mxu0 0
        %1422 = vmatpush1.bf16.msra.mxu0 %v1374
        %1423 = vmatprep.mubr.bf16.mxu0 %v1292
        %1424 = vmatmul.mubr.bf16.gmra.mrb[0].mxu0 %v1291
        %v1425 = vpop.f32.mrb[0].mxu0
        %v1426 = vadd.f32 %v736, %v1425
        %v1427 = vpop.f32.mrb[0].mxu0
        %v1428 = vpop.f32.mrb[0].mxu0
        %v1429 = vpop.f32.mrb[0].mxu0
        %1430 = vdwg.mxu0
        %v1431 = vrot.slane %v324, 2
        %v1432 = vrot.slane %v325, 2
        %v1467 = vunpack.c.l.b16 %v742
        %v1468 = vunpack.c.l.b16 %v743
        %v1469 = vunpack.c.l.b16 %v744
        %v1470 = vunpack.c.l.b16 %v745
        %v1471 = vunpack.c.l.b16 %v746
        %v1472 = vunpack.c.l.b16 %v747
        %v1473 = vunpack.c.l.b16 %v748
        %v1474 = vunpack.c.l.b16 %v749
        %v1475 = vunpack.c.l.b16 %v750
        %v1476 = vunpack.c.l.b16 %v751
        %v1477 = vunpack.c.l.b16 %v752
        %v1478 = vunpack.c.l.b16 %v753
        %v1479 = vunpack.c.l.b16 %v754
        %v1480 = vunpack.c.l.b16 %v755
        %v1481 = vunpack.c.l.b16 %v756
        %v1482 = vunpack.c.l.b16 %v757
        %v1483 = vunpack.c.l.b16 %v758
        %v1484 = vunpack.c.l.b16 %v759
        %v1485 = vunpack.c.l.b16 %v760
        %v1486 = vunpack.c.l.b16 %v761
        %v1487 = vunpack.c.l.b16 %v762
        %v1488 = vunpack.c.l.b16 %v763
        %v1489 = vunpack.c.l.b16 %v764
        %v1490 = vunpack.c.l.b16 %v765
        %v1491 = vunpack.c.l.b16 %v766
        %v1492 = vunpack.c.l.b16 %v767
        %v1493 = vunpack.c.l.b16 %v768
        %v1494 = vunpack.c.l.b16 %v769
        %v1495 = vunpack.c.l.b16 %v770
        %v1496 = vunpack.c.l.b16 %v771
        %v1497 = vunpack.c.l.b16 %v772
        %v1498 = vunpack.c.l.b16 %v773
        %v1499 = vpack.c.b16 %v1468, %v1467
        %v1500 = vpack.c.b16 %v1470, %v1469
        %v1501 = vpack.c.b16 %v1472, %v1471
        %v1502 = vpack.c.b16 %v1474, %v1473
        %v1503 = vpack.c.b16 %v1476, %v1475
        %v1504 = vpack.c.b16 %v1478, %v1477
        %v1505 = vpack.c.b16 %v1480, %v1479
        %v1506 = vpack.c.b16 %v1482, %v1481
        %v1507 = vpack.c.b16 %v1484, %v1483
        %v1508 = vpack.c.b16 %v1486, %v1485
        %v1509 = vpack.c.b16 %v1488, %v1487
        %v1510 = vpack.c.b16 %v1490, %v1489
        %v1511 = vpack.c.b16 %v1492, %v1491
        %v1512 = vpack.c.b16 %v1494, %v1493
        %v1513 = vpack.c.b16 %v1496, %v1495
        %v1514 = vpack.c.b16 %v1498, %v1497
        %1531 = vmatprep.subr.bf16.mxu0 0
        %1532 = vmatpush1.bf16.msra.mxu0 %v1499
        %1533 = vmatprep.subr.bf16.mxu0 0
        %1534 = vmatpush1.bf16.msra.mxu0 %v1500
        %1535 = vmatprep.subr.bf16.mxu0 0
        %1536 = vmatpush1.bf16.msra.mxu0 %v1501
        %1537 = vmatprep.subr.bf16.mxu0 0
        %1538 = vmatpush1.bf16.msra.mxu0 %v1502
        %1539 = vmatprep.subr.bf16.mxu0 0
        %1540 = vmatpush1.bf16.msra.mxu0 %v1503
        %1541 = vmatprep.subr.bf16.mxu0 0
        %1542 = vmatpush1.bf16.msra.mxu0 %v1504
        %1543 = vmatprep.subr.bf16.mxu0 0
        %1544 = vmatpush1.bf16.msra.mxu0 %v1505
        %1545 = vmatprep.subr.bf16.mxu0 0
        %1546 = vmatpush1.bf16.msra.mxu0 %v1506
        %1547 = vmatprep.subr.bf16.mxu0 0
        %1548 = vmatpush1.bf16.msra.mxu0 %v1507
        %1549 = vmatprep.subr.bf16.mxu0 0
        %1550 = vmatpush1.bf16.msra.mxu0 %v1508
        %1551 = vmatprep.subr.bf16.mxu0 0
        %1552 = vmatpush1.bf16.msra.mxu0 %v1509
        %1553 = vmatprep.subr.bf16.mxu0 0
        %1554 = vmatpush1.bf16.msra.mxu0 %v1510
        %1555 = vmatprep.subr.bf16.mxu0 0
        %1556 = vmatpush1.bf16.msra.mxu0 %v1511
        %1557 = vmatprep.subr.bf16.mxu0 0
        %1558 = vmatpush1.bf16.msra.mxu0 %v1512
        %1559 = vmatprep.subr.bf16.mxu0 0
        %1560 = vmatpush1.bf16.msra.mxu0 %v1513
        %1561 = vmatprep.subr.bf16.mxu0 0
        %1562 = vmatpush1.bf16.msra.mxu0 %v1514
        %1563 = vmatprep.mubr.bf16.mxu0 %v1432
        %1564 = vmatmul.mubr.bf16.gmra.mrb[0].mxu0 %v1431
        %v1565 = vpop.f32.mrb[0].mxu0
        %v1566 = vadd.f32 %v942, %v1565
        %v1567 = vpop.f32.mrb[0].mxu0
        %v1568 = vpop.f32.mrb[0].mxu0
        %v1569 = vpop.f32.mrb[0].mxu0
        %1570 = vdwg.mxu0
        %v1571 = vrot.slane %v324, 3
        %v1572 = vrot.slane %v325, 3
        %v1607 = vunpack.c.l.b16 %v948
        %v1608 = vunpack.c.l.b16 %v949
        %v1609 = vunpack.c.l.b16 %v950
        %v1610 = vunpack.c.l.b16 %v951
        %v1611 = vunpack.c.l.b16 %v952
        %v1612 = vunpack.c.l.b16 %v953
        %v1613 = vunpack.c.l.b16 %v954
        %v1614 = vunpack.c.l.b16 %v955
        %v1615 = vunpack.c.l.b16 %v956
        %v1616 = vunpack.c.l.b16 %v957
        %v1617 = vunpack.c.l.b16 %v958
        %v1618 = vunpack.c.l.b16 %v959
        %v1619 = vunpack.c.l.b16 %v960
        %v1620 = vunpack.c.l.b16 %v961
        %v1621 = vunpack.c.l.b16 %v962
        %v1622 = vunpack.c.l.b16 %v963
        %v1623 = vunpack.c.l.b16 %v964
        %v1624 = vunpack.c.l.b16 %v965
        %v1625 = vunpack.c.l.b16 %v966
        %v1626 = vunpack.c.l.b16 %v967
        %v1627 = vunpack.c.l.b16 %v968
        %v1628 = vunpack.c.l.b16 %v969
        %v1629 = vunpack.c.l.b16 %v970
        %v1630 = vunpack.c.l.b16 %v971
        %v1631 = vunpack.c.l.b16 %v972
        %v1632 = vunpack.c.l.b16 %v973
        %v1633 = vunpack.c.l.b16 %v974
        %v1634 = vunpack.c.l.b16 %v975
        %v1635 = vunpack.c.l.b16 %v976
        %v1636 = vunpack.c.l.b16 %v977
        %v1637 = vunpack.c.l.b16 %v978
        %v1638 = vunpack.c.l.b16 %v979
        %v1639 = vpack.c.b16 %v1608, %v1607
        %v1640 = vpack.c.b16 %v1610, %v1609
        %v1641 = vpack.c.b16 %v1612, %v1611
        %v1642 = vpack.c.b16 %v1614, %v1613
        %v1643 = vpack.c.b16 %v1616, %v1615
        %v1644 = vpack.c.b16 %v1618, %v1617
        %v1645 = vpack.c.b16 %v1620, %v1619
        %v1646 = vpack.c.b16 %v1622, %v1621
        %v1647 = vpack.c.b16 %v1624, %v1623
        %v1648 = vpack.c.b16 %v1626, %v1625
        %v1649 = vpack.c.b16 %v1628, %v1627
        %v1650 = vpack.c.b16 %v1630, %v1629
        %v1651 = vpack.c.b16 %v1632, %v1631
        %v1652 = vpack.c.b16 %v1634, %v1633
        %v1653 = vpack.c.b16 %v1636, %v1635
        %v1654 = vpack.c.b16 %v1638, %v1637
        %1671 = vmatprep.subr.bf16.mxu0 0
        %1672 = vmatpush1.bf16.msra.mxu0 %v1639
        %1673 = vmatprep.subr.bf16.mxu0 0
        %1674 = vmatpush1.bf16.msra.mxu0 %v1640
        %1675 = vmatprep.subr.bf16.mxu0 0
        %1676 = vmatpush1.bf16.msra.mxu0 %v1641
        %1677 = vmatprep.subr.bf16.mxu0 0
        %1678 = vmatpush1.bf16.msra.mxu0 %v1642
        %1679 = vmatprep.subr.bf16.mxu0 0
        %1680 = vmatpush1.bf16.msra.mxu0 %v1643
        %1681 = vmatprep.subr.bf16.mxu0 0
        %1682 = vmatpush1.bf16.msra.mxu0 %v1644
        %1683 = vmatprep.subr.bf16.mxu0 0
        %1684 = vmatpush1.bf16.msra.mxu0 %v1645
        %1685 = vmatprep.subr.bf16.mxu0 0
        %1686 = vmatpush1.bf16.msra.mxu0 %v1646
        %1687 = vmatprep.subr.bf16.mxu0 0
        %1688 = vmatpush1.bf16.msra.mxu0 %v1647
        %1689 = vmatprep.subr.bf16.mxu0 0
        %1690 = vmatpush1.bf16.msra.mxu0 %v1648
        %1691 = vmatprep.subr.bf16.mxu0 0
        %1692 = vmatpush1.bf16.msra.mxu0 %v1649
        %1693 = vmatprep.subr.bf16.mxu0 0
        %1694 = vmatpush1.bf16.msra.mxu0 %v1650
        %1695 = vmatprep.subr.bf16.mxu0 0
        %1696 = vmatpush1.bf16.msra.mxu0 %v1651
        %1697 = vmatprep.subr.bf16.mxu0 0
        %1698 = vmatpush1.bf16.msra.mxu0 %v1652
        %1699 = vmatprep.subr.bf16.mxu0 0
        %1700 = vmatpush1.bf16.msra.mxu0 %v1653
        %1701 = vmatprep.subr.bf16.mxu0 0
        %1702 = vmatpush1.bf16.msra.mxu0 %v1654
        %1703 = vmatprep.mubr.bf16.mxu0 %v1572
        %1704 = vmatmul.mubr.bf16.gmra.mrb[0].mxu0 %v1571
        %v1705 = vpop.f32.mrb[0].mxu0
        %v1706 = vadd.f32 %v1148, %v1705
        %v1707 = vpop.f32.mrb[0].mxu0
        %v1708 = vpop.f32.mrb[0].mxu0
        %v1709 = vpop.f32.mrb[0].mxu0
        %1710 = vdwg.mxu0
        %v1711 = vadd.f32 %v1284, %v1426
        %v1712 = vadd.f32 %v1566, %v1706
        %v1713 = vadd.f32 %v1711, %v1712
        %v1714 = vadd.f32 %v1713, %v225
        %v1715 = vadd.f32 %v1714, 0.0
        %v1716 = vadd.f32 %v1715, 0.0
        %vm1717 = vcmp.ge.f32.partialorder %v1716, 1.0
        %v1718 = vsel %vm1717, 1, 0
        %v1719 = vcvt.s32.f32 %v1718
        %v1720 = vsub.f32 %v1716, %v1719
        %v1721 = vadd.f32 %v1719, 0.0
        %s1722 = scalar_lea.vmem %s221, 48
        %v1723 = vld [vmem:[%s1722] sm:$0xff]
        %v1724 = vld [vmem:[%s1722 + $0x8] sm:$0xff]
        %v1725 = vld [vmem:[%s1722 + $0x10] sm:$0xff]
        %v1726 = vld [vmem:[%s1722 + $0x18] sm:$0xff]
        %v1727 = vld [vmem:[%s1722 + $0x20] sm:$0xff]
        %v1728 = vld [vmem:[%s1722 + $0x28] sm:$0xff]
        %v1735 = vunpack.c.l.b16 %v1723
        %v1736 = vunpack.c.h.b16 %v1723
        %v1737 = vunpack.c.l.b16 %v1724
        %v1738 = vunpack.c.h.b16 %v1724
        %v1739 = vunpack.c.l.b16 %v1725
        %v1740 = vunpack.c.h.b16 %v1725
        %v1741 = vunpack.c.l.b16 %v1726
        %v1742 = vunpack.c.h.b16 %v1726
        %v1743 = vunpack.c.l.b16 %v1727
        %v1744 = vunpack.c.h.b16 %v1727
        %v1745 = vunpack.c.l.b16 %v1728
        %v1746 = vunpack.c.h.b16 %v1728
        %v1747 = vpack.c.b16 %v1737, %v1735
        %v1748 = vpack.c.b16 %v1738, %v1736
        %v1749 = vpack.c.b16 %v1741, %v1739
        %v1750 = vpack.c.b16 %v1742, %v1740
        %v1751 = vpack.c.b16 %v1745, %v1743
        %v1752 = vpack.c.b16 %v1746, %v1744
        %1759 = vmatprep.subr.bf16.mxu0 %v1748
        %1760 = vmatpush1.bf16.msra.mxu0 %v1747
        %1761 = vmatprep.subr.bf16.mxu0 %v1750
        %1762 = vmatpush1.bf16.msra.mxu0 %v1749
        %1763 = vmatprep.subr.bf16.mxu0 %v1752
        %1764 = vmatpush1.bf16.msra.mxu0 %v1751
        %1765 = vmatprep.subr.bf16.mxu0 0
        %1766 = vmatpush1.bf16.msra.mxu0 0
        %1767 = vmatprep.subr.bf16.mxu0 0
        %1768 = vmatpush1.bf16.msra.mxu0 0
        %1769 = vmatprep.subr.bf16.mxu0 0
        %1770 = vmatpush1.bf16.msra.mxu0 0
        %1771 = vmatprep.subr.bf16.mxu0 0
        %1772 = vmatpush1.bf16.msra.mxu0 0
        %1773 = vmatprep.subr.bf16.mxu0 0
        %1774 = vmatpush1.bf16.msra.mxu0 0
        %1775 = vmatprep.subr.bf16.mxu0 0
        %1776 = vmatpush1.bf16.msra.mxu0 0
        %1777 = vmatprep.subr.bf16.mxu0 0
        %1778 = vmatpush1.bf16.msra.mxu0 0
        %1779 = vmatprep.subr.bf16.mxu0 0
        %1780 = vmatpush1.bf16.msra.mxu0 0
        %1781 = vmatprep.subr.bf16.mxu0 0
        %1782 = vmatpush1.bf16.msra.mxu0 0
        %1783 = vmatprep.subr.bf16.mxu0 0
        %1784 = vmatpush1.bf16.msra.mxu0 0
        %1785 = vmatprep.subr.bf16.mxu0 0
        %1786 = vmatpush1.bf16.msra.mxu0 0
        %1787 = vmatprep.subr.bf16.mxu0 0
        %1788 = vmatpush1.bf16.msra.mxu0 0
        %1789 = vmatprep.subr.bf16.mxu0 0
        %1790 = vmatpush1.bf16.msra.mxu0 0
        %1791 = vmatprep.mubr.bf16.mxu0 0
        %1792 = vmatmul.mubr.bf16.gmra.mrb[0].mxu0 %v269
        %v1793 = vpop.f32.mrb[0].mxu0
        %v1794 = vadd.f32 %v235, %v1793
        %v1795 = vpop.f32.mrb[0].mxu0
        %v1796 = vadd.f32 %v235, %v1795
        %v1797 = vpop.f32.mrb[0].mxu0
        %v1798 = vpop.f32.mrb[0].mxu0
        %1799 = vdwg.mxu0
        %v1800 = vmul.f32 %v322, 0.9
        %v1801 = vmul.f32 %v323, 0.9
        %v1802 = vadd.f32 %v1800, %v1794
        %v1803 = vadd.f32 %v1801, %v1796
        %v1804 = vadd.f32 %v1802, 0.0
        %v1805 = vadd.f32 %v1803, 0.0
        %vm1806 = vcmp.ge.f32.partialorder %v1804, 1.0
        %vm1807 = vcmp.ge.f32.partialorder %v1805, 1.0
        %v1808 = vsel %vm1806, 1, 0
        %v1809 = vsel %vm1807, 1, 0
        %v1810 = vcvt.s32.f32 %v1808
        %v1811 = vcvt.s32.f32 %v1809
        %v1812 = vsub.f32 %v1804, %v1810
        %v1813 = vsub.f32 %v1805, %v1811
        %v1814 = vpack.c.bf16 %v1810, %v1810
        %v1815 = vpack.c.bf16 %v1811, %v1811
        %v1817 = vshrl.u32 %v1814, 16
        %v1820 = vshrl.u32 %v1815, 16
        %1824 = vmatprep.subr.bf16.mxu0 0
        %1825 = vmatpush1.bf16.msra.mxu0 %v463
        %1826 = vmatprep.subr.bf16.mxu0 0
        %1827 = vmatpush1.bf16.msra.mxu0 %v464
        %1828 = vmatprep.subr.bf16.mxu0 0
        %1829 = vmatpush1.bf16.msra.mxu0 %v465
        %1830 = vmatprep.subr.bf16.mxu0 0
        %1831 = vmatpush1.bf16.msra.mxu0 %v466
        %1832 = vmatprep.subr.bf16.mxu0 0
        %1833 = vmatpush1.bf16.msra.mxu0 %v467
        %1834 = vmatprep.subr.bf16.mxu0 0
        %1835 = vmatpush1.bf16.msra.mxu0 %v468
        %1836 = vmatprep.subr.bf16.mxu0 0
        %1837 = vmatpush1.bf16.msra.mxu0 %v469
        %1838 = vmatprep.subr.bf16.mxu0 0
        %1839 = vmatpush1.bf16.msra.mxu0 %v470
        %1840 = vmatprep.subr.bf16.mxu0 0
        %1841 = vmatpush1.bf16.msra.mxu0 %v471
        %1842 = vmatprep.subr.bf16.mxu0 0
        %1843 = vmatpush1.bf16.msra.mxu0 %v472
        %1844 = vmatprep.subr.bf16.mxu0 0
        %1845 = vmatpush1.bf16.msra.mxu0 %v473
        %1846 = vmatprep.subr.bf16.mxu0 0
        %1847 = vmatpush1.bf16.msra.mxu0 %v474
        %1848 = vmatprep.subr.bf16.mxu0 0
        %1849 = vmatpush1.bf16.msra.mxu0 %v475
        %1850 = vmatprep.subr.bf16.mxu0 0
        %1851 = vmatpush1.bf16.msra.mxu0 %v476
        %1852 = vmatprep.subr.bf16.mxu0 0
        %1853 = vmatpush1.bf16.msra.mxu0 %v477
        %1854 = vmatprep.subr.bf16.mxu0 0
        %1855 = vmatpush1.bf16.msra.mxu0 %v478
        %1856 = vmatprep.mubr.bf16.mxu0 %v1820
        %1857 = vmatmul.mubr.bf16.gmra.mrb[0].mxu0 %v1817
        %v1858 = vpop.f32.mrb[0].mxu0
        %v1859 = vadd.f32 0.0, %v1858
        %v1860 = vpop.f32.mrb[0].mxu0
        %v1861 = vpop.f32.mrb[0].mxu0
        %v1862 = vpop.f32.mrb[0].mxu0
        %1863 = vdwg.mxu0
        %v1864 = vrot.slane %v1817, 1
        %v1865 = vrot.slane %v1820, 1
        %1868 = vmatprep.subr.bf16.mxu0 0
        %1869 = vmatpush1.bf16.msra.mxu0 %v669
        %1870 = vmatprep.subr.bf16.mxu0 0
        %1871 = vmatpush1.bf16.msra.mxu0 %v670
        %1872 = vmatprep.subr.bf16.mxu0 0
        %1873 = vmatpush1.bf16.msra.mxu0 %v671
        %1874 = vmatprep.subr.bf16.mxu0 0
        %1875 = vmatpush1.bf16.msra.mxu0 %v672
        %1876 = vmatprep.subr.bf16.mxu0 0
        %1877 = vmatpush1.bf16.msra.mxu0 %v673
        %1878 = vmatprep.subr.bf16.mxu0 0
        %1879 = vmatpush1.bf16.msra.mxu0 %v674
        %1880 = vmatprep.subr.bf16.mxu0 0
        %1881 = vmatpush1.bf16.msra.mxu0 %v675
        %1882 = vmatprep.subr.bf16.mxu0 0
        %1883 = vmatpush1.bf16.msra.mxu0 %v676
        %1884 = vmatprep.subr.bf16.mxu0 0
        %1885 = vmatpush1.bf16.msra.mxu0 %v677
        %1886 = vmatprep.subr.bf16.mxu0 0
        %1887 = vmatpush1.bf16.msra.mxu0 %v678
        %1888 = vmatprep.subr.bf16.mxu0 0
        %1889 = vmatpush1.bf16.msra.mxu0 %v679
        %1890 = vmatprep.subr.bf16.mxu0 0
        %1891 = vmatpush1.bf16.msra.mxu0 %v680
        %1892 = vmatprep.subr.bf16.mxu0 0
        %1893 = vmatpush1.bf16.msra.mxu0 %v681
        %1894 = vmatprep.subr.bf16.mxu0 0
        %1895 = vmatpush1.bf16.msra.mxu0 %v682
        %1896 = vmatprep.subr.bf16.mxu0 0
        %1897 = vmatpush1.bf16.msra.mxu0 %v683
        %1898 = vmatprep.subr.bf16.mxu0 0
        %1899 = vmatpush1.bf16.msra.mxu0 %v684
        %1900 = vmatprep.mubr.bf16.mxu0 %v1865
        %1901 = vmatmul.mubr.bf16.gmra.mrb[0].mxu0 %v1864
        %v1902 = vpop.f32.mrb[0].mxu0
        %v1903 = vadd.f32 0.0, %v1902
        %v1904 = vpop.f32.mrb[0].mxu0
        %v1905 = vpop.f32.mrb[0].mxu0
        %v1906 = vpop.f32.mrb[0].mxu0
        %1907 = vdwg.mxu0
        %v1908 = vrot.slane %v1817, 2
        %v1909 = vrot.slane %v1820, 2
        %1912 = vmatprep.subr.bf16.mxu0 0
        %1913 = vmatpush1.bf16.msra.mxu0 %v875
        %1914 = vmatprep.subr.bf16.mxu0 0
        %1915 = vmatpush1.bf16.msra.mxu0 %v876
        %1916 = vmatprep.subr.bf16.mxu0 0
        %1917 = vmatpush1.bf16.msra.mxu0 %v877
        %1918 = vmatprep.subr.bf16.mxu0 0
        %1919 = vmatpush1.bf16.msra.mxu0 %v878
        %1920 = vmatprep.subr.bf16.mxu0 0
        %1921 = vmatpush1.bf16.msra.mxu0 %v879
        %1922 = vmatprep.subr.bf16.mxu0 0
        %1923 = vmatpush1.bf16.msra.mxu0 %v880
        %1924 = vmatprep.subr.bf16.mxu0 0
        %1925 = vmatpush1.bf16.msra.mxu0 %v881
        %1926 = vmatprep.subr.bf16.mxu0 0
        %1927 = vmatpush1.bf16.msra.mxu0 %v882
        %1928 = vmatprep.subr.bf16.mxu0 0
        %1929 = vmatpush1.bf16.msra.mxu0 %v883
        %1930 = vmatprep.subr.bf16.mxu0 0
        %1931 = vmatpush1.bf16.msra.mxu0 %v884
        %1932 = vmatprep.subr.bf16.mxu0 0
        %1933 = vmatpush1.bf16.msra.mxu0 %v885
        %1934 = vmatprep.subr.bf16.mxu0 0
        %1935 = vmatpush1.bf16.msra.mxu0 %v886
        %1936 = vmatprep.subr.bf16.mxu0 0
        %1937 = vmatpush1.bf16.msra.mxu0 %v887
        %1938 = vmatprep.subr.bf16.mxu0 0
        %1939 = vmatpush1.bf16.msra.mxu0 %v888
        %1940 = vmatprep.subr.bf16.mxu0 0
        %1941 = vmatpush1.bf16.msra.mxu0 %v889
        %1942 = vmatprep.subr.bf16.mxu0 0
        %1943 = vmatpush1.bf16.msra.mxu0 %v890
        %1944 = vmatprep.mubr.bf16.mxu0 %v1909
        %1945 = vmatmul.mubr.bf16.gmra.mrb[0].mxu0 %v1908
        %v1946 = vpop.f32.mrb[0].mxu0
        %v1947 = vadd.f32 0.0, %v1946
        %v1948 = vpop.f32.mrb[0].mxu0
        %v1949 = vpop.f32.mrb[0].mxu0
        %v1950 = vpop.f32.mrb[0].mxu0
        %1951 = vdwg.mxu0
        %v1952 = vrot.slane %v1817, 3
        %v1953 = vrot.slane %v1820, 3
        %1956 = vmatprep.subr.bf16.mxu0 0
        %1957 = vmatpush1.bf16.msra.mxu0 %v1081
        %1958 = vmatprep.subr.bf16.mxu0 0
        %1959 = vmatpush1.bf16.msra.mxu0 %v1082
        %1960 = vmatprep.subr.bf16.mxu0 0
        %1961 = vmatpush1.bf16.msra.mxu0 %v1083
        %1962 = vmatprep.subr.bf16.mxu0 0
        %1963 = vmatpush1.bf16.msra.mxu0 %v1084
        %1964 = vmatprep.subr.bf16.mxu0 0
        %1965 = vmatpush1.bf16.msra.mxu0 %v1085
        %1966 = vmatprep.subr.bf16.mxu0 0
        %1967 = vmatpush1.bf16.msra.mxu0 %v1086
        %1968 = vmatprep.subr.bf16.mxu0 0
        %1969 = vmatpush1.bf16.msra.mxu0 %v1087
        %1970 = vmatprep.subr.bf16.mxu0 0
        %1971 = vmatpush1.bf16.msra.mxu0 %v1088
        %1972 = vmatprep.subr.bf16.mxu0 0
        %1973 = vmatpush1.bf16.msra.mxu0 %v1089
        %1974 = vmatprep.subr.bf16.mxu0 0
        %1975 = vmatpush1.bf16.msra.mxu0 %v1090
        %1976 = vmatprep.subr.bf16.mxu0 0
        %1977 = vmatpush1.bf16.msra.mxu0 %v1091
        %1978 = vmatprep.subr.bf16.mxu0 0
        %1979 = vmatpush1.bf16.msra.mxu0 %v1092
        %1980 = vmatprep.subr.bf16.mxu0 0
        %1981 = vmatpush1.bf16.msra.mxu0 %v1093
        %1982 = vmatprep.subr.bf16.mxu0 0
        %1983 = vmatpush1.bf16.msra.mxu0 %v1094
        %1984 = vmatprep.subr.bf16.mxu0 0
        %1985 = vmatpush1.bf16.msra.mxu0 %v1095
        %1986 = vmatprep.subr.bf16.mxu0 0
        %1987 = vmatpush1.bf16.msra.mxu0 %v1096
        %1988 = vmatprep.mubr.bf16.mxu0 %v1953
        %1989 = vmatmul.mubr.bf16.gmra.mrb[0].mxu0 %v1952
        %v1990 = vpop.f32.mrb[0].mxu0
        %v1991 = vadd.f32 0.0, %v1990
        %v1992 = vpop.f32.mrb[0].mxu0
        %v1993 = vpop.f32.mrb[0].mxu0
        %v1994 = vpop.f32.mrb[0].mxu0
        %1995 = vdwg.mxu0
        %1996 = vmatprep.subr.bf16.mxu0 0
        %1997 = vmatpush1.bf16.msra.mxu0 %v1217
        %1998 = vmatprep.subr.bf16.mxu0 0
        %1999 = vmatpush1.bf16.msra.mxu0 %v1218
        %2000 = vmatprep.subr.bf16.mxu0 0
        %2001 = vmatpush1.bf16.msra.mxu0 %v1219
        %2002 = vmatprep.subr.bf16.mxu0 0
        %2003 = vmatpush1.bf16.msra.mxu0 %v1220
        %2004 = vmatprep.subr.bf16.mxu0 0
        %2005 = vmatpush1.bf16.msra.mxu0 %v1221
        %2006 = vmatprep.subr.bf16.mxu0 0
        %2007 = vmatpush1.bf16.msra.mxu0 %v1222
        %2008 = vmatprep.subr.bf16.mxu0 0
        %2009 = vmatpush1.bf16.msra.mxu0 %v1223
        %2010 = vmatprep.subr.bf16.mxu0 0
        %2011 = vmatpush1.bf16.msra.mxu0 %v1224
        %2012 = vmatprep.subr.bf16.mxu0 0
        %2013 = vmatpush1.bf16.msra.mxu0 %v1225
        %2014 = vmatprep.subr.bf16.mxu0 0
        %2015 = vmatpush1.bf16.msra.mxu0 %v1226
        %2016 = vmatprep.subr.bf16.mxu0 0
        %2017 = vmatpush1.bf16.msra.mxu0 %v1227
        %2018 = vmatprep.subr.bf16.mxu0 0
        %2019 = vmatpush1.bf16.msra.mxu0 %v1228
        %2020 = vmatprep.subr.bf16.mxu0 0
        %2021 = vmatpush1.bf16.msra.mxu0 %v1229
        %2022 = vmatprep.subr.bf16.mxu0 0
        %2023 = vmatpush1.bf16.msra.mxu0 %v1230
        %2024 = vmatprep.subr.bf16.mxu0 0
        %2025 = vmatpush1.bf16.msra.mxu0 %v1231
        %2026 = vmatprep.subr.bf16.mxu0 0
        %2027 = vmatpush1.bf16.msra.mxu0 %v1232
        %2028 = vmatprep.mubr.bf16.mxu0 %v1815
        %2029 = vmatmul.mubr.bf16.gmra.mrb[0].mxu0 %v1814
        %v2030 = vpop.f32.mrb[0].mxu0
        %v2031 = vadd.f32 %v1859, %v2030
        %v2032 = vpop.f32.mrb[0].mxu0
        %v2033 = vpop.f32.mrb[0].mxu0
        %v2034 = vpop.f32.mrb[0].mxu0
        %2035 = vdwg.mxu0
        %v2038 = vrot.slane %v1814, 1
        %v2039 = vrot.slane %v1815, 1
        %2042 = vmatprep.subr.bf16.mxu0 0
        %2043 = vmatpush1.bf16.msra.mxu0 %v1359
        %2044 = vmatprep.subr.bf16.mxu0 0
        %2045 = vmatpush1.bf16.msra.mxu0 %v1360
        %2046 = vmatprep.subr.bf16.mxu0 0
        %2047 = vmatpush1.bf16.msra.mxu0 %v1361
        %2048 = vmatprep.subr.bf16.mxu0 0
        %2049 = vmatpush1.bf16.msra.mxu0 %v1362
        %2050 = vmatprep.subr.bf16.mxu0 0
        %2051 = vmatpush1.bf16.msra.mxu0 %v1363
        %2052 = vmatprep.subr.bf16.mxu0 0
        %2053 = vmatpush1.bf16.msra.mxu0 %v1364
        %2054 = vmatprep.subr.bf16.mxu0 0
        %2055 = vmatpush1.bf16.msra.mxu0 %v1365
        %2056 = vmatprep.subr.bf16.mxu0 0
        %2057 = vmatpush1.bf16.msra.mxu0 %v1366
        %2058 = vmatprep.subr.bf16.mxu0 0
        %2059 = vmatpush1.bf16.msra.mxu0 %v1367
        %2060 = vmatprep.subr.bf16.mxu0 0
        %2061 = vmatpush1.bf16.msra.mxu0 %v1368
        %2062 = vmatprep.subr.bf16.mxu0 0
        %2063 = vmatpush1.bf16.msra.mxu0 %v1369
        %2064 = vmatprep.subr.bf16.mxu0 0
        %2065 = vmatpush1.bf16.msra.mxu0 %v1370
        %2066 = vmatprep.subr.bf16.mxu0 0
        %2067 = vmatpush1.bf16.msra.mxu0 %v1371
        %2068 = vmatprep.subr.bf16.mxu0 0
        %2069 = vmatpush1.bf16.msra.mxu0 %v1372
        %2070 = vmatprep.subr.bf16.mxu0 0
        %2071 = vmatpush1.bf16.msra.mxu0 %v1373
        %2072 = vmatprep.subr.bf16.mxu0 0
        %2073 = vmatpush1.bf16.msra.mxu0 %v1374
        %2074 = vmatprep.mubr.bf16.mxu0 %v2039
        %2075 = vmatmul.mubr.bf16.gmra.mrb[0].mxu0 %v2038
        %v2076 = vpop.f32.mrb[0].mxu0
        %v2077 = vadd.f32 %v1903, %v2076
        %v2078 = vpop.f32.mrb[0].mxu0
        %v2079 = vpop.f32.mrb[0].mxu0
        %v2080 = vpop.f32.mrb[0].mxu0
        %2081 = vdwg.mxu0
        %v2082 = vrot.slane %v1814, 2
        %v2083 = vrot.slane %v1815, 2
        %2086 = vmatprep.subr.bf16.mxu0 0
        %2087 = vmatpush1.bf16.msra.mxu0 %v1499
        %2088 = vmatprep.subr.bf16.mxu0 0
        %2089 = vmatpush1.bf16.msra.mxu0 %v1500
        %2090 = vmatprep.subr.bf16.mxu0 0
        %2091 = vmatpush1.bf16.msra.mxu0 %v1501
        %2092 = vmatprep.subr.bf16.mxu0 0
        %2093 = vmatpush1.bf16.msra.mxu0 %v1502
        %2094 = vmatprep.subr.bf16.mxu0 0
        %2095 = vmatpush1.bf16.msra.mxu0 %v1503
        %2096 = vmatprep.subr.bf16.mxu0 0
        %2097 = vmatpush1.bf16.msra.mxu0 %v1504
        %2098 = vmatprep.subr.bf16.mxu0 0
        %2099 = vmatpush1.bf16.msra.mxu0 %v1505
        %2100 = vmatprep.subr.bf16.mxu0 0
        %2101 = vmatpush1.bf16.msra.mxu0 %v1506
        %2102 = vmatprep.subr.bf16.mxu0 0
        %2103 = vmatpush1.bf16.msra.mxu0 %v1507
        %2104 = vmatprep.subr.bf16.mxu0 0
        %2105 = vmatpush1.bf16.msra.mxu0 %v1508
        %2106 = vmatprep.subr.bf16.mxu0 0
        %2107 = vmatpush1.bf16.msra.mxu0 %v1509
        %2108 = vmatprep.subr.bf16.mxu0 0
        %2109 = vmatpush1.bf16.msra.mxu0 %v1510
        %2110 = vmatprep.subr.bf16.mxu0 0
        %2111 = vmatpush1.bf16.msra.mxu0 %v1511
        %2112 = vmatprep.subr.bf16.mxu0 0
        %2113 = vmatpush1.bf16.msra.mxu0 %v1512
        %2114 = vmatprep.subr.bf16.mxu0 0
        %2115 = vmatpush1.bf16.msra.mxu0 %v1513
        %2116 = vmatprep.subr.bf16.mxu0 0
        %2117 = vmatpush1.bf16.msra.mxu0 %v1514
        %2118 = vmatprep.mubr.bf16.mxu0 %v2083
        %2119 = vmatmul.mubr.bf16.gmra.mrb[0].mxu0 %v2082
        %v2120 = vpop.f32.mrb[0].mxu0
        %v2121 = vadd.f32 %v1947, %v2120
        %v2122 = vpop.f32.mrb[0].mxu0
        %v2123 = vpop.f32.mrb[0].mxu0
        %v2124 = vpop.f32.mrb[0].mxu0
        %2125 = vdwg.mxu0
        %v2126 = vrot.slane %v1814, 3
        %v2127 = vrot.slane %v1815, 3
        %2130 = vmatprep.subr.bf16.mxu0 0
        %2131 = vmatpush1.bf16.msra.mxu0 %v1639
        %2132 = vmatprep.subr.bf16.mxu0 0
        %2133 = vmatpush1.bf16.msra.mxu0 %v1640
        %2134 = vmatprep.subr.bf16.mxu0 0
        %2135 = vmatpush1.bf16.msra.mxu0 %v1641
        %2136 = vmatprep.subr.bf16.mxu0 0
        %2137 = vmatpush1.bf16.msra.mxu0 %v1642
        %2138 = vmatprep.subr.bf16.mxu0 0
        %2139 = vmatpush1.bf16.msra.mxu0 %v1643
        %2140 = vmatprep.subr.bf16.mxu0 0
        %2141 = vmatpush1.bf16.msra.mxu0 %v1644
        %2142 = vmatprep.subr.bf16.mxu0 0
        %2143 = vmatpush1.bf16.msra.mxu0 %v1645
        %2144 = vmatprep.subr.bf16.mxu0 0
        %2145 = vmatpush1.bf16.msra.mxu0 %v1646
        %2146 = vmatprep.subr.bf16.mxu0 0
        %2147 = vmatpush1.bf16.msra.mxu0 %v1647
        %2148 = vmatprep.subr.bf16.mxu0 0
        %2149 = vmatpush1.bf16.msra.mxu0 %v1648
        %2150 = vmatprep.subr.bf16.mxu0 0
        %2151 = vmatpush1.bf16.msra.mxu0 %v1649
        %2152 = vmatprep.subr.bf16.mxu0 0
        %2153 = vmatpush1.bf16.msra.mxu0 %v1650
        %2154 = vmatprep.subr.bf16.mxu0 0
        %2155 = vmatpush1.bf16.msra.mxu0 %v1651
        %2156 = vmatprep.subr.bf16.mxu0 0
        %2157 = vmatpush1.bf16.msra.mxu0 %v1652
        %2158 = vmatprep.subr.bf16.mxu0 0
        %2159 = vmatpush1.bf16.msra.mxu0 %v1653
        %2160 = vmatprep.subr.bf16.mxu0 0
        %2161 = vmatpush1.bf16.msra.mxu0 %v1654
        %2162 = vmatprep.mubr.bf16.mxu0 %v2127
        %2163 = vmatmul.mubr.bf16.gmra.mrb[0].mxu0 %v2126
        %v2164 = vpop.f32.mrb[0].mxu0
        %v2165 = vadd.f32 %v1991, %v2164
        %v2166 = vpop.f32.mrb[0].mxu0
        %v2167 = vpop.f32.mrb[0].mxu0
        %v2168 = vpop.f32.mrb[0].mxu0
        %2169 = vdwg.mxu0
        %v2170 = vadd.f32 %v2031, %v2077
        %v2171 = vadd.f32 %v2121, %v2165
        %v2172 = vadd.f32 %v2170, %v2171
        %v2173 = vadd.f32 %v2172, %v225
        %v2174 = vmul.f32 %v1720, 0.9
        %v2175 = vadd.f32 %v2174, %v2173
        %v2176 = vadd.f32 %v2175, 0.0
        %vm2177 = vcmp.ge.f32.partialorder %v2176, 1.0
        %v2178 = vsel %vm2177, 1, 0
        %v2179 = vcvt.s32.f32 %v2178
        %v2180 = vsub.f32 %v2176, %v2179
        %v2181 = vadd.f32 %v1721, %v2179
        %s2182 = scalar_lea.vmem %s221, 96
        %v2183 = vld [vmem:[%s2182] sm:$0xff]
        %v2184 = vld [vmem:[%s2182 + $0x8] sm:$0xff]
        %v2185 = vld [vmem:[%s2182 + $0x10] sm:$0xff]
        %v2186 = vld [vmem:[%s2182 + $0x18] sm:$0xff]
        %v2187 = vld [vmem:[%s2182 + $0x20] sm:$0xff]
        %v2188 = vld [vmem:[%s2182 + $0x28] sm:$0xff]
        %v2195 = vunpack.c.l.b16 %v2183
        %v2196 = vunpack.c.h.b16 %v2183
        %v2197 = vunpack.c.l.b16 %v2184
        %v2198 = vunpack.c.h.b16 %v2184
        %v2199 = vunpack.c.l.b16 %v2185
        %v2200 = vunpack.c.h.b16 %v2185
        %v2201 = vunpack.c.l.b16 %v2186
        %v2202 = vunpack.c.h.b16 %v2186
        %v2203 = vunpack.c.l.b16 %v2187
        %v2204 = vunpack.c.h.b16 %v2187
        %v2205 = vunpack.c.l.b16 %v2188
        %v2206 = vunpack.c.h.b16 %v2188
        %v2207 = vpack.c.b16 %v2197, %v2195
        %v2208 = vpack.c.b16 %v2198, %v2196
        %v2209 = vpack.c.b16 %v2201, %v2199
        %v2210 = vpack.c.b16 %v2202, %v2200
        %v2211 = vpack.c.b16 %v2205, %v2203
        %v2212 = vpack.c.b16 %v2206, %v2204
        %2219 = vmatprep.subr.bf16.mxu0 %v2208
        %2220 = vmatpush1.bf16.msra.mxu0 %v2207
        %2221 = vmatprep.subr.bf16.mxu0 %v2210
        %2222 = vmatpush1.bf16.msra.mxu0 %v2209
        %2223 = vmatprep.subr.bf16.mxu0 %v2212
        %2224 = vmatpush1.bf16.msra.mxu0 %v2211
        %2225 = vmatprep.subr.bf16.mxu0 0
        %2226 = vmatpush1.bf16.msra.mxu0 0
        %2227 = vmatprep.subr.bf16.mxu0 0
        %2228 = vmatpush1.bf16.msra.mxu0 0
        %2229 = vmatprep.subr.bf16.mxu0 0
        %2230 = vmatpush1.bf16.msra.mxu0 0
        %2231 = vmatprep.subr.bf16.mxu0 0
        %2232 = vmatpush1.bf16.msra.mxu0 0
        %2233 = vmatprep.subr.bf16.mxu0 0
        %2234 = vmatpush1.bf16.msra.mxu0 0
        %2235 = vmatprep.subr.bf16.mxu0 0
        %2236 = vmatpush1.bf16.msra.mxu0 0
        %2237 = vmatprep.subr.bf16.mxu0 0
        %2238 = vmatpush1.bf16.msra.mxu0 0
        %2239 = vmatprep.subr.bf16.mxu0 0
        %2240 = vmatpush1.bf16.msra.mxu0 0
        %2241 = vmatprep.subr.bf16.mxu0 0
        %2242 = vmatpush1.bf16.msra.mxu0 0
        %2243 = vmatprep.subr.bf16.mxu0 0
        %2244 = vmatpush1.bf16.msra.mxu0 0
        %2245 = vmatprep.subr.bf16.mxu0 0
        %2246 = vmatpush1.bf16.msra.mxu0 0
        %2247 = vmatprep.subr.bf16.mxu0 0
        %2248 = vmatpush1.bf16.msra.mxu0 0
        %2249 = vmatprep.subr.bf16.mxu0 0
        %2250 = vmatpush1.bf16.msra.mxu0 0
        %2251 = vmatprep.mubr.bf16.mxu0 0
        %2252 = vmatmul.mubr.bf16.gmra.mrb[0].mxu0 %v269
        %v2253 = vpop.f32.mrb[0].mxu0
        %v2254 = vadd.f32 %v235, %v2253
        %v2255 = vpop.f32.mrb[0].mxu0
        %v2256 = vadd.f32 %v235, %v2255
        %v2257 = vpop.f32.mrb[0].mxu0
        %v2258 = vpop.f32.mrb[0].mxu0
        %2259 = vdwg.mxu0
        %v2260 = vmul.f32 %v1812, 0.9
        %v2261 = vmul.f32 %v1813, 0.9
        %v2262 = vadd.f32 %v2260, %v2254
        %v2263 = vadd.f32 %v2261, %v2256
        %v2264 = vadd.f32 %v2262, 0.0
        %v2265 = vadd.f32 %v2263, 0.0
        %vm2266 = vcmp.ge.f32.partialorder %v2264, 1.0
        %vm2267 = vcmp.ge.f32.partialorder %v2265, 1.0
        %v2268 = vsel %vm2266, 1, 0
        %v2269 = vsel %vm2267, 1, 0
        %v2270 = vcvt.s32.f32 %v2268
        %v2271 = vcvt.s32.f32 %v2269
        %v2272 = vsub.f32 %v2264, %v2270
        %v2273 = vsub.f32 %v2265, %v2271
        %v2274 = vpack.c.bf16 %v2270, %v2270
        %v2275 = vpack.c.bf16 %v2271, %v2271
        %v2277 = vshrl.u32 %v2274, 16
        %v2280 = vshrl.u32 %v2275, 16
        %2284 = vmatprep.subr.bf16.mxu0 0
        %2285 = vmatpush1.bf16.msra.mxu0 %v463
        %2286 = vmatprep.subr.bf16.mxu0 0
        %2287 = vmatpush1.bf16.msra.mxu0 %v464
        %2288 = vmatprep.subr.bf16.mxu0 0
        %2289 = vmatpush1.bf16.msra.mxu0 %v465
        %2290 = vmatprep.subr.bf16.mxu0 0
        %2291 = vmatpush1.bf16.msra.mxu0 %v466
        %2292 = vmatprep.subr.bf16.mxu0 0
        %2293 = vmatpush1.bf16.msra.mxu0 %v467
        %2294 = vmatprep.subr.bf16.mxu0 0
        %2295 = vmatpush1.bf16.msra.mxu0 %v468
        %2296 = vmatprep.subr.bf16.mxu0 0
        %2297 = vmatpush1.bf16.msra.mxu0 %v469
        %2298 = vmatprep.subr.bf16.mxu0 0
        %2299 = vmatpush1.bf16.msra.mxu0 %v470
        %2300 = vmatprep.subr.bf16.mxu0 0
        %2301 = vmatpush1.bf16.msra.mxu0 %v471
        %2302 = vmatprep.subr.bf16.mxu0 0
        %2303 = vmatpush1.bf16.msra.mxu0 %v472
        %2304 = vmatprep.subr.bf16.mxu0 0
        %2305 = vmatpush1.bf16.msra.mxu0 %v473
        %2306 = vmatprep.subr.bf16.mxu0 0
        %2307 = vmatpush1.bf16.msra.mxu0 %v474
        %2308 = vmatprep.subr.bf16.mxu0 0
        %2309 = vmatpush1.bf16.msra.mxu0 %v475
        %2310 = vmatprep.subr.bf16.mxu0 0
        %2311 = vmatpush1.bf16.msra.mxu0 %v476
        %2312 = vmatprep.subr.bf16.mxu0 0
        %2313 = vmatpush1.bf16.msra.mxu0 %v477
        %2314 = vmatprep.subr.bf16.mxu0 0
        %2315 = vmatpush1.bf16.msra.mxu0 %v478
        %2316 = vmatprep.mubr.bf16.mxu0 %v2280
        %2317 = vmatmul.mubr.bf16.gmra.mrb[0].mxu0 %v2277
        %v2318 = vpop.f32.mrb[0].mxu0
        %v2319 = vadd.f32 0.0, %v2318
        %v2320 = vpop.f32.mrb[0].mxu0
        %v2321 = vpop.f32.mrb[0].mxu0
        %v2322 = vpop.f32.mrb[0].mxu0
        %2323 = vdwg.mxu0
        %v2324 = vrot.slane %v2277, 1
        %v2325 = vrot.slane %v2280, 1
        %2328 = vmatprep.subr.bf16.mxu0 0
        %2329 = vmatpush1.bf16.msra.mxu0 %v669
        %2330 = vmatprep.subr.bf16.mxu0 0
        %2331 = vmatpush1.bf16.msra.mxu0 %v670
        %2332 = vmatprep.subr.bf16.mxu0 0
        %2333 = vmatpush1.bf16.msra.mxu0 %v671
        %2334 = vmatprep.subr.bf16.mxu0 0
        %2335 = vmatpush1.bf16.msra.mxu0 %v672
        %2336 = vmatprep.subr.bf16.mxu0 0
        %2337 = vmatpush1.bf16.msra.mxu0 %v673
        %2338 = vmatprep.subr.bf16.mxu0 0
        %2339 = vmatpush1.bf16.msra.mxu0 %v674
        %2340 = vmatprep.subr.bf16.mxu0 0
        %2341 = vmatpush1.bf16.msra.mxu0 %v675
        %2342 = vmatprep.subr.bf16.mxu0 0
        %2343 = vmatpush1.bf16.msra.mxu0 %v676
        %2344 = vmatprep.subr.bf16.mxu0 0
        %2345 = vmatpush1.bf16.msra.mxu0 %v677
        %2346 = vmatprep.subr.bf16.mxu0 0
        %2347 = vmatpush1.bf16.msra.mxu0 %v678
        %2348 = vmatprep.subr.bf16.mxu0 0
        %2349 = vmatpush1.bf16.msra.mxu0 %v679
        %2350 = vmatprep.subr.bf16.mxu0 0
        %2351 = vmatpush1.bf16.msra.mxu0 %v680
        %2352 = vmatprep.subr.bf16.mxu0 0
        %2353 = vmatpush1.bf16.msra.mxu0 %v681
        %2354 = vmatprep.subr.bf16.mxu0 0
        %2355 = vmatpush1.bf16.msra.mxu0 %v682
        %2356 = vmatprep.subr.bf16.mxu0 0
        %2357 = vmatpush1.bf16.msra.mxu0 %v683
        %2358 = vmatprep.subr.bf16.mxu0 0
        %2359 = vmatpush1.bf16.msra.mxu0 %v684
        %2360 = vmatprep.mubr.bf16.mxu0 %v2325
        %2361 = vmatmul.mubr.bf16.gmra.mrb[0].mxu0 %v2324
        %v2362 = vpop.f32.mrb[0].mxu0
        %v2363 = vadd.f32 0.0, %v2362
        %v2364 = vpop.f32.mrb[0].mxu0
        %v2365 = vpop.f32.mrb[0].mxu0
        %v2366 = vpop.f32.mrb[0].mxu0
        %2367 = vdwg.mxu0
        %v2368 = vrot.slane %v2277, 2
        %v2369 = vrot.slane %v2280, 2
        %2372 = vmatprep.subr.bf16.mxu0 0
        %2373 = vmatpush1.bf16.msra.mxu0 %v875
        %2374 = vmatprep.subr.bf16.mxu0 0
        %2375 = vmatpush1.bf16.msra.mxu0 %v876
        %2376 = vmatprep.subr.bf16.mxu0 0
        %2377 = vmatpush1.bf16.msra.mxu0 %v877
        %2378 = vmatprep.subr.bf16.mxu0 0
        %2379 = vmatpush1.bf16.msra.mxu0 %v878
        %2380 = vmatprep.subr.bf16.mxu0 0
        %2381 = vmatpush1.bf16.msra.mxu0 %v879
        %2382 = vmatprep.subr.bf16.mxu0 0
        %2383 = vmatpush1.bf16.msra.mxu0 %v880
        %2384 = vmatprep.subr.bf16.mxu0 0
        %2385 = vmatpush1.bf16.msra.mxu0 %v881
        %2386 = vmatprep.subr.bf16.mxu0 0
        %2387 = vmatpush1.bf16.msra.mxu0 %v882
        %2388 = vmatprep.subr.bf16.mxu0 0
        %2389 = vmatpush1.bf16.msra.mxu0 %v883
        %2390 = vmatprep.subr.bf16.mxu0 0
        %2391 = vmatpush1.bf16.msra.mxu0 %v884
        %2392 = vmatprep.subr.bf16.mxu0 0
        %2393 = vmatpush1.bf16.msra.mxu0 %v885
        %2394 = vmatprep.subr.bf16.mxu0 0
        %2395 = vmatpush1.bf16.msra.mxu0 %v886
        %2396 = vmatprep.subr.bf16.mxu0 0
        %2397 = vmatpush1.bf16.msra.mxu0 %v887
        %2398 = vmatprep.subr.bf16.mxu0 0
        %2399 = vmatpush1.bf16.msra.mxu0 %v888
        %2400 = vmatprep.subr.bf16.mxu0 0
        %2401 = vmatpush1.bf16.msra.mxu0 %v889
        %2402 = vmatprep.subr.bf16.mxu0 0
        %2403 = vmatpush1.bf16.msra.mxu0 %v890
        %2404 = vmatprep.mubr.bf16.mxu0 %v2369
        %2405 = vmatmul.mubr.bf16.gmra.mrb[0].mxu0 %v2368
        %v2406 = vpop.f32.mrb[0].mxu0
        %v2407 = vadd.f32 0.0, %v2406
        %v2408 = vpop.f32.mrb[0].mxu0
        %v2409 = vpop.f32.mrb[0].mxu0
        %v2410 = vpop.f32.mrb[0].mxu0
        %2411 = vdwg.mxu0
        %v2412 = vrot.slane %v2277, 3
        %v2413 = vrot.slane %v2280, 3
        %2416 = vmatprep.subr.bf16.mxu0 0
        %2417 = vmatpush1.bf16.msra.mxu0 %v1081
        %2418 = vmatprep.subr.bf16.mxu0 0
        %2419 = vmatpush1.bf16.msra.mxu0 %v1082
        %2420 = vmatprep.subr.bf16.mxu0 0
        %2421 = vmatpush1.bf16.msra.mxu0 %v1083
        %2422 = vmatprep.subr.bf16.mxu0 0
        %2423 = vmatpush1.bf16.msra.mxu0 %v1084
        %2424 = vmatprep.subr.bf16.mxu0 0
        %2425 = vmatpush1.bf16.msra.mxu0 %v1085
        %2426 = vmatprep.subr.bf16.mxu0 0
        %2427 = vmatpush1.bf16.msra.mxu0 %v1086
        %2428 = vmatprep.subr.bf16.mxu0 0
        %2429 = vmatpush1.bf16.msra.mxu0 %v1087
        %2430 = vmatprep.subr.bf16.mxu0 0
        %2431 = vmatpush1.bf16.msra.mxu0 %v1088
        %2432 = vmatprep.subr.bf16.mxu0 0
        %2433 = vmatpush1.bf16.msra.mxu0 %v1089
        %2434 = vmatprep.subr.bf16.mxu0 0
        %2435 = vmatpush1.bf16.msra.mxu0 %v1090
        %2436 = vmatprep.subr.bf16.mxu0 0
        %2437 = vmatpush1.bf16.msra.mxu0 %v1091
        %2438 = vmatprep.subr.bf16.mxu0 0
        %2439 = vmatpush1.bf16.msra.mxu0 %v1092
        %2440 = vmatprep.subr.bf16.mxu0 0
        %2441 = vmatpush1.bf16.msra.mxu0 %v1093
        %2442 = vmatprep.subr.bf16.mxu0 0
        %2443 = vmatpush1.bf16.msra.mxu0 %v1094
        %2444 = vmatprep.subr.bf16.mxu0 0
        %2445 = vmatpush1.bf16.msra.mxu0 %v1095
        %2446 = vmatprep.subr.bf16.mxu0 0
        %2447 = vmatpush1.bf16.msra.mxu0 %v1096
        %2448 = vmatprep.mubr.bf16.mxu0 %v2413
        %2449 = vmatmul.mubr.bf16.gmra.mrb[0].mxu0 %v2412
        %v2450 = vpop.f32.mrb[0].mxu0
        %v2451 = vadd.f32 0.0, %v2450
        %v2452 = vpop.f32.mrb[0].mxu0
        %v2453 = vpop.f32.mrb[0].mxu0
        %v2454 = vpop.f32.mrb[0].mxu0
        %2455 = vdwg.mxu0
        %2456 = vmatprep.subr.bf16.mxu0 0
        %2457 = vmatpush1.bf16.msra.mxu0 %v1217
        %2458 = vmatprep.subr.bf16.mxu0 0
        %2459 = vmatpush1.bf16.msra.mxu0 %v1218
        %2460 = vmatprep.subr.bf16.mxu0 0
        %2461 = vmatpush1.bf16.msra.mxu0 %v1219
        %2462 = vmatprep.subr.bf16.mxu0 0
        %2463 = vmatpush1.bf16.msra.mxu0 %v1220
        %2464 = vmatprep.subr.bf16.mxu0 0
        %2465 = vmatpush1.bf16.msra.mxu0 %v1221
        %2466 = vmatprep.subr.bf16.mxu0 0
        %2467 = vmatpush1.bf16.msra.mxu0 %v1222
        %2468 = vmatprep.subr.bf16.mxu0 0
        %2469 = vmatpush1.bf16.msra.mxu0 %v1223
        %2470 = vmatprep.subr.bf16.mxu0 0
        %2471 = vmatpush1.bf16.msra.mxu0 %v1224
        %2472 = vmatprep.subr.bf16.mxu0 0
        %2473 = vmatpush1.bf16.msra.mxu0 %v1225
        %2474 = vmatprep.subr.bf16.mxu0 0
        %2475 = vmatpush1.bf16.msra.mxu0 %v1226
        %2476 = vmatprep.subr.bf16.mxu0 0
        %2477 = vmatpush1.bf16.msra.mxu0 %v1227
        %2478 = vmatprep.subr.bf16.mxu0 0
        %2479 = vmatpush1.bf16.msra.mxu0 %v1228
        %2480 = vmatprep.subr.bf16.mxu0 0
        %2481 = vmatpush1.bf16.msra.mxu0 %v1229
        %2482 = vmatprep.subr.bf16.mxu0 0
        %2483 = vmatpush1.bf16.msra.mxu0 %v1230
        %2484 = vmatprep.subr.bf16.mxu0 0
        %2485 = vmatpush1.bf16.msra.mxu0 %v1231
        %2486 = vmatprep.subr.bf16.mxu0 0
        %2487 = vmatpush1.bf16.msra.mxu0 %v1232
        %2488 = vmatprep.mubr.bf16.mxu0 %v2275
        %2489 = vmatmul.mubr.bf16.gmra.mrb[0].mxu0 %v2274
        %v2490 = vpop.f32.mrb[0].mxu0
        %v2491 = vadd.f32 %v2319, %v2490
        %v2492 = vpop.f32.mrb[0].mxu0
        %v2493 = vpop.f32.mrb[0].mxu0
        %v2494 = vpop.f32.mrb[0].mxu0
        %2495 = vdwg.mxu0
        %v2498 = vrot.slane %v2274, 1
        %v2499 = vrot.slane %v2275, 1
        %2502 = vmatprep.subr.bf16.mxu0 0
        %2503 = vmatpush1.bf16.msra.mxu0 %v1359
        %2504 = vmatprep.subr.bf16.mxu0 0
        %2505 = vmatpush1.bf16.msra.mxu0 %v1360
        %2506 = vmatprep.subr.bf16.mxu0 0
        %2507 = vmatpush1.bf16.msra.mxu0 %v1361
        %2508 = vmatprep.subr.bf16.mxu0 0
        %2509 = vmatpush1.bf16.msra.mxu0 %v1362
        %2510 = vmatprep.subr.bf16.mxu0 0
        %2511 = vmatpush1.bf16.msra.mxu0 %v1363
        %2512 = vmatprep.subr.bf16.mxu0 0
        %2513 = vmatpush1.bf16.msra.mxu0 %v1364
        %2514 = vmatprep.subr.bf16.mxu0 0
        %2515 = vmatpush1.bf16.msra.mxu0 %v1365
        %2516 = vmatprep.subr.bf16.mxu0 0
        %2517 = vmatpush1.bf16.msra.mxu0 %v1366
        %2518 = vmatprep.subr.bf16.mxu0 0
        %2519 = vmatpush1.bf16.msra.mxu0 %v1367
        %2520 = vmatprep.subr.bf16.mxu0 0
        %2521 = vmatpush1.bf16.msra.mxu0 %v1368
        %2522 = vmatprep.subr.bf16.mxu0 0
        %2523 = vmatpush1.bf16.msra.mxu0 %v1369
        %2524 = vmatprep.subr.bf16.mxu0 0
        %2525 = vmatpush1.bf16.msra.mxu0 %v1370
        %2526 = vmatprep.subr.bf16.mxu0 0
        %2527 = vmatpush1.bf16.msra.mxu0 %v1371
        %2528 = vmatprep.subr.bf16.mxu0 0
        %2529 = vmatpush1.bf16.msra.mxu0 %v1372
        %2530 = vmatprep.subr.bf16.mxu0 0
        %2531 = vmatpush1.bf16.msra.mxu0 %v1373
        %2532 = vmatprep.subr.bf16.mxu0 0
        %2533 = vmatpush1.bf16.msra.mxu0 %v1374
        %2534 = vmatprep.mubr.bf16.mxu0 %v2499
        %2535 = vmatmul.mubr.bf16.gmra.mrb[0].mxu0 %v2498
        %v2536 = vpop.f32.mrb[0].mxu0
        %v2537 = vadd.f32 %v2363, %v2536
        %v2538 = vpop.f32.mrb[0].mxu0
        %v2539 = vpop.f32.mrb[0].mxu0
        %v2540 = vpop.f32.mrb[0].mxu0
        %2541 = vdwg.mxu0
        %v2542 = vrot.slane %v2274, 2
        %v2543 = vrot.slane %v2275, 2
        %2546 = vmatprep.subr.bf16.mxu0 0
        %2547 = vmatpush1.bf16.msra.mxu0 %v1499
        %2548 = vmatprep.subr.bf16.mxu0 0
        %2549 = vmatpush1.bf16.msra.mxu0 %v1500
        %2550 = vmatprep.subr.bf16.mxu0 0
        %2551 = vmatpush1.bf16.msra.mxu0 %v1501
        %2552 = vmatprep.subr.bf16.mxu0 0
        %2553 = vmatpush1.bf16.msra.mxu0 %v1502
        %2554 = vmatprep.subr.bf16.mxu0 0
        %2555 = vmatpush1.bf16.msra.mxu0 %v1503
        %2556 = vmatprep.subr.bf16.mxu0 0
        %2557 = vmatpush1.bf16.msra.mxu0 %v1504
        %2558 = vmatprep.subr.bf16.mxu0 0
        %2559 = vmatpush1.bf16.msra.mxu0 %v1505
        %2560 = vmatprep.subr.bf16.mxu0 0
        %2561 = vmatpush1.bf16.msra.mxu0 %v1506
        %2562 = vmatprep.subr.bf16.mxu0 0
        %2563 = vmatpush1.bf16.msra.mxu0 %v1507
        %2564 = vmatprep.subr.bf16.mxu0 0
        %2565 = vmatpush1.bf16.msra.mxu0 %v1508
        %2566 = vmatprep.subr.bf16.mxu0 0
        %2567 = vmatpush1.bf16.msra.mxu0 %v1509
        %2568 = vmatprep.subr.bf16.mxu0 0
        %2569 = vmatpush1.bf16.msra.mxu0 %v1510
        %2570 = vmatprep.subr.bf16.mxu0 0
        %2571 = vmatpush1.bf16.msra.mxu0 %v1511
        %2572 = vmatprep.subr.bf16.mxu0 0
        %2573 = vmatpush1.bf16.msra.mxu0 %v1512
        %2574 = vmatprep.subr.bf16.mxu0 0
        %2575 = vmatpush1.bf16.msra.mxu0 %v1513
        %2576 = vmatprep.subr.bf16.mxu0 0
        %2577 = vmatpush1.bf16.msra.mxu0 %v1514
        %2578 = vmatprep.mubr.bf16.mxu0 %v2543
        %2579 = vmatmul.mubr.bf16.gmra.mrb[0].mxu0 %v2542
        %v2580 = vpop.f32.mrb[0].mxu0
        %v2581 = vadd.f32 %v2407, %v2580
        %v2582 = vpop.f32.mrb[0].mxu0
        %v2583 = vpop.f32.mrb[0].mxu0
        %v2584 = vpop.f32.mrb[0].mxu0
        %2585 = vdwg.mxu0
        %v2586 = vrot.slane %v2274, 3
        %v2587 = vrot.slane %v2275, 3
        %2590 = vmatprep.subr.bf16.mxu0 0
        %2591 = vmatpush1.bf16.msra.mxu0 %v1639
        %2592 = vmatprep.subr.bf16.mxu0 0
        %2593 = vmatpush1.bf16.msra.mxu0 %v1640
        %2594 = vmatprep.subr.bf16.mxu0 0
        %2595 = vmatpush1.bf16.msra.mxu0 %v1641
        %2596 = vmatprep.subr.bf16.mxu0 0
        %2597 = vmatpush1.bf16.msra.mxu0 %v1642
        %2598 = vmatprep.subr.bf16.mxu0 0
        %2599 = vmatpush1.bf16.msra.mxu0 %v1643
        %2600 = vmatprep.subr.bf16.mxu0 0
        %2601 = vmatpush1.bf16.msra.mxu0 %v1644
        %2602 = vmatprep.subr.bf16.mxu0 0
        %2603 = vmatpush1.bf16.msra.mxu0 %v1645
        %2604 = vmatprep.subr.bf16.mxu0 0
        %2605 = vmatpush1.bf16.msra.mxu0 %v1646
        %2606 = vmatprep.subr.bf16.mxu0 0
        %2607 = vmatpush1.bf16.msra.mxu0 %v1647
        %2608 = vmatprep.subr.bf16.mxu0 0
        %2609 = vmatpush1.bf16.msra.mxu0 %v1648
        %2610 = vmatprep.subr.bf16.mxu0 0
        %2611 = vmatpush1.bf16.msra.mxu0 %v1649
        %2612 = vmatprep.subr.bf16.mxu0 0
        %2613 = vmatpush1.bf16.msra.mxu0 %v1650
        %2614 = vmatprep.subr.bf16.mxu0 0
        %2615 = vmatpush1.bf16.msra.mxu0 %v1651
        %2616 = vmatprep.subr.bf16.mxu0 0
        %2617 = vmatpush1.bf16.msra.mxu0 %v1652
        %2618 = vmatprep.subr.bf16.mxu0 0
        %2619 = vmatpush1.bf16.msra.mxu0 %v1653
        %2620 = vmatprep.subr.bf16.mxu0 0
        %2621 = vmatpush1.bf16.msra.mxu0 %v1654
        %2622 = vmatprep.mubr.bf16.mxu0 %v2587
        %2623 = vmatmul.mubr.bf16.gmra.mrb[0].mxu0 %v2586
        %v2624 = vpop.f32.mrb[0].mxu0
        %v2625 = vadd.f32 %v2451, %v2624
        %v2626 = vpop.f32.mrb[0].mxu0
        %v2627 = vpop.f32.mrb[0].mxu0
        %v2628 = vpop.f32.mrb[0].mxu0
        %2629 = vdwg.mxu0
        %v2630 = vadd.f32 %v2491, %v2537
        %v2631 = vadd.f32 %v2581, %v2625
        %v2632 = vadd.f32 %v2630, %v2631
        %v2633 = vadd.f32 %v2632, %v225
        %v2634 = vmul.f32 %v2180, 0.9
        %v2635 = vadd.f32 %v2634, %v2633
        %v2636 = vadd.f32 %v2635, 0.0
        %vm2637 = vcmp.ge.f32.partialorder %v2636, 1.0
        %v2638 = vsel %vm2637, 1, 0
        %v2639 = vcvt.s32.f32 %v2638
        %v2640 = vsub.f32 %v2636, %v2639
        %v2641 = vadd.f32 %v2181, %v2639
        %s2642 = scalar_lea.vmem %s221, 144
        %v2643 = vld [vmem:[%s2642] sm:$0xff]
        %v2644 = vld [vmem:[%s2642 + $0x8] sm:$0xff]
        %v2645 = vld [vmem:[%s2642 + $0x10] sm:$0xff]
        %v2646 = vld [vmem:[%s2642 + $0x18] sm:$0xff]
        %v2647 = vld [vmem:[%s2642 + $0x20] sm:$0xff]
        %v2648 = vld [vmem:[%s2642 + $0x28] sm:$0xff]
        %v2655 = vunpack.c.l.b16 %v2643
        %v2656 = vunpack.c.h.b16 %v2643
        %v2657 = vunpack.c.l.b16 %v2644
        %v2658 = vunpack.c.h.b16 %v2644
        %v2659 = vunpack.c.l.b16 %v2645
        %v2660 = vunpack.c.h.b16 %v2645
        %v2661 = vunpack.c.l.b16 %v2646
        %v2662 = vunpack.c.h.b16 %v2646
        %v2663 = vunpack.c.l.b16 %v2647
        %v2664 = vunpack.c.h.b16 %v2647
        %v2665 = vunpack.c.l.b16 %v2648
        %v2666 = vunpack.c.h.b16 %v2648
        %v2667 = vpack.c.b16 %v2657, %v2655
        %v2668 = vpack.c.b16 %v2658, %v2656
        %v2669 = vpack.c.b16 %v2661, %v2659
        %v2670 = vpack.c.b16 %v2662, %v2660
        %v2671 = vpack.c.b16 %v2665, %v2663
        %v2672 = vpack.c.b16 %v2666, %v2664
        %2679 = vmatprep.subr.bf16.mxu0 %v2668
        %2680 = vmatpush1.bf16.msra.mxu0 %v2667
        %2681 = vmatprep.subr.bf16.mxu0 %v2670
        %2682 = vmatpush1.bf16.msra.mxu0 %v2669
        %2683 = vmatprep.subr.bf16.mxu0 %v2672
        %2684 = vmatpush1.bf16.msra.mxu0 %v2671
        %2685 = vmatprep.subr.bf16.mxu0 0
        %2686 = vmatpush1.bf16.msra.mxu0 0
        %2687 = vmatprep.subr.bf16.mxu0 0
        %2688 = vmatpush1.bf16.msra.mxu0 0
        %2689 = vmatprep.subr.bf16.mxu0 0
        %2690 = vmatpush1.bf16.msra.mxu0 0
        %2691 = vmatprep.subr.bf16.mxu0 0
        %2692 = vmatpush1.bf16.msra.mxu0 0
        %2693 = vmatprep.subr.bf16.mxu0 0
        %2694 = vmatpush1.bf16.msra.mxu0 0
        %2695 = vmatprep.subr.bf16.mxu0 0
        %2696 = vmatpush1.bf16.msra.mxu0 0
        %2697 = vmatprep.subr.bf16.mxu0 0
        %2698 = vmatpush1.bf16.msra.mxu0 0
        %2699 = vmatprep.subr.bf16.mxu0 0
        %2700 = vmatpush1.bf16.msra.mxu0 0
        %2701 = vmatprep.subr.bf16.mxu0 0
        %2702 = vmatpush1.bf16.msra.mxu0 0
        %2703 = vmatprep.subr.bf16.mxu0 0
        %2704 = vmatpush1.bf16.msra.mxu0 0
        %2705 = vmatprep.subr.bf16.mxu0 0
        %2706 = vmatpush1.bf16.msra.mxu0 0
        %2707 = vmatprep.subr.bf16.mxu0 0
        %2708 = vmatpush1.bf16.msra.mxu0 0
        %2709 = vmatprep.subr.bf16.mxu0 0
        %2710 = vmatpush1.bf16.msra.mxu0 0
        %2711 = vmatprep.mubr.bf16.mxu0 0
        %2712 = vmatmul.mubr.bf16.gmra.mrb[0].mxu0 %v269
        %v2713 = vpop.f32.mrb[0].mxu0
        %v2714 = vadd.f32 %v235, %v2713
        %v2715 = vpop.f32.mrb[0].mxu0
        %v2716 = vadd.f32 %v235, %v2715
        %v2717 = vpop.f32.mrb[0].mxu0
        %v2718 = vpop.f32.mrb[0].mxu0
        %2719 = vdwg.mxu0
        %v2720 = vmul.f32 %v2272, 0.9
        %v2721 = vmul.f32 %v2273, 0.9
        %v2722 = vadd.f32 %v2720, %v2714
        %v2723 = vadd.f32 %v2721, %v2716
        %v2724 = vadd.f32 %v2722, 0.0
        %v2725 = vadd.f32 %v2723, 0.0
        %vm2726 = vcmp.ge.f32.partialorder %v2724, 1.0
        %vm2727 = vcmp.ge.f32.partialorder %v2725, 1.0
        %v2728 = vsel %vm2726, 1, 0
        %v2729 = vsel %vm2727, 1, 0
        %v2730 = vcvt.s32.f32 %v2728
        %v2731 = vcvt.s32.f32 %v2729
        %v2732 = vsub.f32 %v2724, %v2730
        %v2733 = vsub.f32 %v2725, %v2731
        %v2734 = vpack.c.bf16 %v2730, %v2730
        %v2735 = vpack.c.bf16 %v2731, %v2731
        %v2737 = vshrl.u32 %v2734, 16
        %v2740 = vshrl.u32 %v2735, 16
        %2744 = vmatprep.subr.bf16.mxu0 0
        %2745 = vmatpush1.bf16.msra.mxu0 %v463
        %2746 = vmatprep.subr.bf16.mxu0 0
        %2747 = vmatpush1.bf16.msra.mxu0 %v464
        %2748 = vmatprep.subr.bf16.mxu0 0
        %2749 = vmatpush1.bf16.msra.mxu0 %v465
        %2750 = vmatprep.subr.bf16.mxu0 0
        %2751 = vmatpush1.bf16.msra.mxu0 %v466
        %2752 = vmatprep.subr.bf16.mxu0 0
        %2753 = vmatpush1.bf16.msra.mxu0 %v467
        %2754 = vmatprep.subr.bf16.mxu0 0
        %2755 = vmatpush1.bf16.msra.mxu0 %v468
        %2756 = vmatprep.subr.bf16.mxu0 0
        %2757 = vmatpush1.bf16.msra.mxu0 %v469
        %2758 = vmatprep.subr.bf16.mxu0 0
        %2759 = vmatpush1.bf16.msra.mxu0 %v470
        %2760 = vmatprep.subr.bf16.mxu0 0
        %2761 = vmatpush1.bf16.msra.mxu0 %v471
        %2762 = vmatprep.subr.bf16.mxu0 0
        %2763 = vmatpush1.bf16.msra.mxu0 %v472
        %2764 = vmatprep.subr.bf16.mxu0 0
        %2765 = vmatpush1.bf16.msra.mxu0 %v473
        %2766 = vmatprep.subr.bf16.mxu0 0
        %2767 = vmatpush1.bf16.msra.mxu0 %v474
        %2768 = vmatprep.subr.bf16.mxu0 0
        %2769 = vmatpush1.bf16.msra.mxu0 %v475
        %2770 = vmatprep.subr.bf16.mxu0 0
        %2771 = vmatpush1.bf16.msra.mxu0 %v476
        %2772 = vmatprep.subr.bf16.mxu0 0
        %2773 = vmatpush1.bf16.msra.mxu0 %v477
        %2774 = vmatprep.subr.bf16.mxu0 0
        %2775 = vmatpush1.bf16.msra.mxu0 %v478
        %2776 = vmatprep.mubr.bf16.mxu0 %v2740
        %2777 = vmatmul.mubr.bf16.gmra.mrb[0].mxu0 %v2737
        %v2778 = vpop.f32.mrb[0].mxu0
        %v2779 = vadd.f32 0.0, %v2778
        %v2780 = vpop.f32.mrb[0].mxu0
        %v2781 = vpop.f32.mrb[0].mxu0
        %v2782 = vpop.f32.mrb[0].mxu0
        %2783 = vdwg.mxu0
        %v2784 = vrot.slane %v2737, 1
        %v2785 = vrot.slane %v2740, 1
        %2788 = vmatprep.subr.bf16.mxu0 0
        %2789 = vmatpush1.bf16.msra.mxu0 %v669
        %2790 = vmatprep.subr.bf16.mxu0 0
        %2791 = vmatpush1.bf16.msra.mxu0 %v670
        %2792 = vmatprep.subr.bf16.mxu0 0
        %2793 = vmatpush1.bf16.msra.mxu0 %v671
        %2794 = vmatprep.subr.bf16.mxu0 0
        %2795 = vmatpush1.bf16.msra.mxu0 %v672
        %2796 = vmatprep.subr.bf16.mxu0 0
        %2797 = vmatpush1.bf16.msra.mxu0 %v673
        %2798 = vmatprep.subr.bf16.mxu0 0
        %2799 = vmatpush1.bf16.msra.mxu0 %v674
        %2800 = vmatprep.subr.bf16.mxu0 0
        %2801 = vmatpush1.bf16.msra.mxu0 %v675
        %2802 = vmatprep.subr.bf16.mxu0 0
        %2803 = vmatpush1.bf16.msra.mxu0 %v676
        %2804 = vmatprep.subr.bf16.mxu0 0
        %2805 = vmatpush1.bf16.msra.mxu0 %v677
        %2806 = vmatprep.subr.bf16.mxu0 0
        %2807 = vmatpush1.bf16.msra.mxu0 %v678
        %2808 = vmatprep.subr.bf16.mxu0 0
        %2809 = vmatpush1.bf16.msra.mxu0 %v679
        %2810 = vmatprep.subr.bf16.mxu0 0
        %2811 = vmatpush1.bf16.msra.mxu0 %v680
        %2812 = vmatprep.subr.bf16.mxu0 0
        %2813 = vmatpush1.bf16.msra.mxu0 %v681
        %2814 = vmatprep.subr.bf16.mxu0 0
        %2815 = vmatpush1.bf16.msra.mxu0 %v682
        %2816 = vmatprep.subr.bf16.mxu0 0
        %2817 = vmatpush1.bf16.msra.mxu0 %v683
        %2818 = vmatprep.subr.bf16.mxu0 0
        %2819 = vmatpush1.bf16.msra.mxu0 %v684
        %2820 = vmatprep.mubr.bf16.mxu0 %v2785
        %2821 = vmatmul.mubr.bf16.gmra.mrb[0].mxu0 %v2784
        %v2822 = vpop.f32.mrb[0].mxu0
        %v2823 = vadd.f32 0.0, %v2822
        %v2824 = vpop.f32.mrb[0].mxu0
        %v2825 = vpop.f32.mrb[0].mxu0
        %v2826 = vpop.f32.mrb[0].mxu0
        %2827 = vdwg.mxu0
        %v2828 = vrot.slane %v2737, 2
        %v2829 = vrot.slane %v2740, 2
        %2832 = vmatprep.subr.bf16.mxu0 0
        %2833 = vmatpush1.bf16.msra.mxu0 %v875
        %2834 = vmatprep.subr.bf16.mxu0 0
        %2835 = vmatpush1.bf16.msra.mxu0 %v876
        %2836 = vmatprep.subr.bf16.mxu0 0
        %2837 = vmatpush1.bf16.msra.mxu0 %v877
        %2838 = vmatprep.subr.bf16.mxu0 0
        %2839 = vmatpush1.bf16.msra.mxu0 %v878
        %2840 = vmatprep.subr.bf16.mxu0 0
        %2841 = vmatpush1.bf16.msra.mxu0 %v879
        %2842 = vmatprep.subr.bf16.mxu0 0
        %2843 = vmatpush1.bf16.msra.mxu0 %v880
        %2844 = vmatprep.subr.bf16.mxu0 0
        %2845 = vmatpush1.bf16.msra.mxu0 %v881
        %2846 = vmatprep.subr.bf16.mxu0 0
        %2847 = vmatpush1.bf16.msra.mxu0 %v882
        %2848 = vmatprep.subr.bf16.mxu0 0
        %2849 = vmatpush1.bf16.msra.mxu0 %v883
        %2850 = vmatprep.subr.bf16.mxu0 0
        %2851 = vmatpush1.bf16.msra.mxu0 %v884
        %2852 = vmatprep.subr.bf16.mxu0 0
        %2853 = vmatpush1.bf16.msra.mxu0 %v885
        %2854 = vmatprep.subr.bf16.mxu0 0
        %2855 = vmatpush1.bf16.msra.mxu0 %v886
        %2856 = vmatprep.subr.bf16.mxu0 0
        %2857 = vmatpush1.bf16.msra.mxu0 %v887
        %2858 = vmatprep.subr.bf16.mxu0 0
        %2859 = vmatpush1.bf16.msra.mxu0 %v888
        %2860 = vmatprep.subr.bf16.mxu0 0
        %2861 = vmatpush1.bf16.msra.mxu0 %v889
        %2862 = vmatprep.subr.bf16.mxu0 0
        %2863 = vmatpush1.bf16.msra.mxu0 %v890
        %2864 = vmatprep.mubr.bf16.mxu0 %v2829
        %2865 = vmatmul.mubr.bf16.gmra.mrb[0].mxu0 %v2828
        %v2866 = vpop.f32.mrb[0].mxu0
        %v2867 = vadd.f32 0.0, %v2866
        %v2868 = vpop.f32.mrb[0].mxu0
        %v2869 = vpop.f32.mrb[0].mxu0
        %v2870 = vpop.f32.mrb[0].mxu0
        %2871 = vdwg.mxu0
        %v2872 = vrot.slane %v2737, 3
        %v2873 = vrot.slane %v2740, 3
        %2876 = vmatprep.subr.bf16.mxu0 0
        %2877 = vmatpush1.bf16.msra.mxu0 %v1081
        %2878 = vmatprep.subr.bf16.mxu0 0
        %2879 = vmatpush1.bf16.msra.mxu0 %v1082
        %2880 = vmatprep.subr.bf16.mxu0 0
        %2881 = vmatpush1.bf16.msra.mxu0 %v1083
        %2882 = vmatprep.subr.bf16.mxu0 0
        %2883 = vmatpush1.bf16.msra.mxu0 %v1084
        %2884 = vmatprep.subr.bf16.mxu0 0
        %2885 = vmatpush1.bf16.msra.mxu0 %v1085
        %2886 = vmatprep.subr.bf16.mxu0 0
        %2887 = vmatpush1.bf16.msra.mxu0 %v1086
        %2888 = vmatprep.subr.bf16.mxu0 0
        %2889 = vmatpush1.bf16.msra.mxu0 %v1087
        %2890 = vmatprep.subr.bf16.mxu0 0
        %2891 = vmatpush1.bf16.msra.mxu0 %v1088
        %2892 = vmatprep.subr.bf16.mxu0 0
        %2893 = vmatpush1.bf16.msra.mxu0 %v1089
        %2894 = vmatprep.subr.bf16.mxu0 0
        %2895 = vmatpush1.bf16.msra.mxu0 %v1090
        %2896 = vmatprep.subr.bf16.mxu0 0
        %2897 = vmatpush1.bf16.msra.mxu0 %v1091
        %2898 = vmatprep.subr.bf16.mxu0 0
        %2899 = vmatpush1.bf16.msra.mxu0 %v1092
        %2900 = vmatprep.subr.bf16.mxu0 0
        %2901 = vmatpush1.bf16.msra.mxu0 %v1093
        %2902 = vmatprep.subr.bf16.mxu0 0
        %2903 = vmatpush1.bf16.msra.mxu0 %v1094
        %2904 = vmatprep.subr.bf16.mxu0 0
        %2905 = vmatpush1.bf16.msra.mxu0 %v1095
        %2906 = vmatprep.subr.bf16.mxu0 0
        %2907 = vmatpush1.bf16.msra.mxu0 %v1096
        %2908 = vmatprep.mubr.bf16.mxu0 %v2873
        %2909 = vmatmul.mubr.bf16.gmra.mrb[0].mxu0 %v2872
        %v2910 = vpop.f32.mrb[0].mxu0
        %v2911 = vadd.f32 0.0, %v2910
        %v2912 = vpop.f32.mrb[0].mxu0
        %v2913 = vpop.f32.mrb[0].mxu0
        %v2914 = vpop.f32.mrb[0].mxu0
        %2915 = vdwg.mxu0
        %2916 = vmatprep.subr.bf16.mxu0 0
        %2917 = vmatpush1.bf16.msra.mxu0 %v1217
        %2918 = vmatprep.subr.bf16.mxu0 0
        %2919 = vmatpush1.bf16.msra.mxu0 %v1218
        %2920 = vmatprep.subr.bf16.mxu0 0
        %2921 = vmatpush1.bf16.msra.mxu0 %v1219
        %2922 = vmatprep.subr.bf16.mxu0 0
        %2923 = vmatpush1.bf16.msra.mxu0 %v1220
        %2924 = vmatprep.subr.bf16.mxu0 0
        %2925 = vmatpush1.bf16.msra.mxu0 %v1221
        %2926 = vmatprep.subr.bf16.mxu0 0
        %2927 = vmatpush1.bf16.msra.mxu0 %v1222
        %2928 = vmatprep.subr.bf16.mxu0 0
        %2929 = vmatpush1.bf16.msra.mxu0 %v1223
        %2930 = vmatprep.subr.bf16.mxu0 0
        %2931 = vmatpush1.bf16.msra.mxu0 %v1224
        %2932 = vmatprep.subr.bf16.mxu0 0
        %2933 = vmatpush1.bf16.msra.mxu0 %v1225
        %2934 = vmatprep.subr.bf16.mxu0 0
        %2935 = vmatpush1.bf16.msra.mxu0 %v1226
        %2936 = vmatprep.subr.bf16.mxu0 0
        %2937 = vmatpush1.bf16.msra.mxu0 %v1227
        %2938 = vmatprep.subr.bf16.mxu0 0
        %2939 = vmatpush1.bf16.msra.mxu0 %v1228
        %2940 = vmatprep.subr.bf16.mxu0 0
        %2941 = vmatpush1.bf16.msra.mxu0 %v1229
        %2942 = vmatprep.subr.bf16.mxu0 0
        %2943 = vmatpush1.bf16.msra.mxu0 %v1230
        %2944 = vmatprep.subr.bf16.mxu0 0
        %2945 = vmatpush1.bf16.msra.mxu0 %v1231
        %2946 = vmatprep.subr.bf16.mxu0 0
        %2947 = vmatpush1.bf16.msra.mxu0 %v1232
        %2948 = vmatprep.mubr.bf16.mxu0 %v2735
        %2949 = vmatmul.mubr.bf16.gmra.mrb[0].mxu0 %v2734
        %v2950 = vpop.f32.mrb[0].mxu0
        %v2951 = vadd.f32 %v2779, %v2950
        %v2952 = vpop.f32.mrb[0].mxu0
        %v2953 = vpop.f32.mrb[0].mxu0
        %v2954 = vpop.f32.mrb[0].mxu0
        %2955 = vdwg.mxu0
        %v2958 = vrot.slane %v2734, 1
        %v2959 = vrot.slane %v2735, 1
        %2962 = vmatprep.subr.bf16.mxu0 0
        %2963 = vmatpush1.bf16.msra.mxu0 %v1359
        %2964 = vmatprep.subr.bf16.mxu0 0
        %2965 = vmatpush1.bf16.msra.mxu0 %v1360
        %2966 = vmatprep.subr.bf16.mxu0 0
        %2967 = vmatpush1.bf16.msra.mxu0 %v1361
        %2968 = vmatprep.subr.bf16.mxu0 0
        %2969 = vmatpush1.bf16.msra.mxu0 %v1362
        %2970 = vmatprep.subr.bf16.mxu0 0
        %2971 = vmatpush1.bf16.msra.mxu0 %v1363
        %2972 = vmatprep.subr.bf16.mxu0 0
        %2973 = vmatpush1.bf16.msra.mxu0 %v1364
        %2974 = vmatprep.subr.bf16.mxu0 0
        %2975 = vmatpush1.bf16.msra.mxu0 %v1365
        %2976 = vmatprep.subr.bf16.mxu0 0
        %2977 = vmatpush1.bf16.msra.mxu0 %v1366
        %2978 = vmatprep.subr.bf16.mxu0 0
        %2979 = vmatpush1.bf16.msra.mxu0 %v1367
        %2980 = vmatprep.subr.bf16.mxu0 0
        %2981 = vmatpush1.bf16.msra.mxu0 %v1368
        %2982 = vmatprep.subr.bf16.mxu0 0
        %2983 = vmatpush1.bf16.msra.mxu0 %v1369
        %2984 = vmatprep.subr.bf16.mxu0 0
        %2985 = vmatpush1.bf16.msra.mxu0 %v1370
        %2986 = vmatprep.subr.bf16.mxu0 0
        %2987 = vmatpush1.bf16.msra.mxu0 %v1371
        %2988 = vmatprep.subr.bf16.mxu0 0
        %2989 = vmatpush1.bf16.msra.mxu0 %v1372
        %2990 = vmatprep.subr.bf16.mxu0 0
        %2991 = vmatpush1.bf16.msra.mxu0 %v1373
        %2992 = vmatprep.subr.bf16.mxu0 0
        %2993 = vmatpush1.bf16.msra.mxu0 %v1374
        %2994 = vmatprep.mubr.bf16.mxu0 %v2959
        %2995 = vmatmul.mubr.bf16.gmra.mrb[0].mxu0 %v2958
        %v2996 = vpop.f32.mrb[0].mxu0
        %v2997 = vadd.f32 %v2823, %v2996
        %v2998 = vpop.f32.mrb[0].mxu0
        %v2999 = vpop.f32.mrb[0].mxu0
        %v3000 = vpop.f32.mrb[0].mxu0
        %3001 = vdwg.mxu0
        %v3002 = vrot.slane %v2734, 2
        %v3003 = vrot.slane %v2735, 2
        %3006 = vmatprep.subr.bf16.mxu0 0
        %3007 = vmatpush1.bf16.msra.mxu0 %v1499
        %3008 = vmatprep.subr.bf16.mxu0 0
        %3009 = vmatpush1.bf16.msra.mxu0 %v1500
        %3010 = vmatprep.subr.bf16.mxu0 0
        %3011 = vmatpush1.bf16.msra.mxu0 %v1501
        %3012 = vmatprep.subr.bf16.mxu0 0
        %3013 = vmatpush1.bf16.msra.mxu0 %v1502
        %3014 = vmatprep.subr.bf16.mxu0 0
        %3015 = vmatpush1.bf16.msra.mxu0 %v1503
        %3016 = vmatprep.subr.bf16.mxu0 0
        %3017 = vmatpush1.bf16.msra.mxu0 %v1504
        %3018 = vmatprep.subr.bf16.mxu0 0
        %3019 = vmatpush1.bf16.msra.mxu0 %v1505
        %3020 = vmatprep.subr.bf16.mxu0 0
        %3021 = vmatpush1.bf16.msra.mxu0 %v1506
        %3022 = vmatprep.subr.bf16.mxu0 0
        %3023 = vmatpush1.bf16.msra.mxu0 %v1507
        %3024 = vmatprep.subr.bf16.mxu0 0
        %3025 = vmatpush1.bf16.msra.mxu0 %v1508
        %3026 = vmatprep.subr.bf16.mxu0 0
        %3027 = vmatpush1.bf16.msra.mxu0 %v1509
        %3028 = vmatprep.subr.bf16.mxu0 0
        %3029 = vmatpush1.bf16.msra.mxu0 %v1510
        %3030 = vmatprep.subr.bf16.mxu0 0
        %3031 = vmatpush1.bf16.msra.mxu0 %v1511
        %3032 = vmatprep.subr.bf16.mxu0 0
        %3033 = vmatpush1.bf16.msra.mxu0 %v1512
        %3034 = vmatprep.subr.bf16.mxu0 0
        %3035 = vmatpush1.bf16.msra.mxu0 %v1513
        %3036 = vmatprep.subr.bf16.mxu0 0
        %3037 = vmatpush1.bf16.msra.mxu0 %v1514
        %3038 = vmatprep.mubr.bf16.mxu0 %v3003
        %3039 = vmatmul.mubr.bf16.gmra.mrb[0].mxu0 %v3002
        %v3040 = vpop.f32.mrb[0].mxu0
        %v3041 = vadd.f32 %v2867, %v3040
        %v3042 = vpop.f32.mrb[0].mxu0
        %v3043 = vpop.f32.mrb[0].mxu0
        %v3044 = vpop.f32.mrb[0].mxu0
        %3045 = vdwg.mxu0
        %v3046 = vrot.slane %v2734, 3
        %v3047 = vrot.slane %v2735, 3
        %3050 = vmatprep.subr.bf16.mxu0 0
        %3051 = vmatpush1.bf16.msra.mxu0 %v1639
        %3052 = vmatprep.subr.bf16.mxu0 0
        %3053 = vmatpush1.bf16.msra.mxu0 %v1640
        %3054 = vmatprep.subr.bf16.mxu0 0
        %3055 = vmatpush1.bf16.msra.mxu0 %v1641
        %3056 = vmatprep.subr.bf16.mxu0 0
        %3057 = vmatpush1.bf16.msra.mxu0 %v1642
        %3058 = vmatprep.subr.bf16.mxu0 0
        %3059 = vmatpush1.bf16.msra.mxu0 %v1643
        %3060 = vmatprep.subr.bf16.mxu0 0
        %3061 = vmatpush1.bf16.msra.mxu0 %v1644
        %3062 = vmatprep.subr.bf16.mxu0 0
        %3063 = vmatpush1.bf16.msra.mxu0 %v1645
        %3064 = vmatprep.subr.bf16.mxu0 0
        %3065 = vmatpush1.bf16.msra.mxu0 %v1646
        %3066 = vmatprep.subr.bf16.mxu0 0
        %3067 = vmatpush1.bf16.msra.mxu0 %v1647
        %3068 = vmatprep.subr.bf16.mxu0 0
        %3069 = vmatpush1.bf16.msra.mxu0 %v1648
        %3070 = vmatprep.subr.bf16.mxu0 0
        %3071 = vmatpush1.bf16.msra.mxu0 %v1649
        %3072 = vmatprep.subr.bf16.mxu0 0
        %3073 = vmatpush1.bf16.msra.mxu0 %v1650
        %3074 = vmatprep.subr.bf16.mxu0 0
        %3075 = vmatpush1.bf16.msra.mxu0 %v1651
        %3076 = vmatprep.subr.bf16.mxu0 0
        %3077 = vmatpush1.bf16.msra.mxu0 %v1652
        %3078 = vmatprep.subr.bf16.mxu0 0
        %3079 = vmatpush1.bf16.msra.mxu0 %v1653
        %3080 = vmatprep.subr.bf16.mxu0 0
        %3081 = vmatpush1.bf16.msra.mxu0 %v1654
        %3082 = vmatprep.mubr.bf16.mxu0 %v3047
        %3083 = vmatmul.mubr.bf16.gmra.mrb[0].mxu0 %v3046
        %v3084 = vpop.f32.mrb[0].mxu0
        %v3085 = vadd.f32 %v2911, %v3084
        %v3086 = vpop.f32.mrb[0].mxu0
        %v3087 = vpop.f32.mrb[0].mxu0
        %v3088 = vpop.f32.mrb[0].mxu0
        %3089 = vdwg.mxu0
        %v3090 = vadd.f32 %v2951, %v2997
        %v3091 = vadd.f32 %v3041, %v3085
        %v3092 = vadd.f32 %v3090, %v3091
        %v3093 = vadd.f32 %v3092, %v225
        %v3094 = vmul.f32 %v2640, 0.9
        %v3095 = vadd.f32 %v3094, %v3093
        %v3096 = vadd.f32 %v3095, 0.0
        %vm3097 = vcmp.ge.f32.partialorder %v3096, 1.0
        %v3098 = vsel %vm3097, 1, 0
        %v3099 = vcvt.s32.f32 %v3098
        %v3100 = vsub.f32 %v3096, %v3099
        %v3101 = vadd.f32 %v2641, %v3099
        %s3102 = scalar_lea.vmem %s221, 192
        %v3103 = vld [vmem:[%s3102] sm:$0xff]
        %v3104 = vld [vmem:[%s3102 + $0x8] sm:$0xff]
        %v3105 = vld [vmem:[%s3102 + $0x10] sm:$0xff]
        %v3106 = vld [vmem:[%s3102 + $0x18] sm:$0xff]
        %v3107 = vld [vmem:[%s3102 + $0x20] sm:$0xff]
        %v3108 = vld [vmem:[%s3102 + $0x28] sm:$0xff]
        %v3115 = vunpack.c.l.b16 %v3103
        %v3116 = vunpack.c.h.b16 %v3103
        %v3117 = vunpack.c.l.b16 %v3104
        %v3118 = vunpack.c.h.b16 %v3104
        %v3119 = vunpack.c.l.b16 %v3105
        %v3120 = vunpack.c.h.b16 %v3105
        %v3121 = vunpack.c.l.b16 %v3106
        %v3122 = vunpack.c.h.b16 %v3106
        %v3123 = vunpack.c.l.b16 %v3107
        %v3124 = vunpack.c.h.b16 %v3107
        %v3125 = vunpack.c.l.b16 %v3108
        %v3126 = vunpack.c.h.b16 %v3108
        %v3127 = vpack.c.b16 %v3117, %v3115
        %v3128 = vpack.c.b16 %v3118, %v3116
        %v3129 = vpack.c.b16 %v3121, %v3119
        %v3130 = vpack.c.b16 %v3122, %v3120
        %v3131 = vpack.c.b16 %v3125, %v3123
        %v3132 = vpack.c.b16 %v3126, %v3124
        %3139 = vmatprep.subr.bf16.mxu0 %v3128
        %3140 = vmatpush1.bf16.msra.mxu0 %v3127
        %3141 = vmatprep.subr.bf16.mxu0 %v3130
        %3142 = vmatpush1.bf16.msra.mxu0 %v3129
        %3143 = vmatprep.subr.bf16.mxu0 %v3132
        %3144 = vmatpush1.bf16.msra.mxu0 %v3131
        %3145 = vmatprep.subr.bf16.mxu0 0
        %3146 = vmatpush1.bf16.msra.mxu0 0
        %3147 = vmatprep.subr.bf16.mxu0 0
        %3148 = vmatpush1.bf16.msra.mxu0 0
        %3149 = vmatprep.subr.bf16.mxu0 0
        %3150 = vmatpush1.bf16.msra.mxu0 0
        %3151 = vmatprep.subr.bf16.mxu0 0
        %3152 = vmatpush1.bf16.msra.mxu0 0
        %3153 = vmatprep.subr.bf16.mxu0 0
        %3154 = vmatpush1.bf16.msra.mxu0 0
        %3155 = vmatprep.subr.bf16.mxu0 0
        %3156 = vmatpush1.bf16.msra.mxu0 0
        %3157 = vmatprep.subr.bf16.mxu0 0
        %3158 = vmatpush1.bf16.msra.mxu0 0
        %3159 = vmatprep.subr.bf16.mxu0 0
        %3160 = vmatpush1.bf16.msra.mxu0 0
        %3161 = vmatprep.subr.bf16.mxu0 0
        %3162 = vmatpush1.bf16.msra.mxu0 0
        %3163 = vmatprep.subr.bf16.mxu0 0
        %3164 = vmatpush1.bf16.msra.mxu0 0
        %3165 = vmatprep.subr.bf16.mxu0 0
        %3166 = vmatpush1.bf16.msra.mxu0 0
        %3167 = vmatprep.subr.bf16.mxu0 0
        %3168 = vmatpush1.bf16.msra.mxu0 0
        %3169 = vmatprep.subr.bf16.mxu0 0
        %3170 = vmatpush1.bf16.msra.mxu0 0
        %3171 = vmatprep.mubr.bf16.mxu0 0
        %3172 = vmatmul.mubr.bf16.gmra.mrb[0].mxu0 %v269
        %v3173 = vpop.f32.mrb[0].mxu0
        %v3174 = vadd.f32 %v235, %v3173
        %v3175 = vpop.f32.mrb[0].mxu0
        %v3176 = vadd.f32 %v235, %v3175
        %v3177 = vpop.f32.mrb[0].mxu0
        %v3178 = vpop.f32.mrb[0].mxu0
        %3179 = vdwg.mxu0
        %v3180 = vmul.f32 %v2732, 0.9
        %v3181 = vmul.f32 %v2733, 0.9
        %v3182 = vadd.f32 %v3180, %v3174
        %v3183 = vadd.f32 %v3181, %v3176
        %v3184 = vadd.f32 %v3182, 0.0
        %v3185 = vadd.f32 %v3183, 0.0
        %vm3186 = vcmp.ge.f32.partialorder %v3184, 1.0
        %vm3187 = vcmp.ge.f32.partialorder %v3185, 1.0
        %v3188 = vsel %vm3186, 1, 0
        %v3189 = vsel %vm3187, 1, 0
        %v3190 = vcvt.s32.f32 %v3188
        %v3191 = vcvt.s32.f32 %v3189
        %v3192 = vsub.f32 %v3184, %v3190
        %v3193 = vsub.f32 %v3185, %v3191
        %v3194 = vpack.c.bf16 %v3190, %v3190
        %v3195 = vpack.c.bf16 %v3191, %v3191
        %v3197 = vshrl.u32 %v3194, 16
        %v3200 = vshrl.u32 %v3195, 16
        %3204 = vmatprep.subr.bf16.mxu0 0
        %3205 = vmatpush1.bf16.msra.mxu0 %v463
        %3206 = vmatprep.subr.bf16.mxu0 0
        %3207 = vmatpush1.bf16.msra.mxu0 %v464
        %3208 = vmatprep.subr.bf16.mxu0 0
        %3209 = vmatpush1.bf16.msra.mxu0 %v465
        %3210 = vmatprep.subr.bf16.mxu0 0
        %3211 = vmatpush1.bf16.msra.mxu0 %v466
        %3212 = vmatprep.subr.bf16.mxu0 0
        %3213 = vmatpush1.bf16.msra.mxu0 %v467
        %3214 = vmatprep.subr.bf16.mxu0 0
        %3215 = vmatpush1.bf16.msra.mxu0 %v468
        %3216 = vmatprep.subr.bf16.mxu0 0
        %3217 = vmatpush1.bf16.msra.mxu0 %v469
        %3218 = vmatprep.subr.bf16.mxu0 0
        %3219 = vmatpush1.bf16.msra.mxu0 %v470
        %3220 = vmatprep.subr.bf16.mxu0 0
        %3221 = vmatpush1.bf16.msra.mxu0 %v471
        %3222 = vmatprep.subr.bf16.mxu0 0
        %3223 = vmatpush1.bf16.msra.mxu0 %v472
        %3224 = vmatprep.subr.bf16.mxu0 0
        %3225 = vmatpush1.bf16.msra.mxu0 %v473
        %3226 = vmatprep.subr.bf16.mxu0 0
        %3227 = vmatpush1.bf16.msra.mxu0 %v474
        %3228 = vmatprep.subr.bf16.mxu0 0
        %3229 = vmatpush1.bf16.msra.mxu0 %v475
        %3230 = vmatprep.subr.bf16.mxu0 0
        %3231 = vmatpush1.bf16.msra.mxu0 %v476
        %3232 = vmatprep.subr.bf16.mxu0 0
        %3233 = vmatpush1.bf16.msra.mxu0 %v477
        %3234 = vmatprep.subr.bf16.mxu0 0
        %3235 = vmatpush1.bf16.msra.mxu0 %v478
        %3236 = vmatprep.mubr.bf16.mxu0 %v3200
        %3237 = vmatmul.mubr.bf16.gmra.mrb[0].mxu0 %v3197
        %v3238 = vpop.f32.mrb[0].mxu0
        %v3239 = vadd.f32 0.0, %v3238
        %v3240 = vpop.f32.mrb[0].mxu0
        %v3241 = vpop.f32.mrb[0].mxu0
        %v3242 = vpop.f32.mrb[0].mxu0
        %3243 = vdwg.mxu0
        %v3244 = vrot.slane %v3197, 1
        %v3245 = vrot.slane %v3200, 1
        %3248 = vmatprep.subr.bf16.mxu0 0
        %3249 = vmatpush1.bf16.msra.mxu0 %v669
        %3250 = vmatprep.subr.bf16.mxu0 0
        %3251 = vmatpush1.bf16.msra.mxu0 %v670
        %3252 = vmatprep.subr.bf16.mxu0 0
        %3253 = vmatpush1.bf16.msra.mxu0 %v671
        %3254 = vmatprep.subr.bf16.mxu0 0
        %3255 = vmatpush1.bf16.msra.mxu0 %v672
        %3256 = vmatprep.subr.bf16.mxu0 0
        %3257 = vmatpush1.bf16.msra.mxu0 %v673
        %3258 = vmatprep.subr.bf16.mxu0 0
        %3259 = vmatpush1.bf16.msra.mxu0 %v674
        %3260 = vmatprep.subr.bf16.mxu0 0
        %3261 = vmatpush1.bf16.msra.mxu0 %v675
        %3262 = vmatprep.subr.bf16.mxu0 0
        %3263 = vmatpush1.bf16.msra.mxu0 %v676
        %3264 = vmatprep.subr.bf16.mxu0 0
        %3265 = vmatpush1.bf16.msra.mxu0 %v677
        %3266 = vmatprep.subr.bf16.mxu0 0
        %3267 = vmatpush1.bf16.msra.mxu0 %v678
        %3268 = vmatprep.subr.bf16.mxu0 0
        %3269 = vmatpush1.bf16.msra.mxu0 %v679
        %3270 = vmatprep.subr.bf16.mxu0 0
        %3271 = vmatpush1.bf16.msra.mxu0 %v680
        %3272 = vmatprep.subr.bf16.mxu0 0
        %3273 = vmatpush1.bf16.msra.mxu0 %v681
        %3274 = vmatprep.subr.bf16.mxu0 0
        %3275 = vmatpush1.bf16.msra.mxu0 %v682
        %3276 = vmatprep.subr.bf16.mxu0 0
        %3277 = vmatpush1.bf16.msra.mxu0 %v683
        %3278 = vmatprep.subr.bf16.mxu0 0
        %3279 = vmatpush1.bf16.msra.mxu0 %v684
        %3280 = vmatprep.mubr.bf16.mxu0 %v3245
        %3281 = vmatmul.mubr.bf16.gmra.mrb[0].mxu0 %v3244
        %v3282 = vpop.f32.mrb[0].mxu0
        %v3283 = vadd.f32 0.0, %v3282
        %v3284 = vpop.f32.mrb[0].mxu0
        %v3285 = vpop.f32.mrb[0].mxu0
        %v3286 = vpop.f32.mrb[0].mxu0
        %3287 = vdwg.mxu0
        %v3288 = vrot.slane %v3197, 2
        %v3289 = vrot.slane %v3200, 2
        %3292 = vmatprep.subr.bf16.mxu0 0
        %3293 = vmatpush1.bf16.msra.mxu0 %v875
        %3294 = vmatprep.subr.bf16.mxu0 0
        %3295 = vmatpush1.bf16.msra.mxu0 %v876
        %3296 = vmatprep.subr.bf16.mxu0 0
        %3297 = vmatpush1.bf16.msra.mxu0 %v877
        %3298 = vmatprep.subr.bf16.mxu0 0
        %3299 = vmatpush1.bf16.msra.mxu0 %v878
        %3300 = vmatprep.subr.bf16.mxu0 0
        %3301 = vmatpush1.bf16.msra.mxu0 %v879
        %3302 = vmatprep.subr.bf16.mxu0 0
        %3303 = vmatpush1.bf16.msra.mxu0 %v880
        %3304 = vmatprep.subr.bf16.mxu0 0
        %3305 = vmatpush1.bf16.msra.mxu0 %v881
        %3306 = vmatprep.subr.bf16.mxu0 0
        %3307 = vmatpush1.bf16.msra.mxu0 %v882
        %3308 = vmatprep.subr.bf16.mxu0 0
        %3309 = vmatpush1.bf16.msra.mxu0 %v883
        %3310 = vmatprep.subr.bf16.mxu0 0
        %3311 = vmatpush1.bf16.msra.mxu0 %v884
        %3312 = vmatprep.subr.bf16.mxu0 0
        %3313 = vmatpush1.bf16.msra.mxu0 %v885
        %3314 = vmatprep.subr.bf16.mxu0 0
        %3315 = vmatpush1.bf16.msra.mxu0 %v886
        %3316 = vmatprep.subr.bf16.mxu0 0
        %3317 = vmatpush1.bf16.msra.mxu0 %v887
        %3318 = vmatprep.subr.bf16.mxu0 0
        %3319 = vmatpush1.bf16.msra.mxu0 %v888
        %3320 = vmatprep.subr.bf16.mxu0 0
        %3321 = vmatpush1.bf16.msra.mxu0 %v889
        %3322 = vmatprep.subr.bf16.mxu0 0
        %3323 = vmatpush1.bf16.msra.mxu0 %v890
        %3324 = vmatprep.mubr.bf16.mxu0 %v3289
        %3325 = vmatmul.mubr.bf16.gmra.mrb[0].mxu0 %v3288
        %v3326 = vpop.f32.mrb[0].mxu0
        %v3327 = vadd.f32 0.0, %v3326
        %v3328 = vpop.f32.mrb[0].mxu0
        %v3329 = vpop.f32.mrb[0].mxu0
        %v3330 = vpop.f32.mrb[0].mxu0
        %3331 = vdwg.mxu0
        %v3332 = vrot.slane %v3197, 3
        %v3333 = vrot.slane %v3200, 3
        %3336 = vmatprep.subr.bf16.mxu0 0
        %3337 = vmatpush1.bf16.msra.mxu0 %v1081
        %3338 = vmatprep.subr.bf16.mxu0 0
        %3339 = vmatpush1.bf16.msra.mxu0 %v1082
        %3340 = vmatprep.subr.bf16.mxu0 0
        %3341 = vmatpush1.bf16.msra.mxu0 %v1083
        %3342 = vmatprep.subr.bf16.mxu0 0
        %3343 = vmatpush1.bf16.msra.mxu0 %v1084
        %3344 = vmatprep.subr.bf16.mxu0 0
        %3345 = vmatpush1.bf16.msra.mxu0 %v1085
        %3346 = vmatprep.subr.bf16.mxu0 0
        %3347 = vmatpush1.bf16.msra.mxu0 %v1086
        %3348 = vmatprep.subr.bf16.mxu0 0
        %3349 = vmatpush1.bf16.msra.mxu0 %v1087
        %3350 = vmatprep.subr.bf16.mxu0 0
        %3351 = vmatpush1.bf16.msra.mxu0 %v1088
        %3352 = vmatprep.subr.bf16.mxu0 0
        %3353 = vmatpush1.bf16.msra.mxu0 %v1089
        %3354 = vmatprep.subr.bf16.mxu0 0
        %3355 = vmatpush1.bf16.msra.mxu0 %v1090
        %3356 = vmatprep.subr.bf16.mxu0 0
        %3357 = vmatpush1.bf16.msra.mxu0 %v1091
        %3358 = vmatprep.subr.bf16.mxu0 0
        %3359 = vmatpush1.bf16.msra.mxu0 %v1092
        %3360 = vmatprep.subr.bf16.mxu0 0
        %3361 = vmatpush1.bf16.msra.mxu0 %v1093
        %3362 = vmatprep.subr.bf16.mxu0 0
        %3363 = vmatpush1.bf16.msra.mxu0 %v1094
        %3364 = vmatprep.subr.bf16.mxu0 0
        %3365 = vmatpush1.bf16.msra.mxu0 %v1095
        %3366 = vmatprep.subr.bf16.mxu0 0
        %3367 = vmatpush1.bf16.msra.mxu0 %v1096
        %3368 = vmatprep.mubr.bf16.mxu0 %v3333
        %3369 = vmatmul.mubr.bf16.gmra.mrb[0].mxu0 %v3332
        %v3370 = vpop.f32.mrb[0].mxu0
        %v3371 = vadd.f32 0.0, %v3370
        %v3372 = vpop.f32.mrb[0].mxu0
        %v3373 = vpop.f32.mrb[0].mxu0
        %v3374 = vpop.f32.mrb[0].mxu0
        %3375 = vdwg.mxu0
        %3376 = vmatprep.subr.bf16.mxu0 0
        %3377 = vmatpush1.bf16.msra.mxu0 %v1217
        %3378 = vmatprep.subr.bf16.mxu0 0
        %3379 = vmatpush1.bf16.msra.mxu0 %v1218
        %3380 = vmatprep.subr.bf16.mxu0 0
        %3381 = vmatpush1.bf16.msra.mxu0 %v1219
        %3382 = vmatprep.subr.bf16.mxu0 0
        %3383 = vmatpush1.bf16.msra.mxu0 %v1220
        %3384 = vmatprep.subr.bf16.mxu0 0
        %3385 = vmatpush1.bf16.msra.mxu0 %v1221
        %3386 = vmatprep.subr.bf16.mxu0 0
        %3387 = vmatpush1.bf16.msra.mxu0 %v1222
        %3388 = vmatprep.subr.bf16.mxu0 0
        %3389 = vmatpush1.bf16.msra.mxu0 %v1223
        %3390 = vmatprep.subr.bf16.mxu0 0
        %3391 = vmatpush1.bf16.msra.mxu0 %v1224
        %3392 = vmatprep.subr.bf16.mxu0 0
        %3393 = vmatpush1.bf16.msra.mxu0 %v1225
        %3394 = vmatprep.subr.bf16.mxu0 0
        %3395 = vmatpush1.bf16.msra.mxu0 %v1226
        %3396 = vmatprep.subr.bf16.mxu0 0
        %3397 = vmatpush1.bf16.msra.mxu0 %v1227
        %3398 = vmatprep.subr.bf16.mxu0 0
        %3399 = vmatpush1.bf16.msra.mxu0 %v1228
        %3400 = vmatprep.subr.bf16.mxu0 0
        %3401 = vmatpush1.bf16.msra.mxu0 %v1229
        %3402 = vmatprep.subr.bf16.mxu0 0
        %3403 = vmatpush1.bf16.msra.mxu0 %v1230
        %3404 = vmatprep.subr.bf16.mxu0 0
        %3405 = vmatpush1.bf16.msra.mxu0 %v1231
        %3406 = vmatprep.subr.bf16.mxu0 0
        %3407 = vmatpush1.bf16.msra.mxu0 %v1232
        %3408 = vmatprep.mubr.bf16.mxu0 %v3195
        %3409 = vmatmul.mubr.bf16.gmra.mrb[0].mxu0 %v3194
        %v3410 = vpop.f32.mrb[0].mxu0
        %v3411 = vadd.f32 %v3239, %v3410
        %v3412 = vpop.f32.mrb[0].mxu0
        %v3413 = vpop.f32.mrb[0].mxu0
        %v3414 = vpop.f32.mrb[0].mxu0
        %3415 = vdwg.mxu0
        %v3418 = vrot.slane %v3194, 1
        %v3419 = vrot.slane %v3195, 1
        %3422 = vmatprep.subr.bf16.mxu0 0
        %3423 = vmatpush1.bf16.msra.mxu0 %v1359
        %3424 = vmatprep.subr.bf16.mxu0 0
        %3425 = vmatpush1.bf16.msra.mxu0 %v1360
        %3426 = vmatprep.subr.bf16.mxu0 0
        %3427 = vmatpush1.bf16.msra.mxu0 %v1361
        %3428 = vmatprep.subr.bf16.mxu0 0
        %3429 = vmatpush1.bf16.msra.mxu0 %v1362
        %3430 = vmatprep.subr.bf16.mxu0 0
        %3431 = vmatpush1.bf16.msra.mxu0 %v1363
        %3432 = vmatprep.subr.bf16.mxu0 0
        %3433 = vmatpush1.bf16.msra.mxu0 %v1364
        %3434 = vmatprep.subr.bf16.mxu0 0
        %3435 = vmatpush1.bf16.msra.mxu0 %v1365
        %3436 = vmatprep.subr.bf16.mxu0 0
        %3437 = vmatpush1.bf16.msra.mxu0 %v1366
        %3438 = vmatprep.subr.bf16.mxu0 0
        %3439 = vmatpush1.bf16.msra.mxu0 %v1367
        %3440 = vmatprep.subr.bf16.mxu0 0
        %3441 = vmatpush1.bf16.msra.mxu0 %v1368
        %3442 = vmatprep.subr.bf16.mxu0 0
        %3443 = vmatpush1.bf16.msra.mxu0 %v1369
        %3444 = vmatprep.subr.bf16.mxu0 0
        %3445 = vmatpush1.bf16.msra.mxu0 %v1370
        %3446 = vmatprep.subr.bf16.mxu0 0
        %3447 = vmatpush1.bf16.msra.mxu0 %v1371
        %3448 = vmatprep.subr.bf16.mxu0 0
        %3449 = vmatpush1.bf16.msra.mxu0 %v1372
        %3450 = vmatprep.subr.bf16.mxu0 0
        %3451 = vmatpush1.bf16.msra.mxu0 %v1373
        %3452 = vmatprep.subr.bf16.mxu0 0
        %3453 = vmatpush1.bf16.msra.mxu0 %v1374
        %3454 = vmatprep.mubr.bf16.mxu0 %v3419
        %3455 = vmatmul.mubr.bf16.gmra.mrb[0].mxu0 %v3418
        %v3456 = vpop.f32.mrb[0].mxu0
        %v3457 = vadd.f32 %v3283, %v3456
        %v3458 = vpop.f32.mrb[0].mxu0
        %v3459 = vpop.f32.mrb[0].mxu0
        %v3460 = vpop.f32.mrb[0].mxu0
        %3461 = vdwg.mxu0
        %v3462 = vrot.slane %v3194, 2
        %v3463 = vrot.slane %v3195, 2
        %3466 = vmatprep.subr.bf16.mxu0 0
        %3467 = vmatpush1.bf16.msra.mxu0 %v1499
        %3468 = vmatprep.subr.bf16.mxu0 0
        %3469 = vmatpush1.bf16.msra.mxu0 %v1500
        %3470 = vmatprep.subr.bf16.mxu0 0
        %3471 = vmatpush1.bf16.msra.mxu0 %v1501
        %3472 = vmatprep.subr.bf16.mxu0 0
        %3473 = vmatpush1.bf16.msra.mxu0 %v1502
        %3474 = vmatprep.subr.bf16.mxu0 0
        %3475 = vmatpush1.bf16.msra.mxu0 %v1503
        %3476 = vmatprep.subr.bf16.mxu0 0
        %3477 = vmatpush1.bf16.msra.mxu0 %v1504
        %3478 = vmatprep.subr.bf16.mxu0 0
        %3479 = vmatpush1.bf16.msra.mxu0 %v1505
        %3480 = vmatprep.subr.bf16.mxu0 0
        %3481 = vmatpush1.bf16.msra.mxu0 %v1506
        %3482 = vmatprep.subr.bf16.mxu0 0
        %3483 = vmatpush1.bf16.msra.mxu0 %v1507
        %3484 = vmatprep.subr.bf16.mxu0 0
        %3485 = vmatpush1.bf16.msra.mxu0 %v1508
        %3486 = vmatprep.subr.bf16.mxu0 0
        %3487 = vmatpush1.bf16.msra.mxu0 %v1509
        %3488 = vmatprep.subr.bf16.mxu0 0
        %3489 = vmatpush1.bf16.msra.mxu0 %v1510
        %3490 = vmatprep.subr.bf16.mxu0 0
        %3491 = vmatpush1.bf16.msra.mxu0 %v1511
        %3492 = vmatprep.subr.bf16.mxu0 0
        %3493 = vmatpush1.bf16.msra.mxu0 %v1512
        %3494 = vmatprep.subr.bf16.mxu0 0
        %3495 = vmatpush1.bf16.msra.mxu0 %v1513
        %3496 = vmatprep.subr.bf16.mxu0 0
        %3497 = vmatpush1.bf16.msra.mxu0 %v1514
        %3498 = vmatprep.mubr.bf16.mxu0 %v3463
        %3499 = vmatmul.mubr.bf16.gmra.mrb[0].mxu0 %v3462
        %v3500 = vpop.f32.mrb[0].mxu0
        %v3501 = vadd.f32 %v3327, %v3500
        %v3502 = vpop.f32.mrb[0].mxu0
        %v3503 = vpop.f32.mrb[0].mxu0
        %v3504 = vpop.f32.mrb[0].mxu0
        %3505 = vdwg.mxu0
        %v3506 = vrot.slane %v3194, 3
        %v3507 = vrot.slane %v3195, 3
        %3510 = vmatprep.subr.bf16.mxu0 0
        %3511 = vmatpush1.bf16.msra.mxu0 %v1639
        %3512 = vmatprep.subr.bf16.mxu0 0
        %3513 = vmatpush1.bf16.msra.mxu0 %v1640
        %3514 = vmatprep.subr.bf16.mxu0 0
        %3515 = vmatpush1.bf16.msra.mxu0 %v1641
        %3516 = vmatprep.subr.bf16.mxu0 0
        %3517 = vmatpush1.bf16.msra.mxu0 %v1642
        %3518 = vmatprep.subr.bf16.mxu0 0
        %3519 = vmatpush1.bf16.msra.mxu0 %v1643
        %3520 = vmatprep.subr.bf16.mxu0 0
        %3521 = vmatpush1.bf16.msra.mxu0 %v1644
        %3522 = vmatprep.subr.bf16.mxu0 0
        %3523 = vmatpush1.bf16.msra.mxu0 %v1645
        %3524 = vmatprep.subr.bf16.mxu0 0
        %3525 = vmatpush1.bf16.msra.mxu0 %v1646
        %3526 = vmatprep.subr.bf16.mxu0 0
        %3527 = vmatpush1.bf16.msra.mxu0 %v1647
        %3528 = vmatprep.subr.bf16.mxu0 0
        %3529 = vmatpush1.bf16.msra.mxu0 %v1648
        %3530 = vmatprep.subr.bf16.mxu0 0
        %3531 = vmatpush1.bf16.msra.mxu0 %v1649
        %3532 = vmatprep.subr.bf16.mxu0 0
        %3533 = vmatpush1.bf16.msra.mxu0 %v1650
        %3534 = vmatprep.subr.bf16.mxu0 0
        %3535 = vmatpush1.bf16.msra.mxu0 %v1651
        %3536 = vmatprep.subr.bf16.mxu0 0
        %3537 = vmatpush1.bf16.msra.mxu0 %v1652
        %3538 = vmatprep.subr.bf16.mxu0 0
        %3539 = vmatpush1.bf16.msra.mxu0 %v1653
        %3540 = vmatprep.subr.bf16.mxu0 0
        %3541 = vmatpush1.bf16.msra.mxu0 %v1654
        %3542 = vmatprep.mubr.bf16.mxu0 %v3507
        %3543 = vmatmul.mubr.bf16.gmra.mrb[0].mxu0 %v3506
        %v3544 = vpop.f32.mrb[0].mxu0
        %v3545 = vadd.f32 %v3371, %v3544
        %v3546 = vpop.f32.mrb[0].mxu0
        %v3547 = vpop.f32.mrb[0].mxu0
        %v3548 = vpop.f32.mrb[0].mxu0
        %3549 = vdwg.mxu0
        %v3550 = vadd.f32 %v3411, %v3457
        %v3551 = vadd.f32 %v3501, %v3545
        %v3552 = vadd.f32 %v3550, %v3551
        %v3553 = vadd.f32 %v3552, %v225
        %v3554 = vmul.f32 %v3100, 0.9
        %v3555 = vadd.f32 %v3554, %v3553
        %v3556 = vadd.f32 %v3555, 0.0
        %vm3557 = vcmp.ge.f32.partialorder %v3556, 1.0
        %v3558 = vsel %vm3557, 1, 0
        %v3559 = vcvt.s32.f32 %v3558
        %v3560 = vsub.f32 %v3556, %v3559
        %v3561 = vadd.f32 %v3101, %v3559
        %s3562 = scalar_lea.vmem %s221, 240
        %v3563 = vld [vmem:[%s3562] sm:$0xff]
        %v3564 = vld [vmem:[%s3562 + $0x8] sm:$0xff]
        %v3565 = vld [vmem:[%s3562 + $0x10] sm:$0xff]
        %v3566 = vld [vmem:[%s3562 + $0x18] sm:$0xff]
        %v3567 = vld [vmem:[%s3562 + $0x20] sm:$0xff]
        %v3568 = vld [vmem:[%s3562 + $0x28] sm:$0xff]
        %v3575 = vunpack.c.l.b16 %v3563
        %v3576 = vunpack.c.h.b16 %v3563
        %v3577 = vunpack.c.l.b16 %v3564
        %v3578 = vunpack.c.h.b16 %v3564
        %v3579 = vunpack.c.l.b16 %v3565
        %v3580 = vunpack.c.h.b16 %v3565
        %v3581 = vunpack.c.l.b16 %v3566
        %v3582 = vunpack.c.h.b16 %v3566
        %v3583 = vunpack.c.l.b16 %v3567
        %v3584 = vunpack.c.h.b16 %v3567
        %v3585 = vunpack.c.l.b16 %v3568
        %v3586 = vunpack.c.h.b16 %v3568
        %v3587 = vpack.c.b16 %v3577, %v3575
        %v3588 = vpack.c.b16 %v3578, %v3576
        %v3589 = vpack.c.b16 %v3581, %v3579
        %v3590 = vpack.c.b16 %v3582, %v3580
        %v3591 = vpack.c.b16 %v3585, %v3583
        %v3592 = vpack.c.b16 %v3586, %v3584
        %3599 = vmatprep.subr.bf16.mxu0 %v3588
        %3600 = vmatpush1.bf16.msra.mxu0 %v3587
        %3601 = vmatprep.subr.bf16.mxu0 %v3590
        %3602 = vmatpush1.bf16.msra.mxu0 %v3589
        %3603 = vmatprep.subr.bf16.mxu0 %v3592
        %3604 = vmatpush1.bf16.msra.mxu0 %v3591
        %3605 = vmatprep.subr.bf16.mxu0 0
        %3606 = vmatpush1.bf16.msra.mxu0 0
        %3607 = vmatprep.subr.bf16.mxu0 0
        %3608 = vmatpush1.bf16.msra.mxu0 0
        %3609 = vmatprep.subr.bf16.mxu0 0
        %3610 = vmatpush1.bf16.msra.mxu0 0
        %3611 = vmatprep.subr.bf16.mxu0 0
        %3612 = vmatpush1.bf16.msra.mxu0 0
        %3613 = vmatprep.subr.bf16.mxu0 0
        %3614 = vmatpush1.bf16.msra.mxu0 0
        %3615 = vmatprep.subr.bf16.mxu0 0
        %3616 = vmatpush1.bf16.msra.mxu0 0
        %3617 = vmatprep.subr.bf16.mxu0 0
        %3618 = vmatpush1.bf16.msra.mxu0 0
        %3619 = vmatprep.subr.bf16.mxu0 0
        %3620 = vmatpush1.bf16.msra.mxu0 0
        %3621 = vmatprep.subr.bf16.mxu0 0
        %3622 = vmatpush1.bf16.msra.mxu0 0
        %3623 = vmatprep.subr.bf16.mxu0 0
        %3624 = vmatpush1.bf16.msra.mxu0 0
        %3625 = vmatprep.subr.bf16.mxu0 0
        %3626 = vmatpush1.bf16.msra.mxu0 0
        %3627 = vmatprep.subr.bf16.mxu0 0
        %3628 = vmatpush1.bf16.msra.mxu0 0
        %3629 = vmatprep.subr.bf16.mxu0 0
        %3630 = vmatpush1.bf16.msra.mxu0 0
        %3631 = vmatprep.mubr.bf16.mxu0 0
        %3632 = vmatmul.mubr.bf16.gmra.mrb[0].mxu0 %v269
        %v3633 = vpop.f32.mrb[0].mxu0
        %v3634 = vadd.f32 %v235, %v3633
        %v3635 = vpop.f32.mrb[0].mxu0
        %v3636 = vadd.f32 %v235, %v3635
        %v3637 = vpop.f32.mrb[0].mxu0
        %v3638 = vpop.f32.mrb[0].mxu0
        %3639 = vdwg.mxu0
        %v3640 = vmul.f32 %v3192, 0.9
        %v3641 = vmul.f32 %v3193, 0.9
        %v3642 = vadd.f32 %v3640, %v3634
        %v3643 = vadd.f32 %v3641, %v3636
        %v3644 = vadd.f32 %v3642, 0.0
        %v3645 = vadd.f32 %v3643, 0.0
        %vm3646 = vcmp.ge.f32.partialorder %v3644, 1.0
        %vm3647 = vcmp.ge.f32.partialorder %v3645, 1.0
        %v3648 = vsel %vm3646, 1, 0
        %v3649 = vsel %vm3647, 1, 0
        %v3650 = vcvt.s32.f32 %v3648
        %v3651 = vcvt.s32.f32 %v3649
        %v3652 = vsub.f32 %v3644, %v3650
        %v3653 = vsub.f32 %v3645, %v3651
        %v3654 = vpack.c.bf16 %v3650, %v3650
        %v3655 = vpack.c.bf16 %v3651, %v3651
        %v3657 = vshrl.u32 %v3654, 16
        %v3660 = vshrl.u32 %v3655, 16
        %3664 = vmatprep.subr.bf16.mxu0 0
        %3665 = vmatpush1.bf16.msra.mxu0 %v463
        %3666 = vmatprep.subr.bf16.mxu0 0
        %3667 = vmatpush1.bf16.msra.mxu0 %v464
        %3668 = vmatprep.subr.bf16.mxu0 0
        %3669 = vmatpush1.bf16.msra.mxu0 %v465
        %3670 = vmatprep.subr.bf16.mxu0 0
        %3671 = vmatpush1.bf16.msra.mxu0 %v466
        %3672 = vmatprep.subr.bf16.mxu0 0
        %3673 = vmatpush1.bf16.msra.mxu0 %v467
        %3674 = vmatprep.subr.bf16.mxu0 0
        %3675 = vmatpush1.bf16.msra.mxu0 %v468
        %3676 = vmatprep.subr.bf16.mxu0 0
        %3677 = vmatpush1.bf16.msra.mxu0 %v469
        %3678 = vmatprep.subr.bf16.mxu0 0
        %3679 = vmatpush1.bf16.msra.mxu0 %v470
        %3680 = vmatprep.subr.bf16.mxu0 0
        %3681 = vmatpush1.bf16.msra.mxu0 %v471
        %3682 = vmatprep.subr.bf16.mxu0 0
        %3683 = vmatpush1.bf16.msra.mxu0 %v472
        %3684 = vmatprep.subr.bf16.mxu0 0
        %3685 = vmatpush1.bf16.msra.mxu0 %v473
        %3686 = vmatprep.subr.bf16.mxu0 0
        %3687 = vmatpush1.bf16.msra.mxu0 %v474
        %3688 = vmatprep.subr.bf16.mxu0 0
        %3689 = vmatpush1.bf16.msra.mxu0 %v475
        %3690 = vmatprep.subr.bf16.mxu0 0
        %3691 = vmatpush1.bf16.msra.mxu0 %v476
        %3692 = vmatprep.subr.bf16.mxu0 0
        %3693 = vmatpush1.bf16.msra.mxu0 %v477
        %3694 = vmatprep.subr.bf16.mxu0 0
        %3695 = vmatpush1.bf16.msra.mxu0 %v478
        %3696 = vmatprep.mubr.bf16.mxu0 %v3660
        %3697 = vmatmul.mubr.bf16.gmra.mrb[0].mxu0 %v3657
        %v3698 = vpop.f32.mrb[0].mxu0
        %v3699 = vadd.f32 0.0, %v3698
        %v3700 = vpop.f32.mrb[0].mxu0
        %v3701 = vpop.f32.mrb[0].mxu0
        %v3702 = vpop.f32.mrb[0].mxu0
        %3703 = vdwg.mxu0
        %v3704 = vrot.slane %v3657, 1
        %v3705 = vrot.slane %v3660, 1
        %3708 = vmatprep.subr.bf16.mxu0 0
        %3709 = vmatpush1.bf16.msra.mxu0 %v669
        %3710 = vmatprep.subr.bf16.mxu0 0
        %3711 = vmatpush1.bf16.msra.mxu0 %v670
        %3712 = vmatprep.subr.bf16.mxu0 0
        %3713 = vmatpush1.bf16.msra.mxu0 %v671
        %3714 = vmatprep.subr.bf16.mxu0 0
        %3715 = vmatpush1.bf16.msra.mxu0 %v672
        %3716 = vmatprep.subr.bf16.mxu0 0
        %3717 = vmatpush1.bf16.msra.mxu0 %v673
        %3718 = vmatprep.subr.bf16.mxu0 0
        %3719 = vmatpush1.bf16.msra.mxu0 %v674
        %3720 = vmatprep.subr.bf16.mxu0 0
        %3721 = vmatpush1.bf16.msra.mxu0 %v675
        %3722 = vmatprep.subr.bf16.mxu0 0
        %3723 = vmatpush1.bf16.msra.mxu0 %v676
        %3724 = vmatprep.subr.bf16.mxu0 0
        %3725 = vmatpush1.bf16.msra.mxu0 %v677
        %3726 = vmatprep.subr.bf16.mxu0 0
        %3727 = vmatpush1.bf16.msra.mxu0 %v678
        %3728 = vmatprep.subr.bf16.mxu0 0
        %3729 = vmatpush1.bf16.msra.mxu0 %v679
        %3730 = vmatprep.subr.bf16.mxu0 0
        %3731 = vmatpush1.bf16.msra.mxu0 %v680
        %3732 = vmatprep.subr.bf16.mxu0 0
        %3733 = vmatpush1.bf16.msra.mxu0 %v681
        %3734 = vmatprep.subr.bf16.mxu0 0
        %3735 = vmatpush1.bf16.msra.mxu0 %v682
        %3736 = vmatprep.subr.bf16.mxu0 0
        %3737 = vmatpush1.bf16.msra.mxu0 %v683
        %3738 = vmatprep.subr.bf16.mxu0 0
        %3739 = vmatpush1.bf16.msra.mxu0 %v684
        %3740 = vmatprep.mubr.bf16.mxu0 %v3705
        %3741 = vmatmul.mubr.bf16.gmra.mrb[0].mxu0 %v3704
        %v3742 = vpop.f32.mrb[0].mxu0
        %v3743 = vadd.f32 0.0, %v3742
        %v3744 = vpop.f32.mrb[0].mxu0
        %v3745 = vpop.f32.mrb[0].mxu0
        %v3746 = vpop.f32.mrb[0].mxu0
        %3747 = vdwg.mxu0
        %v3748 = vrot.slane %v3657, 2
        %v3749 = vrot.slane %v3660, 2
        %3752 = vmatprep.subr.bf16.mxu0 0
        %3753 = vmatpush1.bf16.msra.mxu0 %v875
        %3754 = vmatprep.subr.bf16.mxu0 0
        %3755 = vmatpush1.bf16.msra.mxu0 %v876
        %3756 = vmatprep.subr.bf16.mxu0 0
        %3757 = vmatpush1.bf16.msra.mxu0 %v877
        %3758 = vmatprep.subr.bf16.mxu0 0
        %3759 = vmatpush1.bf16.msra.mxu0 %v878
        %3760 = vmatprep.subr.bf16.mxu0 0
        %3761 = vmatpush1.bf16.msra.mxu0 %v879
        %3762 = vmatprep.subr.bf16.mxu0 0
        %3763 = vmatpush1.bf16.msra.mxu0 %v880
        %3764 = vmatprep.subr.bf16.mxu0 0
        %3765 = vmatpush1.bf16.msra.mxu0 %v881
        %3766 = vmatprep.subr.bf16.mxu0 0
        %3767 = vmatpush1.bf16.msra.mxu0 %v882
        %3768 = vmatprep.subr.bf16.mxu0 0
        %3769 = vmatpush1.bf16.msra.mxu0 %v883
        %3770 = vmatprep.subr.bf16.mxu0 0
        %3771 = vmatpush1.bf16.msra.mxu0 %v884
        %3772 = vmatprep.subr.bf16.mxu0 0
        %3773 = vmatpush1.bf16.msra.mxu0 %v885
        %3774 = vmatprep.subr.bf16.mxu0 0
        %3775 = vmatpush1.bf16.msra.mxu0 %v886
        %3776 = vmatprep.subr.bf16.mxu0 0
        %3777 = vmatpush1.bf16.msra.mxu0 %v887
        %3778 = vmatprep.subr.bf16.mxu0 0
        %3779 = vmatpush1.bf16.msra.mxu0 %v888
        %3780 = vmatprep.subr.bf16.mxu0 0
        %3781 = vmatpush1.bf16.msra.mxu0 %v889
        %3782 = vmatprep.subr.bf16.mxu0 0
        %3783 = vmatpush1.bf16.msra.mxu0 %v890
        %3784 = vmatprep.mubr.bf16.mxu0 %v3749
        %3785 = vmatmul.mubr.bf16.gmra.mrb[0].mxu0 %v3748
        %v3786 = vpop.f32.mrb[0].mxu0
        %v3787 = vadd.f32 0.0, %v3786
        %v3788 = vpop.f32.mrb[0].mxu0
        %v3789 = vpop.f32.mrb[0].mxu0
        %v3790 = vpop.f32.mrb[0].mxu0
        %3791 = vdwg.mxu0
        %v3792 = vrot.slane %v3657, 3
        %v3793 = vrot.slane %v3660, 3
        %3796 = vmatprep.subr.bf16.mxu0 0
        %3797 = vmatpush1.bf16.msra.mxu0 %v1081
        %3798 = vmatprep.subr.bf16.mxu0 0
        %3799 = vmatpush1.bf16.msra.mxu0 %v1082
        %3800 = vmatprep.subr.bf16.mxu0 0
        %3801 = vmatpush1.bf16.msra.mxu0 %v1083
        %3802 = vmatprep.subr.bf16.mxu0 0
        %3803 = vmatpush1.bf16.msra.mxu0 %v1084
        %3804 = vmatprep.subr.bf16.mxu0 0
        %3805 = vmatpush1.bf16.msra.mxu0 %v1085
        %3806 = vmatprep.subr.bf16.mxu0 0
        %3807 = vmatpush1.bf16.msra.mxu0 %v1086
        %3808 = vmatprep.subr.bf16.mxu0 0
        %3809 = vmatpush1.bf16.msra.mxu0 %v1087
        %3810 = vmatprep.subr.bf16.mxu0 0
        %3811 = vmatpush1.bf16.msra.mxu0 %v1088
        %3812 = vmatprep.subr.bf16.mxu0 0
        %3813 = vmatpush1.bf16.msra.mxu0 %v1089
        %3814 = vmatprep.subr.bf16.mxu0 0
        %3815 = vmatpush1.bf16.msra.mxu0 %v1090
        %3816 = vmatprep.subr.bf16.mxu0 0
        %3817 = vmatpush1.bf16.msra.mxu0 %v1091
        %3818 = vmatprep.subr.bf16.mxu0 0
        %3819 = vmatpush1.bf16.msra.mxu0 %v1092
        %3820 = vmatprep.subr.bf16.mxu0 0
        %3821 = vmatpush1.bf16.msra.mxu0 %v1093
        %3822 = vmatprep.subr.bf16.mxu0 0
        %3823 = vmatpush1.bf16.msra.mxu0 %v1094
        %3824 = vmatprep.subr.bf16.mxu0 0
        %3825 = vmatpush1.bf16.msra.mxu0 %v1095
        %3826 = vmatprep.subr.bf16.mxu0 0
        %3827 = vmatpush1.bf16.msra.mxu0 %v1096
        %3828 = vmatprep.mubr.bf16.mxu0 %v3793
        %3829 = vmatmul.mubr.bf16.gmra.mrb[0].mxu0 %v3792
        %v3830 = vpop.f32.mrb[0].mxu0
        %v3831 = vadd.f32 0.0, %v3830
        %v3832 = vpop.f32.mrb[0].mxu0
        %v3833 = vpop.f32.mrb[0].mxu0
        %v3834 = vpop.f32.mrb[0].mxu0
        %3835 = vdwg.mxu0
        %3836 = vmatprep.subr.bf16.mxu0 0
        %3837 = vmatpush1.bf16.msra.mxu0 %v1217
        %3838 = vmatprep.subr.bf16.mxu0 0
        %3839 = vmatpush1.bf16.msra.mxu0 %v1218
        %3840 = vmatprep.subr.bf16.mxu0 0
        %3841 = vmatpush1.bf16.msra.mxu0 %v1219
        %3842 = vmatprep.subr.bf16.mxu0 0
        %3843 = vmatpush1.bf16.msra.mxu0 %v1220
        %3844 = vmatprep.subr.bf16.mxu0 0
        %3845 = vmatpush1.bf16.msra.mxu0 %v1221
        %3846 = vmatprep.subr.bf16.mxu0 0
        %3847 = vmatpush1.bf16.msra.mxu0 %v1222
        %3848 = vmatprep.subr.bf16.mxu0 0
        %3849 = vmatpush1.bf16.msra.mxu0 %v1223
        %3850 = vmatprep.subr.bf16.mxu0 0
        %3851 = vmatpush1.bf16.msra.mxu0 %v1224
        %3852 = vmatprep.subr.bf16.mxu0 0
        %3853 = vmatpush1.bf16.msra.mxu0 %v1225
        %3854 = vmatprep.subr.bf16.mxu0 0
        %3855 = vmatpush1.bf16.msra.mxu0 %v1226
        %3856 = vmatprep.subr.bf16.mxu0 0
        %3857 = vmatpush1.bf16.msra.mxu0 %v1227
        %3858 = vmatprep.subr.bf16.mxu0 0
        %3859 = vmatpush1.bf16.msra.mxu0 %v1228
        %3860 = vmatprep.subr.bf16.mxu0 0
        %3861 = vmatpush1.bf16.msra.mxu0 %v1229
        %3862 = vmatprep.subr.bf16.mxu0 0
        %3863 = vmatpush1.bf16.msra.mxu0 %v1230
        %3864 = vmatprep.subr.bf16.mxu0 0
        %3865 = vmatpush1.bf16.msra.mxu0 %v1231
        %3866 = vmatprep.subr.bf16.mxu0 0
        %3867 = vmatpush1.bf16.msra.mxu0 %v1232
        %3868 = vmatprep.mubr.bf16.mxu0 %v3655
        %3869 = vmatmul.mubr.bf16.gmra.mrb[0].mxu0 %v3654
        %v3870 = vpop.f32.mrb[0].mxu0
        %v3871 = vadd.f32 %v3699, %v3870
        %v3872 = vpop.f32.mrb[0].mxu0
        %v3873 = vpop.f32.mrb[0].mxu0
        %v3874 = vpop.f32.mrb[0].mxu0
        %3875 = vdwg.mxu0
        %v3878 = vrot.slane %v3654, 1
        %v3879 = vrot.slane %v3655, 1
        %3882 = vmatprep.subr.bf16.mxu0 0
        %3883 = vmatpush1.bf16.msra.mxu0 %v1359
        %3884 = vmatprep.subr.bf16.mxu0 0
        %3885 = vmatpush1.bf16.msra.mxu0 %v1360
        %3886 = vmatprep.subr.bf16.mxu0 0
        %3887 = vmatpush1.bf16.msra.mxu0 %v1361
        %3888 = vmatprep.subr.bf16.mxu0 0
        %3889 = vmatpush1.bf16.msra.mxu0 %v1362
        %3890 = vmatprep.subr.bf16.mxu0 0
        %3891 = vmatpush1.bf16.msra.mxu0 %v1363
        %3892 = vmatprep.subr.bf16.mxu0 0
        %3893 = vmatpush1.bf16.msra.mxu0 %v1364
        %3894 = vmatprep.subr.bf16.mxu0 0
        %3895 = vmatpush1.bf16.msra.mxu0 %v1365
        %3896 = vmatprep.subr.bf16.mxu0 0
        %3897 = vmatpush1.bf16.msra.mxu0 %v1366
        %3898 = vmatprep.subr.bf16.mxu0 0
        %3899 = vmatpush1.bf16.msra.mxu0 %v1367
        %3900 = vmatprep.subr.bf16.mxu0 0
        %3901 = vmatpush1.bf16.msra.mxu0 %v1368
        %3902 = vmatprep.subr.bf16.mxu0 0
        %3903 = vmatpush1.bf16.msra.mxu0 %v1369
        %3904 = vmatprep.subr.bf16.mxu0 0
        %3905 = vmatpush1.bf16.msra.mxu0 %v1370
        %3906 = vmatprep.subr.bf16.mxu0 0
        %3907 = vmatpush1.bf16.msra.mxu0 %v1371
        %3908 = vmatprep.subr.bf16.mxu0 0
        %3909 = vmatpush1.bf16.msra.mxu0 %v1372
        %3910 = vmatprep.subr.bf16.mxu0 0
        %3911 = vmatpush1.bf16.msra.mxu0 %v1373
        %3912 = vmatprep.subr.bf16.mxu0 0
        %3913 = vmatpush1.bf16.msra.mxu0 %v1374
        %3914 = vmatprep.mubr.bf16.mxu0 %v3879
        %3915 = vmatmul.mubr.bf16.gmra.mrb[0].mxu0 %v3878
        %v3916 = vpop.f32.mrb[0].mxu0
        %v3917 = vadd.f32 %v3743, %v3916
        %v3918 = vpop.f32.mrb[0].mxu0
        %v3919 = vpop.f32.mrb[0].mxu0
        %v3920 = vpop.f32.mrb[0].mxu0
        %3921 = vdwg.mxu0
        %v3922 = vrot.slane %v3654, 2
        %v3923 = vrot.slane %v3655, 2
        %3926 = vmatprep.subr.bf16.mxu0 0
        %3927 = vmatpush1.bf16.msra.mxu0 %v1499
        %3928 = vmatprep.subr.bf16.mxu0 0
        %3929 = vmatpush1.bf16.msra.mxu0 %v1500
        %3930 = vmatprep.subr.bf16.mxu0 0
        %3931 = vmatpush1.bf16.msra.mxu0 %v1501
        %3932 = vmatprep.subr.bf16.mxu0 0
        %3933 = vmatpush1.bf16.msra.mxu0 %v1502
        %3934 = vmatprep.subr.bf16.mxu0 0
        %3935 = vmatpush1.bf16.msra.mxu0 %v1503
        %3936 = vmatprep.subr.bf16.mxu0 0
        %3937 = vmatpush1.bf16.msra.mxu0 %v1504
        %3938 = vmatprep.subr.bf16.mxu0 0
        %3939 = vmatpush1.bf16.msra.mxu0 %v1505
        %3940 = vmatprep.subr.bf16.mxu0 0
        %3941 = vmatpush1.bf16.msra.mxu0 %v1506
        %3942 = vmatprep.subr.bf16.mxu0 0
        %3943 = vmatpush1.bf16.msra.mxu0 %v1507
        %3944 = vmatprep.subr.bf16.mxu0 0
        %3945 = vmatpush1.bf16.msra.mxu0 %v1508
        %3946 = vmatprep.subr.bf16.mxu0 0
        %3947 = vmatpush1.bf16.msra.mxu0 %v1509
        %3948 = vmatprep.subr.bf16.mxu0 0
        %3949 = vmatpush1.bf16.msra.mxu0 %v1510
        %3950 = vmatprep.subr.bf16.mxu0 0
        %3951 = vmatpush1.bf16.msra.mxu0 %v1511
        %3952 = vmatprep.subr.bf16.mxu0 0
        %3953 = vmatpush1.bf16.msra.mxu0 %v1512
        %3954 = vmatprep.subr.bf16.mxu0 0
        %3955 = vmatpush1.bf16.msra.mxu0 %v1513
        %3956 = vmatprep.subr.bf16.mxu0 0
        %3957 = vmatpush1.bf16.msra.mxu0 %v1514
        %3958 = vmatprep.mubr.bf16.mxu0 %v3923
        %3959 = vmatmul.mubr.bf16.gmra.mrb[0].mxu0 %v3922
        %v3960 = vpop.f32.mrb[0].mxu0
        %v3961 = vadd.f32 %v3787, %v3960
        %v3962 = vpop.f32.mrb[0].mxu0
        %v3963 = vpop.f32.mrb[0].mxu0
        %v3964 = vpop.f32.mrb[0].mxu0
        %3965 = vdwg.mxu0
        %v3966 = vrot.slane %v3654, 3
        %v3967 = vrot.slane %v3655, 3
        %3970 = vmatprep.subr.bf16.mxu0 0
        %3971 = vmatpush1.bf16.msra.mxu0 %v1639
        %3972 = vmatprep.subr.bf16.mxu0 0
        %3973 = vmatpush1.bf16.msra.mxu0 %v1640
        %3974 = vmatprep.subr.bf16.mxu0 0
        %3975 = vmatpush1.bf16.msra.mxu0 %v1641
        %3976 = vmatprep.subr.bf16.mxu0 0
        %3977 = vmatpush1.bf16.msra.mxu0 %v1642
        %3978 = vmatprep.subr.bf16.mxu0 0
        %3979 = vmatpush1.bf16.msra.mxu0 %v1643
        %3980 = vmatprep.subr.bf16.mxu0 0
        %3981 = vmatpush1.bf16.msra.mxu0 %v1644
        %3982 = vmatprep.subr.bf16.mxu0 0
        %3983 = vmatpush1.bf16.msra.mxu0 %v1645
        %3984 = vmatprep.subr.bf16.mxu0 0
        %3985 = vmatpush1.bf16.msra.mxu0 %v1646
        %3986 = vmatprep.subr.bf16.mxu0 0
        %3987 = vmatpush1.bf16.msra.mxu0 %v1647
        %3988 = vmatprep.subr.bf16.mxu0 0
        %3989 = vmatpush1.bf16.msra.mxu0 %v1648
        %3990 = vmatprep.subr.bf16.mxu0 0
        %3991 = vmatpush1.bf16.msra.mxu0 %v1649
        %3992 = vmatprep.subr.bf16.mxu0 0
        %3993 = vmatpush1.bf16.msra.mxu0 %v1650
        %3994 = vmatprep.subr.bf16.mxu0 0
        %3995 = vmatpush1.bf16.msra.mxu0 %v1651
        %3996 = vmatprep.subr.bf16.mxu0 0
        %3997 = vmatpush1.bf16.msra.mxu0 %v1652
        %3998 = vmatprep.subr.bf16.mxu0 0
        %3999 = vmatpush1.bf16.msra.mxu0 %v1653
        %4000 = vmatprep.subr.bf16.mxu0 0
        %4001 = vmatpush1.bf16.msra.mxu0 %v1654
        %4002 = vmatprep.mubr.bf16.mxu0 %v3967
        %4003 = vmatmul.mubr.bf16.gmra.mrb[0].mxu0 %v3966
        %v4004 = vpop.f32.mrb[0].mxu0
        %v4005 = vadd.f32 %v3831, %v4004
        %v4006 = vpop.f32.mrb[0].mxu0
        %v4007 = vpop.f32.mrb[0].mxu0
        %v4008 = vpop.f32.mrb[0].mxu0
        %4009 = vdwg.mxu0
        %v4010 = vadd.f32 %v3871, %v3917
        %v4011 = vadd.f32 %v3961, %v4005
        %v4012 = vadd.f32 %v4010, %v4011
        %v4013 = vadd.f32 %v4012, %v225
        %v4014 = vmul.f32 %v3560, 0.9
        %v4015 = vadd.f32 %v4014, %v4013
        %v4016 = vadd.f32 %v4015, 0.0
        %vm4017 = vcmp.ge.f32.partialorder %v4016, 1.0
        %v4018 = vsel %vm4017, 1, 0
        %v4019 = vcvt.s32.f32 %v4018
        %v4020 = vsub.f32 %v4016, %v4019
        %v4021 = vadd.f32 %v3561, %v4019
        %s4022 = scalar_lea.vmem %s221, 288
        %v4023 = vld [vmem:[%s4022] sm:$0xff]
        %v4024 = vld [vmem:[%s4022 + $0x8] sm:$0xff]
        %v4025 = vld [vmem:[%s4022 + $0x10] sm:$0xff]
        %v4026 = vld [vmem:[%s4022 + $0x18] sm:$0xff]
        %v4027 = vld [vmem:[%s4022 + $0x20] sm:$0xff]
        %v4028 = vld [vmem:[%s4022 + $0x28] sm:$0xff]
        %v4035 = vunpack.c.l.b16 %v4023
        %v4036 = vunpack.c.h.b16 %v4023
        %v4037 = vunpack.c.l.b16 %v4024
        %v4038 = vunpack.c.h.b16 %v4024
        %v4039 = vunpack.c.l.b16 %v4025
        %v4040 = vunpack.c.h.b16 %v4025
        %v4041 = vunpack.c.l.b16 %v4026
        %v4042 = vunpack.c.h.b16 %v4026
        %v4043 = vunpack.c.l.b16 %v4027
        %v4044 = vunpack.c.h.b16 %v4027
        %v4045 = vunpack.c.l.b16 %v4028
        %v4046 = vunpack.c.h.b16 %v4028
        %v4047 = vpack.c.b16 %v4037, %v4035
        %v4048 = vpack.c.b16 %v4038, %v4036
        %v4049 = vpack.c.b16 %v4041, %v4039
        %v4050 = vpack.c.b16 %v4042, %v4040
        %v4051 = vpack.c.b16 %v4045, %v4043
        %v4052 = vpack.c.b16 %v4046, %v4044
        %4059 = vmatprep.subr.bf16.mxu0 %v4048
        %4060 = vmatpush1.bf16.msra.mxu0 %v4047
        %4061 = vmatprep.subr.bf16.mxu0 %v4050
        %4062 = vmatpush1.bf16.msra.mxu0 %v4049
        %4063 = vmatprep.subr.bf16.mxu0 %v4052
        %4064 = vmatpush1.bf16.msra.mxu0 %v4051
        %4065 = vmatprep.subr.bf16.mxu0 0
        %4066 = vmatpush1.bf16.msra.mxu0 0
        %4067 = vmatprep.subr.bf16.mxu0 0
        %4068 = vmatpush1.bf16.msra.mxu0 0
        %4069 = vmatprep.subr.bf16.mxu0 0
        %4070 = vmatpush1.bf16.msra.mxu0 0
        %4071 = vmatprep.subr.bf16.mxu0 0
        %4072 = vmatpush1.bf16.msra.mxu0 0
        %4073 = vmatprep.subr.bf16.mxu0 0
        %4074 = vmatpush1.bf16.msra.mxu0 0
        %4075 = vmatprep.subr.bf16.mxu0 0
        %4076 = vmatpush1.bf16.msra.mxu0 0
        %4077 = vmatprep.subr.bf16.mxu0 0
        %4078 = vmatpush1.bf16.msra.mxu0 0
        %4079 = vmatprep.subr.bf16.mxu0 0
        %4080 = vmatpush1.bf16.msra.mxu0 0
        %4081 = vmatprep.subr.bf16.mxu0 0
        %4082 = vmatpush1.bf16.msra.mxu0 0
        %4083 = vmatprep.subr.bf16.mxu0 0
        %4084 = vmatpush1.bf16.msra.mxu0 0
        %4085 = vmatprep.subr.bf16.mxu0 0
        %4086 = vmatpush1.bf16.msra.mxu0 0
        %4087 = vmatprep.subr.bf16.mxu0 0
        %4088 = vmatpush1.bf16.msra.mxu0 0
        %4089 = vmatprep.subr.bf16.mxu0 0
        %4090 = vmatpush1.bf16.msra.mxu0 0
        %4091 = vmatprep.mubr.bf16.mxu0 0
        %4092 = vmatmul.mubr.bf16.gmra.mrb[0].mxu0 %v269
        %v4093 = vpop.f32.mrb[0].mxu0
        %v4094 = vadd.f32 %v235, %v4093
        %v4095 = vpop.f32.mrb[0].mxu0
        %v4096 = vadd.f32 %v235, %v4095
        %v4097 = vpop.f32.mrb[0].mxu0
        %v4098 = vpop.f32.mrb[0].mxu0
        %4099 = vdwg.mxu0
        %v4100 = vmul.f32 %v3652, 0.9
        %v4101 = vmul.f32 %v3653, 0.9
        %v4102 = vadd.f32 %v4100, %v4094
        %v4103 = vadd.f32 %v4101, %v4096
        %v4104 = vadd.f32 %v4102, 0.0
        %v4105 = vadd.f32 %v4103, 0.0
        %vm4106 = vcmp.ge.f32.partialorder %v4104, 1.0
        %vm4107 = vcmp.ge.f32.partialorder %v4105, 1.0
        %v4108 = vsel %vm4106, 1, 0
        %v4109 = vsel %vm4107, 1, 0
        %v4110 = vcvt.s32.f32 %v4108
        %v4111 = vcvt.s32.f32 %v4109
        %v4112 = vsub.f32 %v4104, %v4110
        %v4113 = vsub.f32 %v4105, %v4111
        %v4114 = vpack.c.bf16 %v4110, %v4110
        %v4115 = vpack.c.bf16 %v4111, %v4111
        %v4117 = vshrl.u32 %v4114, 16
        %v4120 = vshrl.u32 %v4115, 16
        %4124 = vmatprep.subr.bf16.mxu0 0
        %4125 = vmatpush1.bf16.msra.mxu0 %v463
        %4126 = vmatprep.subr.bf16.mxu0 0
        %4127 = vmatpush1.bf16.msra.mxu0 %v464
        %4128 = vmatprep.subr.bf16.mxu0 0
        %4129 = vmatpush1.bf16.msra.mxu0 %v465
        %4130 = vmatprep.subr.bf16.mxu0 0
        %4131 = vmatpush1.bf16.msra.mxu0 %v466
        %4132 = vmatprep.subr.bf16.mxu0 0
        %4133 = vmatpush1.bf16.msra.mxu0 %v467
        %4134 = vmatprep.subr.bf16.mxu0 0
        %4135 = vmatpush1.bf16.msra.mxu0 %v468
        %4136 = vmatprep.subr.bf16.mxu0 0
        %4137 = vmatpush1.bf16.msra.mxu0 %v469
        %4138 = vmatprep.subr.bf16.mxu0 0
        %4139 = vmatpush1.bf16.msra.mxu0 %v470
        %4140 = vmatprep.subr.bf16.mxu0 0
        %4141 = vmatpush1.bf16.msra.mxu0 %v471
        %4142 = vmatprep.subr.bf16.mxu0 0
        %4143 = vmatpush1.bf16.msra.mxu0 %v472
        %4144 = vmatprep.subr.bf16.mxu0 0
        %4145 = vmatpush1.bf16.msra.mxu0 %v473
        %4146 = vmatprep.subr.bf16.mxu0 0
        %4147 = vmatpush1.bf16.msra.mxu0 %v474
        %4148 = vmatprep.subr.bf16.mxu0 0
        %4149 = vmatpush1.bf16.msra.mxu0 %v475
        %4150 = vmatprep.subr.bf16.mxu0 0
        %4151 = vmatpush1.bf16.msra.mxu0 %v476
        %4152 = vmatprep.subr.bf16.mxu0 0
        %4153 = vmatpush1.bf16.msra.mxu0 %v477
        %4154 = vmatprep.subr.bf16.mxu0 0
        %4155 = vmatpush1.bf16.msra.mxu0 %v478
        %4156 = vmatprep.mubr.bf16.mxu0 %v4120
        %4157 = vmatmul.mubr.bf16.gmra.mrb[0].mxu0 %v4117
        %v4158 = vpop.f32.mrb[0].mxu0
        %v4159 = vadd.f32 0.0, %v4158
        %v4160 = vpop.f32.mrb[0].mxu0
        %v4161 = vpop.f32.mrb[0].mxu0
        %v4162 = vpop.f32.mrb[0].mxu0
        %4163 = vdwg.mxu0
        %v4164 = vrot.slane %v4117, 1
        %v4165 = vrot.slane %v4120, 1
        %4168 = vmatprep.subr.bf16.mxu0 0
        %4169 = vmatpush1.bf16.msra.mxu0 %v669
        %4170 = vmatprep.subr.bf16.mxu0 0
        %4171 = vmatpush1.bf16.msra.mxu0 %v670
        %4172 = vmatprep.subr.bf16.mxu0 0
        %4173 = vmatpush1.bf16.msra.mxu0 %v671
        %4174 = vmatprep.subr.bf16.mxu0 0
        %4175 = vmatpush1.bf16.msra.mxu0 %v672
        %4176 = vmatprep.subr.bf16.mxu0 0
        %4177 = vmatpush1.bf16.msra.mxu0 %v673
        %4178 = vmatprep.subr.bf16.mxu0 0
        %4179 = vmatpush1.bf16.msra.mxu0 %v674
        %4180 = vmatprep.subr.bf16.mxu0 0
        %4181 = vmatpush1.bf16.msra.mxu0 %v675
        %4182 = vmatprep.subr.bf16.mxu0 0
        %4183 = vmatpush1.bf16.msra.mxu0 %v676
        %4184 = vmatprep.subr.bf16.mxu0 0
        %4185 = vmatpush1.bf16.msra.mxu0 %v677
        %4186 = vmatprep.subr.bf16.mxu0 0
        %4187 = vmatpush1.bf16.msra.mxu0 %v678
        %4188 = vmatprep.subr.bf16.mxu0 0
        %4189 = vmatpush1.bf16.msra.mxu0 %v679
        %4190 = vmatprep.subr.bf16.mxu0 0
        %4191 = vmatpush1.bf16.msra.mxu0 %v680
        %4192 = vmatprep.subr.bf16.mxu0 0
        %4193 = vmatpush1.bf16.msra.mxu0 %v681
        %4194 = vmatprep.subr.bf16.mxu0 0
        %4195 = vmatpush1.bf16.msra.mxu0 %v682
        %4196 = vmatprep.subr.bf16.mxu0 0
        %4197 = vmatpush1.bf16.msra.mxu0 %v683
        %4198 = vmatprep.subr.bf16.mxu0 0
        %4199 = vmatpush1.bf16.msra.mxu0 %v684
        %4200 = vmatprep.mubr.bf16.mxu0 %v4165
        %4201 = vmatmul.mubr.bf16.gmra.mrb[0].mxu0 %v4164
        %v4202 = vpop.f32.mrb[0].mxu0
        %v4203 = vadd.f32 0.0, %v4202
        %v4204 = vpop.f32.mrb[0].mxu0
        %v4205 = vpop.f32.mrb[0].mxu0
        %v4206 = vpop.f32.mrb[0].mxu0
        %4207 = vdwg.mxu0
        %v4208 = vrot.slane %v4117, 2
        %v4209 = vrot.slane %v4120, 2
        %4212 = vmatprep.subr.bf16.mxu0 0
        %4213 = vmatpush1.bf16.msra.mxu0 %v875
        %4214 = vmatprep.subr.bf16.mxu0 0
        %4215 = vmatpush1.bf16.msra.mxu0 %v876
        %4216 = vmatprep.subr.bf16.mxu0 0
        %4217 = vmatpush1.bf16.msra.mxu0 %v877
        %4218 = vmatprep.subr.bf16.mxu0 0
        %4219 = vmatpush1.bf16.msra.mxu0 %v878
        %4220 = vmatprep.subr.bf16.mxu0 0
        %4221 = vmatpush1.bf16.msra.mxu0 %v879
        %4222 = vmatprep.subr.bf16.mxu0 0
        %4223 = vmatpush1.bf16.msra.mxu0 %v880
        %4224 = vmatprep.subr.bf16.mxu0 0
        %4225 = vmatpush1.bf16.msra.mxu0 %v881
        %4226 = vmatprep.subr.bf16.mxu0 0
        %4227 = vmatpush1.bf16.msra.mxu0 %v882
        %4228 = vmatprep.subr.bf16.mxu0 0
        %4229 = vmatpush1.bf16.msra.mxu0 %v883
        %4230 = vmatprep.subr.bf16.mxu0 0
        %4231 = vmatpush1.bf16.msra.mxu0 %v884
        %4232 = vmatprep.subr.bf16.mxu0 0
        %4233 = vmatpush1.bf16.msra.mxu0 %v885
        %4234 = vmatprep.subr.bf16.mxu0 0
        %4235 = vmatpush1.bf16.msra.mxu0 %v886
        %4236 = vmatprep.subr.bf16.mxu0 0
        %4237 = vmatpush1.bf16.msra.mxu0 %v887
        %4238 = vmatprep.subr.bf16.mxu0 0
        %4239 = vmatpush1.bf16.msra.mxu0 %v888
        %4240 = vmatprep.subr.bf16.mxu0 0
        %4241 = vmatpush1.bf16.msra.mxu0 %v889
        %4242 = vmatprep.subr.bf16.mxu0 0
        %4243 = vmatpush1.bf16.msra.mxu0 %v890
        %4244 = vmatprep.mubr.bf16.mxu0 %v4209
        %4245 = vmatmul.mubr.bf16.gmra.mrb[0].mxu0 %v4208
        %v4246 = vpop.f32.mrb[0].mxu0
        %v4247 = vadd.f32 0.0, %v4246
        %v4248 = vpop.f32.mrb[0].mxu0
        %v4249 = vpop.f32.mrb[0].mxu0
        %v4250 = vpop.f32.mrb[0].mxu0
        %4251 = vdwg.mxu0
        %v4252 = vrot.slane %v4117, 3
        %v4253 = vrot.slane %v4120, 3
        %4256 = vmatprep.subr.bf16.mxu0 0
        %4257 = vmatpush1.bf16.msra.mxu0 %v1081
        %4258 = vmatprep.subr.bf16.mxu0 0
        %4259 = vmatpush1.bf16.msra.mxu0 %v1082
        %4260 = vmatprep.subr.bf16.mxu0 0
        %4261 = vmatpush1.bf16.msra.mxu0 %v1083
        %4262 = vmatprep.subr.bf16.mxu0 0
        %4263 = vmatpush1.bf16.msra.mxu0 %v1084
        %4264 = vmatprep.subr.bf16.mxu0 0
        %4265 = vmatpush1.bf16.msra.mxu0 %v1085
        %4266 = vmatprep.subr.bf16.mxu0 0
        %4267 = vmatpush1.bf16.msra.mxu0 %v1086
        %4268 = vmatprep.subr.bf16.mxu0 0
        %4269 = vmatpush1.bf16.msra.mxu0 %v1087
        %4270 = vmatprep.subr.bf16.mxu0 0
        %4271 = vmatpush1.bf16.msra.mxu0 %v1088
        %4272 = vmatprep.subr.bf16.mxu0 0
        %4273 = vmatpush1.bf16.msra.mxu0 %v1089
        %4274 = vmatprep.subr.bf16.mxu0 0
        %4275 = vmatpush1.bf16.msra.mxu0 %v1090
        %4276 = vmatprep.subr.bf16.mxu0 0
        %4277 = vmatpush1.bf16.msra.mxu0 %v1091
        %4278 = vmatprep.subr.bf16.mxu0 0
        %4279 = vmatpush1.bf16.msra.mxu0 %v1092
        %4280 = vmatprep.subr.bf16.mxu0 0
        %4281 = vmatpush1.bf16.msra.mxu0 %v1093
        %4282 = vmatprep.subr.bf16.mxu0 0
        %4283 = vmatpush1.bf16.msra.mxu0 %v1094
        %4284 = vmatprep.subr.bf16.mxu0 0
        %4285 = vmatpush1.bf16.msra.mxu0 %v1095
        %4286 = vmatprep.subr.bf16.mxu0 0
        %4287 = vmatpush1.bf16.msra.mxu0 %v1096
        %4288 = vmatprep.mubr.bf16.mxu0 %v4253
        %4289 = vmatmul.mubr.bf16.gmra.mrb[0].mxu0 %v4252
        %v4290 = vpop.f32.mrb[0].mxu0
        %v4291 = vadd.f32 0.0, %v4290
        %v4292 = vpop.f32.mrb[0].mxu0
        %v4293 = vpop.f32.mrb[0].mxu0
        %v4294 = vpop.f32.mrb[0].mxu0
        %4295 = vdwg.mxu0
        %4296 = vmatprep.subr.bf16.mxu0 0
        %4297 = vmatpush1.bf16.msra.mxu0 %v1217
        %4298 = vmatprep.subr.bf16.mxu0 0
        %4299 = vmatpush1.bf16.msra.mxu0 %v1218
        %4300 = vmatprep.subr.bf16.mxu0 0
        %4301 = vmatpush1.bf16.msra.mxu0 %v1219
        %4302 = vmatprep.subr.bf16.mxu0 0
        %4303 = vmatpush1.bf16.msra.mxu0 %v1220
        %4304 = vmatprep.subr.bf16.mxu0 0
        %4305 = vmatpush1.bf16.msra.mxu0 %v1221
        %4306 = vmatprep.subr.bf16.mxu0 0
        %4307 = vmatpush1.bf16.msra.mxu0 %v1222
        %4308 = vmatprep.subr.bf16.mxu0 0
        %4309 = vmatpush1.bf16.msra.mxu0 %v1223
        %4310 = vmatprep.subr.bf16.mxu0 0
        %4311 = vmatpush1.bf16.msra.mxu0 %v1224
        %4312 = vmatprep.subr.bf16.mxu0 0
        %4313 = vmatpush1.bf16.msra.mxu0 %v1225
        %4314 = vmatprep.subr.bf16.mxu0 0
        %4315 = vmatpush1.bf16.msra.mxu0 %v1226
        %4316 = vmatprep.subr.bf16.mxu0 0
        %4317 = vmatpush1.bf16.msra.mxu0 %v1227
        %4318 = vmatprep.subr.bf16.mxu0 0
        %4319 = vmatpush1.bf16.msra.mxu0 %v1228
        %4320 = vmatprep.subr.bf16.mxu0 0
        %4321 = vmatpush1.bf16.msra.mxu0 %v1229
        %4322 = vmatprep.subr.bf16.mxu0 0
        %4323 = vmatpush1.bf16.msra.mxu0 %v1230
        %4324 = vmatprep.subr.bf16.mxu0 0
        %4325 = vmatpush1.bf16.msra.mxu0 %v1231
        %4326 = vmatprep.subr.bf16.mxu0 0
        %4327 = vmatpush1.bf16.msra.mxu0 %v1232
        %4328 = vmatprep.mubr.bf16.mxu0 %v4115
        %4329 = vmatmul.mubr.bf16.gmra.mrb[0].mxu0 %v4114
        %v4330 = vpop.f32.mrb[0].mxu0
        %v4331 = vadd.f32 %v4159, %v4330
        %v4332 = vpop.f32.mrb[0].mxu0
        %v4333 = vpop.f32.mrb[0].mxu0
        %v4334 = vpop.f32.mrb[0].mxu0
        %4335 = vdwg.mxu0
        %v4338 = vrot.slane %v4114, 1
        %v4339 = vrot.slane %v4115, 1
        %4342 = vmatprep.subr.bf16.mxu0 0
        %4343 = vmatpush1.bf16.msra.mxu0 %v1359
        %4344 = vmatprep.subr.bf16.mxu0 0
        %4345 = vmatpush1.bf16.msra.mxu0 %v1360
        %4346 = vmatprep.subr.bf16.mxu0 0
        %4347 = vmatpush1.bf16.msra.mxu0 %v1361
        %4348 = vmatprep.subr.bf16.mxu0 0
        %4349 = vmatpush1.bf16.msra.mxu0 %v1362
        %4350 = vmatprep.subr.bf16.mxu0 0
        %4351 = vmatpush1.bf16.msra.mxu0 %v1363
        %4352 = vmatprep.subr.bf16.mxu0 0
        %4353 = vmatpush1.bf16.msra.mxu0 %v1364
        %4354 = vmatprep.subr.bf16.mxu0 0
        %4355 = vmatpush1.bf16.msra.mxu0 %v1365
        %4356 = vmatprep.subr.bf16.mxu0 0
        %4357 = vmatpush1.bf16.msra.mxu0 %v1366
        %4358 = vmatprep.subr.bf16.mxu0 0
        %4359 = vmatpush1.bf16.msra.mxu0 %v1367
        %4360 = vmatprep.subr.bf16.mxu0 0
        %4361 = vmatpush1.bf16.msra.mxu0 %v1368
        %4362 = vmatprep.subr.bf16.mxu0 0
        %4363 = vmatpush1.bf16.msra.mxu0 %v1369
        %4364 = vmatprep.subr.bf16.mxu0 0
        %4365 = vmatpush1.bf16.msra.mxu0 %v1370
        %4366 = vmatprep.subr.bf16.mxu0 0
        %4367 = vmatpush1.bf16.msra.mxu0 %v1371
        %4368 = vmatprep.subr.bf16.mxu0 0
        %4369 = vmatpush1.bf16.msra.mxu0 %v1372
        %4370 = vmatprep.subr.bf16.mxu0 0
        %4371 = vmatpush1.bf16.msra.mxu0 %v1373
        %4372 = vmatprep.subr.bf16.mxu0 0
        %4373 = vmatpush1.bf16.msra.mxu0 %v1374
        %4374 = vmatprep.mubr.bf16.mxu0 %v4339
        %4375 = vmatmul.mubr.bf16.gmra.mrb[0].mxu0 %v4338
        %v4376 = vpop.f32.mrb[0].mxu0
        %v4377 = vadd.f32 %v4203, %v4376
        %v4378 = vpop.f32.mrb[0].mxu0
        %v4379 = vpop.f32.mrb[0].mxu0
        %v4380 = vpop.f32.mrb[0].mxu0
        %4381 = vdwg.mxu0
        %v4382 = vrot.slane %v4114, 2
        %v4383 = vrot.slane %v4115, 2
        %4386 = vmatprep.subr.bf16.mxu0 0
        %4387 = vmatpush1.bf16.msra.mxu0 %v1499
        %4388 = vmatprep.subr.bf16.mxu0 0
        %4389 = vmatpush1.bf16.msra.mxu0 %v1500
        %4390 = vmatprep.subr.bf16.mxu0 0
        %4391 = vmatpush1.bf16.msra.mxu0 %v1501
        %4392 = vmatprep.subr.bf16.mxu0 0
        %4393 = vmatpush1.bf16.msra.mxu0 %v1502
        %4394 = vmatprep.subr.bf16.mxu0 0
        %4395 = vmatpush1.bf16.msra.mxu0 %v1503
        %4396 = vmatprep.subr.bf16.mxu0 0
        %4397 = vmatpush1.bf16.msra.mxu0 %v1504
        %4398 = vmatprep.subr.bf16.mxu0 0
        %4399 = vmatpush1.bf16.msra.mxu0 %v1505
        %4400 = vmatprep.subr.bf16.mxu0 0
        %4401 = vmatpush1.bf16.msra.mxu0 %v1506
        %4402 = vmatprep.subr.bf16.mxu0 0
        %4403 = vmatpush1.bf16.msra.mxu0 %v1507
        %4404 = vmatprep.subr.bf16.mxu0 0
        %4405 = vmatpush1.bf16.msra.mxu0 %v1508
        %4406 = vmatprep.subr.bf16.mxu0 0
        %4407 = vmatpush1.bf16.msra.mxu0 %v1509
        %4408 = vmatprep.subr.bf16.mxu0 0
        %4409 = vmatpush1.bf16.msra.mxu0 %v1510
        %4410 = vmatprep.subr.bf16.mxu0 0
        %4411 = vmatpush1.bf16.msra.mxu0 %v1511
        %4412 = vmatprep.subr.bf16.mxu0 0
        %4413 = vmatpush1.bf16.msra.mxu0 %v1512
        %4414 = vmatprep.subr.bf16.mxu0 0
        %4415 = vmatpush1.bf16.msra.mxu0 %v1513
        %4416 = vmatprep.subr.bf16.mxu0 0
        %4417 = vmatpush1.bf16.msra.mxu0 %v1514
        %4418 = vmatprep.mubr.bf16.mxu0 %v4383
        %4419 = vmatmul.mubr.bf16.gmra.mrb[0].mxu0 %v4382
        %v4420 = vpop.f32.mrb[0].mxu0
        %v4421 = vadd.f32 %v4247, %v4420
        %v4422 = vpop.f32.mrb[0].mxu0
        %v4423 = vpop.f32.mrb[0].mxu0
        %v4424 = vpop.f32.mrb[0].mxu0
        %4425 = vdwg.mxu0
        %v4426 = vrot.slane %v4114, 3
        %v4427 = vrot.slane %v4115, 3
        %4430 = vmatprep.subr.bf16.mxu0 0
        %4431 = vmatpush1.bf16.msra.mxu0 %v1639
        %4432 = vmatprep.subr.bf16.mxu0 0
        %4433 = vmatpush1.bf16.msra.mxu0 %v1640
        %4434 = vmatprep.subr.bf16.mxu0 0
        %4435 = vmatpush1.bf16.msra.mxu0 %v1641
        %4436 = vmatprep.subr.bf16.mxu0 0
        %4437 = vmatpush1.bf16.msra.mxu0 %v1642
        %4438 = vmatprep.subr.bf16.mxu0 0
        %4439 = vmatpush1.bf16.msra.mxu0 %v1643
        %4440 = vmatprep.subr.bf16.mxu0 0
        %4441 = vmatpush1.bf16.msra.mxu0 %v1644
        %4442 = vmatprep.subr.bf16.mxu0 0
        %4443 = vmatpush1.bf16.msra.mxu0 %v1645
        %4444 = vmatprep.subr.bf16.mxu0 0
        %4445 = vmatpush1.bf16.msra.mxu0 %v1646
        %4446 = vmatprep.subr.bf16.mxu0 0
        %4447 = vmatpush1.bf16.msra.mxu0 %v1647
        %4448 = vmatprep.subr.bf16.mxu0 0
        %4449 = vmatpush1.bf16.msra.mxu0 %v1648
        %4450 = vmatprep.subr.bf16.mxu0 0
        %4451 = vmatpush1.bf16.msra.mxu0 %v1649
        %4452 = vmatprep.subr.bf16.mxu0 0
        %4453 = vmatpush1.bf16.msra.mxu0 %v1650
        %4454 = vmatprep.subr.bf16.mxu0 0
        %4455 = vmatpush1.bf16.msra.mxu0 %v1651
        %4456 = vmatprep.subr.bf16.mxu0 0
        %4457 = vmatpush1.bf16.msra.mxu0 %v1652
        %4458 = vmatprep.subr.bf16.mxu0 0
        %4459 = vmatpush1.bf16.msra.mxu0 %v1653
        %4460 = vmatprep.subr.bf16.mxu0 0
        %4461 = vmatpush1.bf16.msra.mxu0 %v1654
        %4462 = vmatprep.mubr.bf16.mxu0 %v4427
        %4463 = vmatmul.mubr.bf16.gmra.mrb[0].mxu0 %v4426
        %v4464 = vpop.f32.mrb[0].mxu0
        %v4465 = vadd.f32 %v4291, %v4464
        %v4466 = vpop.f32.mrb[0].mxu0
        %v4467 = vpop.f32.mrb[0].mxu0
        %v4468 = vpop.f32.mrb[0].mxu0
        %4469 = vdwg.mxu0
        %v4470 = vadd.f32 %v4331, %v4377
        %v4471 = vadd.f32 %v4421, %v4465
        %v4472 = vadd.f32 %v4470, %v4471
        %v4473 = vadd.f32 %v4472, %v225
        %v4474 = vmul.f32 %v4020, 0.9
        %v4475 = vadd.f32 %v4474, %v4473
        %v4476 = vadd.f32 %v4475, 0.0
        %vm4477 = vcmp.ge.f32.partialorder %v4476, 1.0
        %v4478 = vsel %vm4477, 1, 0
        %v4479 = vcvt.s32.f32 %v4478
        %v4480 = vsub.f32 %v4476, %v4479
        %v4481 = vadd.f32 %v4021, %v4479
        %s4482 = scalar_lea.vmem %s221, 336
        %v4483 = vld [vmem:[%s4482] sm:$0xff]
        %v4484 = vld [vmem:[%s4482 + $0x8] sm:$0xff]
        %v4485 = vld [vmem:[%s4482 + $0x10] sm:$0xff]
        %v4486 = vld [vmem:[%s4482 + $0x18] sm:$0xff]
        %v4487 = vld [vmem:[%s4482 + $0x20] sm:$0xff]
        %v4488 = vld [vmem:[%s4482 + $0x28] sm:$0xff]
        %v4495 = vunpack.c.l.b16 %v4483
        %v4496 = vunpack.c.h.b16 %v4483
        %v4497 = vunpack.c.l.b16 %v4484
        %v4498 = vunpack.c.h.b16 %v4484
        %v4499 = vunpack.c.l.b16 %v4485
        %v4500 = vunpack.c.h.b16 %v4485
        %v4501 = vunpack.c.l.b16 %v4486
        %v4502 = vunpack.c.h.b16 %v4486
        %v4503 = vunpack.c.l.b16 %v4487
        %v4504 = vunpack.c.h.b16 %v4487
        %v4505 = vunpack.c.l.b16 %v4488
        %v4506 = vunpack.c.h.b16 %v4488
        %v4507 = vpack.c.b16 %v4497, %v4495
        %v4508 = vpack.c.b16 %v4498, %v4496
        %v4509 = vpack.c.b16 %v4501, %v4499
        %v4510 = vpack.c.b16 %v4502, %v4500
        %v4511 = vpack.c.b16 %v4505, %v4503
        %v4512 = vpack.c.b16 %v4506, %v4504
        %4519 = vmatprep.subr.bf16.mxu0 %v4508
        %4520 = vmatpush1.bf16.msra.mxu0 %v4507
        %4521 = vmatprep.subr.bf16.mxu0 %v4510
        %4522 = vmatpush1.bf16.msra.mxu0 %v4509
        %4523 = vmatprep.subr.bf16.mxu0 %v4512
        %4524 = vmatpush1.bf16.msra.mxu0 %v4511
        %4525 = vmatprep.subr.bf16.mxu0 0
        %4526 = vmatpush1.bf16.msra.mxu0 0
        %4527 = vmatprep.subr.bf16.mxu0 0
        %4528 = vmatpush1.bf16.msra.mxu0 0
        %4529 = vmatprep.subr.bf16.mxu0 0
        %4530 = vmatpush1.bf16.msra.mxu0 0
        %4531 = vmatprep.subr.bf16.mxu0 0
        %4532 = vmatpush1.bf16.msra.mxu0 0
        %4533 = vmatprep.subr.bf16.mxu0 0
        %4534 = vmatpush1.bf16.msra.mxu0 0
        %4535 = vmatprep.subr.bf16.mxu0 0
        %4536 = vmatpush1.bf16.msra.mxu0 0
        %4537 = vmatprep.subr.bf16.mxu0 0
        %4538 = vmatpush1.bf16.msra.mxu0 0
        %4539 = vmatprep.subr.bf16.mxu0 0
        %4540 = vmatpush1.bf16.msra.mxu0 0
        %4541 = vmatprep.subr.bf16.mxu0 0
        %4542 = vmatpush1.bf16.msra.mxu0 0
        %4543 = vmatprep.subr.bf16.mxu0 0
        %4544 = vmatpush1.bf16.msra.mxu0 0
        %4545 = vmatprep.subr.bf16.mxu0 0
        %4546 = vmatpush1.bf16.msra.mxu0 0
        %4547 = vmatprep.subr.bf16.mxu0 0
        %4548 = vmatpush1.bf16.msra.mxu0 0
        %4549 = vmatprep.subr.bf16.mxu0 0
        %4550 = vmatpush1.bf16.msra.mxu0 0
        %4551 = vmatprep.mubr.bf16.mxu0 0
        %4552 = vmatmul.mubr.bf16.gmra.mrb[0].mxu0 %v269
        %v4553 = vpop.f32.mrb[0].mxu0
        %v4554 = vadd.f32 %v235, %v4553
        %v4555 = vpop.f32.mrb[0].mxu0
        %v4556 = vadd.f32 %v235, %v4555
        %v4557 = vpop.f32.mrb[0].mxu0
        %v4558 = vpop.f32.mrb[0].mxu0
        %4559 = vdwg.mxu0
        %v4560 = vmul.f32 %v4112, 0.9
        %v4561 = vmul.f32 %v4113, 0.9
        %v4562 = vadd.f32 %v4560, %v4554
        %v4563 = vadd.f32 %v4561, %v4556
        %v4564 = vadd.f32 %v4562, 0.0
        %v4565 = vadd.f32 %v4563, 0.0
        %vm4566 = vcmp.ge.f32.partialorder %v4564, 1.0
        %vm4567 = vcmp.ge.f32.partialorder %v4565, 1.0
        %v4568 = vsel %vm4566, 1, 0
        %v4569 = vsel %vm4567, 1, 0
        %v4570 = vcvt.s32.f32 %v4568
        %v4571 = vcvt.s32.f32 %v4569
        %v4572 = vpack.c.bf16 %v4570, %v4570
        %v4573 = vpack.c.bf16 %v4571, %v4571
        %v4575 = vshrl.u32 %v4572, 16
        %v4578 = vshrl.u32 %v4573, 16
        %4582 = vmatprep.subr.bf16.mxu0 0
        %4583 = vmatpush1.bf16.msra.mxu0 %v463
        %4584 = vmatprep.subr.bf16.mxu0 0
        %4585 = vmatpush1.bf16.msra.mxu0 %v464
        %4586 = vmatprep.subr.bf16.mxu0 0
        %4587 = vmatpush1.bf16.msra.mxu0 %v465
        %4588 = vmatprep.subr.bf16.mxu0 0
        %4589 = vmatpush1.bf16.msra.mxu0 %v466
        %4590 = vmatprep.subr.bf16.mxu0 0
        %4591 = vmatpush1.bf16.msra.mxu0 %v467
        %4592 = vmatprep.subr.bf16.mxu0 0
        %4593 = vmatpush1.bf16.msra.mxu0 %v468
        %4594 = vmatprep.subr.bf16.mxu0 0
        %4595 = vmatpush1.bf16.msra.mxu0 %v469
        %4596 = vmatprep.subr.bf16.mxu0 0
        %4597 = vmatpush1.bf16.msra.mxu0 %v470
        %4598 = vmatprep.subr.bf16.mxu0 0
        %4599 = vmatpush1.bf16.msra.mxu0 %v471
        %4600 = vmatprep.subr.bf16.mxu0 0
        %4601 = vmatpush1.bf16.msra.mxu0 %v472
        %4602 = vmatprep.subr.bf16.mxu0 0
        %4603 = vmatpush1.bf16.msra.mxu0 %v473
        %4604 = vmatprep.subr.bf16.mxu0 0
        %4605 = vmatpush1.bf16.msra.mxu0 %v474
        %4606 = vmatprep.subr.bf16.mxu0 0
        %4607 = vmatpush1.bf16.msra.mxu0 %v475
        %4608 = vmatprep.subr.bf16.mxu0 0
        %4609 = vmatpush1.bf16.msra.mxu0 %v476
        %4610 = vmatprep.subr.bf16.mxu0 0
        %4611 = vmatpush1.bf16.msra.mxu0 %v477
        %4612 = vmatprep.subr.bf16.mxu0 0
        %4613 = vmatpush1.bf16.msra.mxu0 %v478
        %4614 = vmatprep.mubr.bf16.mxu0 %v4578
        %4615 = vmatmul.mubr.bf16.gmra.mrb[0].mxu0 %v4575
        %v4616 = vpop.f32.mrb[0].mxu0
        %v4617 = vadd.f32 0.0, %v4616
        %v4618 = vpop.f32.mrb[0].mxu0
        %v4619 = vpop.f32.mrb[0].mxu0
        %v4620 = vpop.f32.mrb[0].mxu0
        %4621 = vdwg.mxu0
        %v4622 = vrot.slane %v4575, 1
        %v4623 = vrot.slane %v4578, 1
        %4626 = vmatprep.subr.bf16.mxu0 0
        %4627 = vmatpush1.bf16.msra.mxu0 %v669
        %4628 = vmatprep.subr.bf16.mxu0 0
        %4629 = vmatpush1.bf16.msra.mxu0 %v670
        %4630 = vmatprep.subr.bf16.mxu0 0
        %4631 = vmatpush1.bf16.msra.mxu0 %v671
        %4632 = vmatprep.subr.bf16.mxu0 0
        %4633 = vmatpush1.bf16.msra.mxu0 %v672
        %4634 = vmatprep.subr.bf16.mxu0 0
        %4635 = vmatpush1.bf16.msra.mxu0 %v673
        %4636 = vmatprep.subr.bf16.mxu0 0
        %4637 = vmatpush1.bf16.msra.mxu0 %v674
        %4638 = vmatprep.subr.bf16.mxu0 0
        %4639 = vmatpush1.bf16.msra.mxu0 %v675
        %4640 = vmatprep.subr.bf16.mxu0 0
        %4641 = vmatpush1.bf16.msra.mxu0 %v676
        %4642 = vmatprep.subr.bf16.mxu0 0
        %4643 = vmatpush1.bf16.msra.mxu0 %v677
        %4644 = vmatprep.subr.bf16.mxu0 0
        %4645 = vmatpush1.bf16.msra.mxu0 %v678
        %4646 = vmatprep.subr.bf16.mxu0 0
        %4647 = vmatpush1.bf16.msra.mxu0 %v679
        %4648 = vmatprep.subr.bf16.mxu0 0
        %4649 = vmatpush1.bf16.msra.mxu0 %v680
        %4650 = vmatprep.subr.bf16.mxu0 0
        %4651 = vmatpush1.bf16.msra.mxu0 %v681
        %4652 = vmatprep.subr.bf16.mxu0 0
        %4653 = vmatpush1.bf16.msra.mxu0 %v682
        %4654 = vmatprep.subr.bf16.mxu0 0
        %4655 = vmatpush1.bf16.msra.mxu0 %v683
        %4656 = vmatprep.subr.bf16.mxu0 0
        %4657 = vmatpush1.bf16.msra.mxu0 %v684
        %4658 = vmatprep.mubr.bf16.mxu0 %v4623
        %4659 = vmatmul.mubr.bf16.gmra.mrb[0].mxu0 %v4622
        %v4660 = vpop.f32.mrb[0].mxu0
        %v4661 = vadd.f32 0.0, %v4660
        %v4662 = vpop.f32.mrb[0].mxu0
        %v4663 = vpop.f32.mrb[0].mxu0
        %v4664 = vpop.f32.mrb[0].mxu0
        %4665 = vdwg.mxu0
        %v4666 = vrot.slane %v4575, 2
        %v4667 = vrot.slane %v4578, 2
        %4670 = vmatprep.subr.bf16.mxu0 0
        %4671 = vmatpush1.bf16.msra.mxu0 %v875
        %4672 = vmatprep.subr.bf16.mxu0 0
        %4673 = vmatpush1.bf16.msra.mxu0 %v876
        %4674 = vmatprep.subr.bf16.mxu0 0
        %4675 = vmatpush1.bf16.msra.mxu0 %v877
        %4676 = vmatprep.subr.bf16.mxu0 0
        %4677 = vmatpush1.bf16.msra.mxu0 %v878
        %4678 = vmatprep.subr.bf16.mxu0 0
        %4679 = vmatpush1.bf16.msra.mxu0 %v879
        %4680 = vmatprep.subr.bf16.mxu0 0
        %4681 = vmatpush1.bf16.msra.mxu0 %v880
        %4682 = vmatprep.subr.bf16.mxu0 0
        %4683 = vmatpush1.bf16.msra.mxu0 %v881
        %4684 = vmatprep.subr.bf16.mxu0 0
        %4685 = vmatpush1.bf16.msra.mxu0 %v882
        %4686 = vmatprep.subr.bf16.mxu0 0
        %4687 = vmatpush1.bf16.msra.mxu0 %v883
        %4688 = vmatprep.subr.bf16.mxu0 0
        %4689 = vmatpush1.bf16.msra.mxu0 %v884
        %4690 = vmatprep.subr.bf16.mxu0 0
        %4691 = vmatpush1.bf16.msra.mxu0 %v885
        %4692 = vmatprep.subr.bf16.mxu0 0
        %4693 = vmatpush1.bf16.msra.mxu0 %v886
        %4694 = vmatprep.subr.bf16.mxu0 0
        %4695 = vmatpush1.bf16.msra.mxu0 %v887
        %4696 = vmatprep.subr.bf16.mxu0 0
        %4697 = vmatpush1.bf16.msra.mxu0 %v888
        %4698 = vmatprep.subr.bf16.mxu0 0
        %4699 = vmatpush1.bf16.msra.mxu0 %v889
        %4700 = vmatprep.subr.bf16.mxu0 0
        %4701 = vmatpush1.bf16.msra.mxu0 %v890
        %4702 = vmatprep.mubr.bf16.mxu0 %v4667
        %4703 = vmatmul.mubr.bf16.gmra.mrb[0].mxu0 %v4666
        %v4704 = vpop.f32.mrb[0].mxu0
        %v4705 = vadd.f32 0.0, %v4704
        %v4706 = vpop.f32.mrb[0].mxu0
        %v4707 = vpop.f32.mrb[0].mxu0
        %v4708 = vpop.f32.mrb[0].mxu0
        %4709 = vdwg.mxu0
        %v4710 = vrot.slane %v4575, 3
        %v4711 = vrot.slane %v4578, 3
        %4714 = vmatprep.subr.bf16.mxu0 0
        %4715 = vmatpush1.bf16.msra.mxu0 %v1081
        %4716 = vmatprep.subr.bf16.mxu0 0
        %4717 = vmatpush1.bf16.msra.mxu0 %v1082
        %4718 = vmatprep.subr.bf16.mxu0 0
        %4719 = vmatpush1.bf16.msra.mxu0 %v1083
        %4720 = vmatprep.subr.bf16.mxu0 0
        %4721 = vmatpush1.bf16.msra.mxu0 %v1084
        %4722 = vmatprep.subr.bf16.mxu0 0
        %4723 = vmatpush1.bf16.msra.mxu0 %v1085
        %4724 = vmatprep.subr.bf16.mxu0 0
        %4725 = vmatpush1.bf16.msra.mxu0 %v1086
        %4726 = vmatprep.subr.bf16.mxu0 0
        %4727 = vmatpush1.bf16.msra.mxu0 %v1087
        %4728 = vmatprep.subr.bf16.mxu0 0
        %4729 = vmatpush1.bf16.msra.mxu0 %v1088
        %4730 = vmatprep.subr.bf16.mxu0 0
        %4731 = vmatpush1.bf16.msra.mxu0 %v1089
        %4732 = vmatprep.subr.bf16.mxu0 0
        %4733 = vmatpush1.bf16.msra.mxu0 %v1090
        %4734 = vmatprep.subr.bf16.mxu0 0
        %4735 = vmatpush1.bf16.msra.mxu0 %v1091
        %4736 = vmatprep.subr.bf16.mxu0 0
        %4737 = vmatpush1.bf16.msra.mxu0 %v1092
        %4738 = vmatprep.subr.bf16.mxu0 0
        %4739 = vmatpush1.bf16.msra.mxu0 %v1093
        %4740 = vmatprep.subr.bf16.mxu0 0
        %4741 = vmatpush1.bf16.msra.mxu0 %v1094
        %4742 = vmatprep.subr.bf16.mxu0 0
        %4743 = vmatpush1.bf16.msra.mxu0 %v1095
        %4744 = vmatprep.subr.bf16.mxu0 0
        %4745 = vmatpush1.bf16.msra.mxu0 %v1096
        %4746 = vmatprep.mubr.bf16.mxu0 %v4711
        %4747 = vmatmul.mubr.bf16.gmra.mrb[0].mxu0 %v4710
        %v4748 = vpop.f32.mrb[0].mxu0
        %v4749 = vadd.f32 0.0, %v4748
        %v4750 = vpop.f32.mrb[0].mxu0
        %v4751 = vpop.f32.mrb[0].mxu0
        %v4752 = vpop.f32.mrb[0].mxu0
        %4753 = vdwg.mxu0
        %4754 = vmatprep.subr.bf16.mxu0 0
        %4755 = vmatpush1.bf16.msra.mxu0 %v1217
        %4756 = vmatprep.subr.bf16.mxu0 0
        %4757 = vmatpush1.bf16.msra.mxu0 %v1218
        %4758 = vmatprep.subr.bf16.mxu0 0
        %4759 = vmatpush1.bf16.msra.mxu0 %v1219
        %4760 = vmatprep.subr.bf16.mxu0 0
        %4761 = vmatpush1.bf16.msra.mxu0 %v1220
        %4762 = vmatprep.subr.bf16.mxu0 0
        %4763 = vmatpush1.bf16.msra.mxu0 %v1221
        %4764 = vmatprep.subr.bf16.mxu0 0
        %4765 = vmatpush1.bf16.msra.mxu0 %v1222
        %4766 = vmatprep.subr.bf16.mxu0 0
        %4767 = vmatpush1.bf16.msra.mxu0 %v1223
        %4768 = vmatprep.subr.bf16.mxu0 0
        %4769 = vmatpush1.bf16.msra.mxu0 %v1224
        %4770 = vmatprep.subr.bf16.mxu0 0
        %4771 = vmatpush1.bf16.msra.mxu0 %v1225
        %4772 = vmatprep.subr.bf16.mxu0 0
        %4773 = vmatpush1.bf16.msra.mxu0 %v1226
        %4774 = vmatprep.subr.bf16.mxu0 0
        %4775 = vmatpush1.bf16.msra.mxu0 %v1227
        %4776 = vmatprep.subr.bf16.mxu0 0
        %4777 = vmatpush1.bf16.msra.mxu0 %v1228
        %4778 = vmatprep.subr.bf16.mxu0 0
        %4779 = vmatpush1.bf16.msra.mxu0 %v1229
        %4780 = vmatprep.subr.bf16.mxu0 0
        %4781 = vmatpush1.bf16.msra.mxu0 %v1230
        %4782 = vmatprep.subr.bf16.mxu0 0
        %4783 = vmatpush1.bf16.msra.mxu0 %v1231
        %4784 = vmatprep.subr.bf16.mxu0 0
        %4785 = vmatpush1.bf16.msra.mxu0 %v1232
        %4786 = vmatprep.mubr.bf16.mxu0 %v4573
        %4787 = vmatmul.mubr.bf16.gmra.mrb[0].mxu0 %v4572
        %v4788 = vpop.f32.mrb[0].mxu0
        %v4789 = vadd.f32 %v4617, %v4788
        %v4790 = vpop.f32.mrb[0].mxu0
        %v4791 = vpop.f32.mrb[0].mxu0
        %v4792 = vpop.f32.mrb[0].mxu0
        %4793 = vdwg.mxu0
        %v4796 = vrot.slane %v4572, 1
        %v4797 = vrot.slane %v4573, 1
        %4800 = vmatprep.subr.bf16.mxu0 0
        %4801 = vmatpush1.bf16.msra.mxu0 %v1359
        %4802 = vmatprep.subr.bf16.mxu0 0
        %4803 = vmatpush1.bf16.msra.mxu0 %v1360
        %4804 = vmatprep.subr.bf16.mxu0 0
        %4805 = vmatpush1.bf16.msra.mxu0 %v1361
        %4806 = vmatprep.subr.bf16.mxu0 0
        %4807 = vmatpush1.bf16.msra.mxu0 %v1362
        %4808 = vmatprep.subr.bf16.mxu0 0
        %4809 = vmatpush1.bf16.msra.mxu0 %v1363
        %4810 = vmatprep.subr.bf16.mxu0 0
        %4811 = vmatpush1.bf16.msra.mxu0 %v1364
        %4812 = vmatprep.subr.bf16.mxu0 0
        %4813 = vmatpush1.bf16.msra.mxu0 %v1365
        %4814 = vmatprep.subr.bf16.mxu0 0
        %4815 = vmatpush1.bf16.msra.mxu0 %v1366
        %4816 = vmatprep.subr.bf16.mxu0 0
        %4817 = vmatpush1.bf16.msra.mxu0 %v1367
        %4818 = vmatprep.subr.bf16.mxu0 0
        %4819 = vmatpush1.bf16.msra.mxu0 %v1368
        %4820 = vmatprep.subr.bf16.mxu0 0
        %4821 = vmatpush1.bf16.msra.mxu0 %v1369
        %4822 = vmatprep.subr.bf16.mxu0 0
        %4823 = vmatpush1.bf16.msra.mxu0 %v1370
        %4824 = vmatprep.subr.bf16.mxu0 0
        %4825 = vmatpush1.bf16.msra.mxu0 %v1371
        %4826 = vmatprep.subr.bf16.mxu0 0
        %4827 = vmatpush1.bf16.msra.mxu0 %v1372
        %4828 = vmatprep.subr.bf16.mxu0 0
        %4829 = vmatpush1.bf16.msra.mxu0 %v1373
        %4830 = vmatprep.subr.bf16.mxu0 0
        %4831 = vmatpush1.bf16.msra.mxu0 %v1374
        %4832 = vmatprep.mubr.bf16.mxu0 %v4797
        %4833 = vmatmul.mubr.bf16.gmra.mrb[0].mxu0 %v4796
        %v4834 = vpop.f32.mrb[0].mxu0
        %v4835 = vadd.f32 %v4661, %v4834
        %v4836 = vpop.f32.mrb[0].mxu0
        %v4837 = vpop.f32.mrb[0].mxu0
        %v4838 = vpop.f32.mrb[0].mxu0
        %4839 = vdwg.mxu0
        %v4840 = vrot.slane %v4572, 2
        %v4841 = vrot.slane %v4573, 2
        %4844 = vmatprep.subr.bf16.mxu0 0
        %4845 = vmatpush1.bf16.msra.mxu0 %v1499
        %4846 = vmatprep.subr.bf16.mxu0 0
        %4847 = vmatpush1.bf16.msra.mxu0 %v1500
        %4848 = vmatprep.subr.bf16.mxu0 0
        %4849 = vmatpush1.bf16.msra.mxu0 %v1501
        %4850 = vmatprep.subr.bf16.mxu0 0
        %4851 = vmatpush1.bf16.msra.mxu0 %v1502
        %4852 = vmatprep.subr.bf16.mxu0 0
        %4853 = vmatpush1.bf16.msra.mxu0 %v1503
        %4854 = vmatprep.subr.bf16.mxu0 0
        %4855 = vmatpush1.bf16.msra.mxu0 %v1504
        %4856 = vmatprep.subr.bf16.mxu0 0
        %4857 = vmatpush1.bf16.msra.mxu0 %v1505
        %4858 = vmatprep.subr.bf16.mxu0 0
        %4859 = vmatpush1.bf16.msra.mxu0 %v1506
        %4860 = vmatprep.subr.bf16.mxu0 0
        %4861 = vmatpush1.bf16.msra.mxu0 %v1507
        %4862 = vmatprep.subr.bf16.mxu0 0
        %4863 = vmatpush1.bf16.msra.mxu0 %v1508
        %4864 = vmatprep.subr.bf16.mxu0 0
        %4865 = vmatpush1.bf16.msra.mxu0 %v1509
        %4866 = vmatprep.subr.bf16.mxu0 0
        %4867 = vmatpush1.bf16.msra.mxu0 %v1510
        %4868 = vmatprep.subr.bf16.mxu0 0
        %4869 = vmatpush1.bf16.msra.mxu0 %v1511
        %4870 = vmatprep.subr.bf16.mxu0 0
        %4871 = vmatpush1.bf16.msra.mxu0 %v1512
        %4872 = vmatprep.subr.bf16.mxu0 0
        %4873 = vmatpush1.bf16.msra.mxu0 %v1513
        %4874 = vmatprep.subr.bf16.mxu0 0
        %4875 = vmatpush1.bf16.msra.mxu0 %v1514
        %4876 = vmatprep.mubr.bf16.mxu0 %v4841
        %4877 = vmatmul.mubr.bf16.gmra.mrb[0].mxu0 %v4840
        %v4878 = vpop.f32.mrb[0].mxu0
        %v4879 = vadd.f32 %v4705, %v4878
        %v4880 = vpop.f32.mrb[0].mxu0
        %v4881 = vpop.f32.mrb[0].mxu0
        %v4882 = vpop.f32.mrb[0].mxu0
        %4883 = vdwg.mxu0
        %v4884 = vrot.slane %v4572, 3
        %v4885 = vrot.slane %v4573, 3
        %4888 = vmatprep.subr.bf16.mxu0 0
        %4889 = vmatpush1.bf16.msra.mxu0 %v1639
        %4890 = vmatprep.subr.bf16.mxu0 0
        %4891 = vmatpush1.bf16.msra.mxu0 %v1640
        %4892 = vmatprep.subr.bf16.mxu0 0
        %4893 = vmatpush1.bf16.msra.mxu0 %v1641
        %4894 = vmatprep.subr.bf16.mxu0 0
        %4895 = vmatpush1.bf16.msra.mxu0 %v1642
        %4896 = vmatprep.subr.bf16.mxu0 0
        %4897 = vmatpush1.bf16.msra.mxu0 %v1643
        %4898 = vmatprep.subr.bf16.mxu0 0
        %4899 = vmatpush1.bf16.msra.mxu0 %v1644
        %4900 = vmatprep.subr.bf16.mxu0 0
        %4901 = vmatpush1.bf16.msra.mxu0 %v1645
        %4902 = vmatprep.subr.bf16.mxu0 0
        %4903 = vmatpush1.bf16.msra.mxu0 %v1646
        %4904 = vmatprep.subr.bf16.mxu0 0
        %4905 = vmatpush1.bf16.msra.mxu0 %v1647
        %4906 = vmatprep.subr.bf16.mxu0 0
        %4907 = vmatpush1.bf16.msra.mxu0 %v1648
        %4908 = vmatprep.subr.bf16.mxu0 0
        %4909 = vmatpush1.bf16.msra.mxu0 %v1649
        %4910 = vmatprep.subr.bf16.mxu0 0
        %4911 = vmatpush1.bf16.msra.mxu0 %v1650
        %4912 = vmatprep.subr.bf16.mxu0 0
        %4913 = vmatpush1.bf16.msra.mxu0 %v1651
        %4914 = vmatprep.subr.bf16.mxu0 0
        %4915 = vmatpush1.bf16.msra.mxu0 %v1652
        %4916 = vmatprep.subr.bf16.mxu0 0
        %4917 = vmatpush1.bf16.msra.mxu0 %v1653
        %4918 = vmatprep.subr.bf16.mxu0 0
        %4919 = vmatpush1.bf16.msra.mxu0 %v1654
        %4920 = vmatprep.mubr.bf16.mxu0 %v4885
        %4921 = vmatmul.mubr.bf16.gmra.mrb[0].mxu0 %v4884
        %v4922 = vpop.f32.mrb[0].mxu0
        %v4923 = vadd.f32 %v4749, %v4922
        %v4924 = vpop.f32.mrb[0].mxu0
        %v4925 = vpop.f32.mrb[0].mxu0
        %v4926 = vpop.f32.mrb[0].mxu0
        %4927 = vdwg.mxu0
        %v4928 = vadd.f32 %v4789, %v4835
        %v4929 = vadd.f32 %v4879, %v4923
        %v4930 = vadd.f32 %v4928, %v4929
        %v4931 = vadd.f32 %v4930, %v225
        %v4932 = vmul.f32 %v4480, 0.9
        %v4933 = vadd.f32 %v4932, %v4931
        %v4934 = vadd.f32 %v4933, 0.0
        %vm4935 = vcmp.ge.f32.partialorder %v4934, 1.0
        %v4936 = vsel %vm4935, 1, 0
        %v4937 = vcvt.s32.f32 %v4936
        %v4938 = vadd.f32 %v4481, %v4937
        %v4939 = vmul.f32 %v4938, 0.125
        %4940 = vst [vmem:[%s216] sm:$0x1] %v4939
        %s4941 = sand.u32 %s137, 1
        %s4942 = scalar_lea.sflag [#allocation3], %s4941
        %s4943 = sand.u32 %s137, 1
        %s4944 = scalar_lea.vmem [#allocation2], %s4943
        // Predicated region
        $region41: #{isomorphic_snn_forward.1} parent=39 // pred_check
          %p4945 = pneg %p147
        $region42: #{isomorphic_snn_forward.1} parent=39 // pred_check_branch
          %4947 = sbr.rel (%p4945) target = $region44
        $region43: #{isomorphic_snn_forward.1} parent=39 // pred_region
          %s4949 = ssub.s32 16, 16
          %4950 = vsyncadd %s4942, %s4949
          %s4951 = smul.addr %s19, 16
          %s4952 = scalar_lea.hbm %s5, %s4951
          %s4954 = sshll.u32 %s4944, 4
          %s4955 = int_to_ptr.vmem [resolvable:$true] %s4954
          %4957 = dma.vmem_to_hbm [thread:$0]  %s4955, 16, %s4952, %s4942
        $region44: #{isomorphic_snn_forward.1} parent=39 // pred_fallthru
          _
      $region40: #{isomorphic_snn_forward.1} parent=5 // pred_fallthru
        _
      %p4958 = scmp.le.s32.totalorder 2, %s14
      // Predicated region
      $region45: #{isomorphic_snn_forward.1} parent=5 // pred_check
        %p4959 = pneg %p4958
      $region46: #{isomorphic_snn_forward.1} parent=5 // pred_check_branch
        %4961 = sbr.rel (%p4959) target = $region48
      $region47: #{isomorphic_snn_forward.1} parent=5 // pred_region
        %s4962 = ssub.s32 %s14, 2
        // Predicated region
        $region49: #{isomorphic_snn_forward.1} parent=47 // pred_check
          %p4963 = pneg %p153
        $region50: #{isomorphic_snn_forward.1} parent=47 // pred_check_branch
          %4965 = sbr.rel (%p4963) target = $region52
        $region51: #{isomorphic_snn_forward.1} parent=47 // pred_region
          %s4966 = sand.u32 %s138, 1
          %s4967 = scalar_lea.sflag [#allocation3], %s4966
          %s4968 = sand.u32 %s138, 1
          %s4969 = scalar_lea.vmem [#allocation2], %s4968
          %4970 = dma.done %s4967, 16
        $region52: #{isomorphic_snn_forward.1} parent=47 // pred_fallthru
          _
      $region48: #{isomorphic_snn_forward.1} parent=5 // pred_fallthru
        _
    $region6: #{isomorphic_snn_forward.1} parent=1 // loop_footer
      %s18 = sadd.s32 1, %s14
    $region7: #{isomorphic_snn_forward.1} parent=1 // loop_footer_branch
      %13 = sbr.rel target = $region3
    $region8: #{isomorphic_snn_forward.1} parent=1 // loop_exit
      _
    %4971 = vsyncpa [#allocation3], 1
    %s4972 = scalar_lea.sflag [#allocation3], 1
    %4973 = vsyncpa %s4972, 1

</llo_original>
